<compile_context>
chip_gen: v5e
topology: v5e:2x2
jax: 0.10.0
libtpu: 0.0.40
codegen_flags: <defaults>
</compile_context>

<pallas_src>
import functools

import jax
import jax.numpy as jnp
from jax.experimental import pallas as pl
from jax.experimental.pallas import tpu as pltpu


# ------------------------------ padding utils -------------------------------
def _round_up(x, m):
    return (x + m - 1) // m * m


def _pad_gate_cols(w, H, Hp):
    """(..., 4*H) -> (..., 4*Hp): zero-pad each of the 4 gate blocks to Hp lanes."""
    lead = w.shape[:-1]
    w4 = w.reshape(lead + (4, H))
    pad = [(0, 0)] * len(lead) + [(0, 0), (0, Hp - H)]
    return jnp.pad(w4, pad).reshape(lead + (4 * Hp,))


def _pad_rows(w, H, Hp):
    return jnp.pad(w, [(0, Hp - H)] + [(0, 0)] * (w.ndim - 1))


# -------------------------------- fused kernel -------------------------------
def _make_kernel(T, L, Bp, Hp):
    def kernel(x_ref, ewih_ref, eb_ref, ewhh_ref,
               dwhh_ref, db_ref, dwc_ref, dbc_ref, dwo_ref, dbo_ref,
               out_ref):
        def lstm_update(gates, c_prev):
            # gate slices are 128-lane aligned (Hp = multiple of 128)
            i = jax.nn.sigmoid(gates[:, 0 * Hp:1 * Hp])
            f = jax.nn.sigmoid(gates[:, 1 * Hp:2 * Hp])
            g = jnp.tanh(gates[:, 2 * Hp:3 * Hp])
            o = jax.nn.sigmoid(gates[:, 3 * Hp:4 * Hp])
            c_new = f * c_prev + i * g
            h_new = o * jnp.tanh(c_new)
            return h_new, c_new

        # ---- encoder ----
        # Input projection for all T steps in one MXU matmul (off the serial
        # chain); only the h-dependent matmul remains in the recurrence.
        xg = (jnp.dot(x_ref[...], ewih_ref[...],
                      preferred_element_type=jnp.float32)
              + eb_ref[...])                                    # (T*Bp, 4Hp)
        ewhh = ewhh_ref[...]
        h = jnp.zeros((Bp, Hp), jnp.float32)
        c = jnp.zeros((Bp, Hp), jnp.float32)
        for t in range(T):                                      # fully unrolled
            gates = xg[t * Bp:(t + 1) * Bp, :] + jnp.dot(
                h, ewhh, preferred_element_type=jnp.float32)
            h, c = lstm_update(gates, c)

        # ---- decoder (feedback folded into the recurrence weights) ----
        dwhh = dwhh_ref[...]
        db = db_ref[...]
        dwc = dwc_ref[...]
        dbc = dbc_ref[...]
        dwo = dwo_ref[...]
        dbo = dbo_ref[...]
        for t in range(L):                                      # fully unrolled
            if t == 0:
                # first decoder input is exactly zeros -> x@W_ih term vanishes
                gates = jnp.dot(h, dwhh,
                                preferred_element_type=jnp.float32) + db
            else:
                gates = jnp.dot(h, dwc,
                                preferred_element_type=jnp.float32) + dbc
            h, c = lstm_update(gates, c)
            y = jnp.dot(h, dwo, preferred_element_type=jnp.float32) + dbo
            out_ref[t] = y.astype(out_ref.dtype)                # lane-dense VMEM store

    return kernel


# ---------------------------------- wrapper ----------------------------------
@functools.partial(jax.jit, static_argnames=("target_length",))
def seq2seq_forward(x, target_length, params):
    """x: (B, T, I) float32.  Returns (B, target_length, H) float32."""
    B, T, I = x.shape
    H = params["enc_whh"].shape[0]
    L = target_length
    Bp = _round_up(max(B, 8), 8)          # sublane-aligned batch
    Hp = _round_up(max(H, 128), 128)      # lane-aligned hidden

    f32 = jnp.float32

    # encoder params, per-gate padded (zero padding keeps padded lanes at 0)
    ewih = _pad_gate_cols(params["enc_wih"].astype(f32), H, Hp)            # (I, 4Hp)
    ewhh = _pad_rows(_pad_gate_cols(params["enc_whh"].astype(f32), H, Hp), H, Hp)
    eb = _pad_gate_cols(params["enc_b"].astype(f32), H, Hp)                # (1, 4Hp)

    # decoder: fold the feedback path (y = h@W_out + b_out fed back into W_ih)
    w_comb = params["dec_whh"] + params["dec_wout"] @ params["dec_wih"]    # (H, 4H)
    b_comb = params["dec_b"] + params["dec_bout"] @ params["dec_wih"]      # (1, 4H)
    dwhh = _pad_rows(_pad_gate_cols(params["dec_whh"].astype(f32), H, Hp), H, Hp)
    db = _pad_gate_cols(params["dec_b"].astype(f32), H, Hp)
    dwc = _pad_rows(_pad_gate_cols(w_comb.astype(f32), H, Hp), H, Hp)
    dbc = _pad_gate_cols(b_comb.astype(f32), H, Hp)
    dwo = jnp.pad(params["dec_wout"].astype(f32), ((0, Hp - H), (0, Hp - H)))
    dbo = jnp.pad(params["dec_bout"].astype(f32), ((0, 0), (0, Hp - H)))

    # input: time-major, batch padded to Bp, flattened for the hoisted matmul
    x_tm = jnp.transpose(x.astype(f32), (1, 0, 2))            # (T, B, I)
    x_tm = jnp.pad(x_tm, ((0, 0), (0, Bp - B), (0, 0)))       # (T, Bp, I)
    x_flat = x_tm.reshape(T * Bp, I)                          # (T*Bp, I)

    vmem = lambda: pl.BlockSpec(memory_space=pltpu.MemorySpace.VMEM)
    out = pl.pallas_call(
        _make_kernel(T, L, Bp, Hp),
        out_shape=jax.ShapeDtypeStruct((L, Bp, Hp), f32),
        in_specs=[vmem() for _ in range(10)],
        out_specs=vmem(),
    )(x_flat, ewih, eb, ewhh, dwhh, db, dwc, dbc, dwo, dbo)

    # (L, Bp, Hp) -> (B, L, H), dropping padding
    return jnp.transpose(out, (1, 0, 2))[:B, :, :H]


# ----------------------------- pure-JAX reference ----------------------------
def seq2seq_reference(x, target_length, params):
    B, T, I = x.shape
    H = params["enc_whh"].shape[0]

    def lstm_step(h, c, x_t, wih, whh, b):
        gates = x_t @ wih + h @ whh + b
        i = jax.nn.sigmoid(gates[:, 0 * H:1 * H])
        f = jax.nn.sigmoid(gates[:, 1 * H:2 * H])
        g = jnp.tanh(gates[:, 2 * H:3 * H])
        o = jax.nn.sigmoid(gates[:, 3 * H:4 * H])
        c_new = f * c + i * g
        h_new = o * jnp.tanh(c_new)
        return h_new, c_new

    h = jnp.zeros((B, H), jnp.float32)
    c = jnp.zeros((B, H), jnp.float32)
    for t in range(T):
        h, c = lstm_step(h, c, x[:, t, :],
                         params["enc_wih"], params["enc_whh"], params["enc_b"])
    xi = jnp.zeros((B, H), jnp.float32)
    outs = []
    for _ in range(target_length):
        h, c = lstm_step(h, c, xi,
                         params["dec_wih"], params["dec_whh"], params["dec_b"])
        xi = h @ params["dec_wout"] + params["dec_bout"]
        outs.append(xi)
    return jnp.stack(outs, axis=1)


# ------------------------------------ main ------------------------------------
if __name__ == "__main__":
    B, T, I, H = 2, 8, 4, 32
    target_length = 5

    key = jax.random.PRNGKey(0)
    ks = jax.random.split(key, 8)
    init = lambda k, shape: (0.1 * jax.random.normal(k, shape)).astype(jnp.float32)

    params = {
        "enc_wih":  init(ks[0], (I, 4 * H)),
        "enc_whh":  init(ks[1], (H, 4 * H)),
        "enc_b":    init(ks[2], (1, 4 * H)),
        "dec_wih":  init(ks[3], (H, 4 * H)),
        "dec_whh":  init(ks[4], (H, 4 * H)),
        "dec_b":    init(ks[5], (1, 4 * H)),
        "dec_wout": init(ks[6], (H, H)),
        "dec_bout": init(ks[7], (1, H)),
    }
    x = init(jax.random.PRNGKey(42), (B, T, I))

    out = seq2seq_forward(x, target_length, params)
    out = jax.block_until_ready(out)

    ref = seq2seq_reference(x, target_length, params)
    assert out.shape == (B, target_length, H), out.shape
    assert jnp.allclose(out, ref, atol=1e-5, rtol=1e-5), "mismatch vs reference"

    print("KERNEL_OK")
</pallas_src>

<mosaic_0001>
module attributes {stable_mosaic.version = 11 : i64} {
  func.func @kernel(%arg0: memref<64x4xf32, #tpu.memory_space<vmem>>, %arg1: memref<4x512xf32, #tpu.memory_space<vmem>>, %arg2: memref<1x512xf32, #tpu.memory_space<vmem>>, %arg3: memref<128x512xf32, #tpu.memory_space<vmem>>, %arg4: memref<128x512xf32, #tpu.memory_space<vmem>>, %arg5: memref<1x512xf32, #tpu.memory_space<vmem>>, %arg6: memref<128x512xf32, #tpu.memory_space<vmem>>, %arg7: memref<1x512xf32, #tpu.memory_space<vmem>>, %arg8: memref<128x128xf32, #tpu.memory_space<vmem>>, %arg9: memref<1x128xf32, #tpu.memory_space<vmem>>, %arg10: memref<5x8x128xf32, #tpu.memory_space<vmem>>) attributes {dimension_semantics = [], scalar_prefetch = 0 : i64, scratch_operands = 0 : i64, tpu.core_type = #tpu.core_type<tc>} {
    %c0 = arith.constant 0 : index
    %c0_0 = arith.constant 0 : index
    %0 = vector.load %arg0[%c0, %c0_0] : memref<64x4xf32, #tpu.memory_space<vmem>>, vector<64x4xf32>
    %c0_1 = arith.constant 0 : index
    %c0_2 = arith.constant 0 : index
    %1 = vector.load %arg1[%c0_1, %c0_2] : memref<4x512xf32, #tpu.memory_space<vmem>>, vector<4x512xf32>
    %cst = arith.constant dense<0.000000e+00> : vector<64x512xf32>
    %2 = tpu.matmul %0, %1, %cst {dimension_numbers = #tpu.dot_dimension_numbers<[1], [0], [0], [1], [0, 0, 1, 1], [], []>} : vector<64x4xf32>, vector<4x512xf32>, vector<64x512xf32> -> vector<64x512xf32>
    %c0_3 = arith.constant 0 : index
    %c0_4 = arith.constant 0 : index
    %3 = vector.load %arg2[%c0_3, %c0_4] : memref<1x512xf32, #tpu.memory_space<vmem>>, vector<1x512xf32>
    %4 = vector.broadcast %3 : vector<1x512xf32> to vector<64x512xf32>
    %5 = arith.addf %2, %4 : vector<64x512xf32>
    %c0_5 = arith.constant 0 : index
    %c0_6 = arith.constant 0 : index
    %6 = vector.load %arg3[%c0_5, %c0_6] : memref<128x512xf32, #tpu.memory_space<vmem>>, vector<128x512xf32>
    %cst_7 = arith.constant 0.000000e+00 : f32
    %7 = vector.broadcast %cst_7 : f32 to vector<8x128xf32>
    %cst_8 = arith.constant 0.000000e+00 : f32
    %8 = vector.broadcast %cst_8 : f32 to vector<8x128xf32>
    %9 = vector.extract_strided_slice %5 {offsets = [0, 0], sizes = [8, 512], strides = [1, 1]} : vector<64x512xf32> to vector<8x512xf32>
    %cst_9 = arith.constant dense<0.000000e+00> : vector<8x512xf32>
    %10 = tpu.matmul %7, %6, %cst_9 {dimension_numbers = #tpu.dot_dimension_numbers<[1], [0], [0], [1], [0, 0, 1, 1], [], []>} : vector<8x128xf32>, vector<128x512xf32>, vector<8x512xf32> -> vector<8x512xf32>
    %11 = arith.addf %9, %10 : vector<8x512xf32>
    %12 = vector.extract_strided_slice %11 {offsets = [0, 0], sizes = [8, 128], strides = [1, 1]} : vector<8x512xf32> to vector<8x128xf32>
    %13 = arith.negf %12 : vector<8x128xf32>
    %14 = math.exp %13 : vector<8x128xf32>
    %cst_10 = arith.constant 1.000000e+00 : f32
    %15 = vector.broadcast %cst_10 : f32 to vector<8x128xf32>
    %16 = arith.addf %15, %14 : vector<8x128xf32>
    %17 = arith.divf %15, %16 : vector<8x128xf32>
    %18 = vector.extract_strided_slice %11 {offsets = [0, 128], sizes = [8, 128], strides = [1, 1]} : vector<8x512xf32> to vector<8x128xf32>
    %19 = arith.negf %18 : vector<8x128xf32>
    %20 = math.exp %19 : vector<8x128xf32>
    %cst_11 = arith.constant 1.000000e+00 : f32
    %21 = vector.broadcast %cst_11 : f32 to vector<8x128xf32>
    %22 = arith.addf %21, %20 : vector<8x128xf32>
    %23 = arith.divf %21, %22 : vector<8x128xf32>
    %24 = vector.extract_strided_slice %11 {offsets = [0, 256], sizes = [8, 128], strides = [1, 1]} : vector<8x512xf32> to vector<8x128xf32>
    %25 = math.tanh %24 : vector<8x128xf32>
    %26 = vector.extract_strided_slice %11 {offsets = [0, 384], sizes = [8, 128], strides = [1, 1]} : vector<8x512xf32> to vector<8x128xf32>
    %27 = arith.negf %26 : vector<8x128xf32>
    %28 = math.exp %27 : vector<8x128xf32>
    %cst_12 = arith.constant 1.000000e+00 : f32
    %29 = vector.broadcast %cst_12 : f32 to vector<8x128xf32>
    %30 = arith.addf %29, %28 : vector<8x128xf32>
    %31 = arith.divf %29, %30 : vector<8x128xf32>
    %32 = arith.mulf %23, %8 : vector<8x128xf32>
    %33 = arith.mulf %17, %25 : vector<8x128xf32>
    %34 = arith.addf %32, %33 : vector<8x128xf32>
    %35 = math.tanh %34 : vector<8x128xf32>
    %36 = arith.mulf %31, %35 : vector<8x128xf32>
    %37 = vector.extract_strided_slice %5 {offsets = [8, 0], sizes = [8, 512], strides = [1, 1]} : vector<64x512xf32> to vector<8x512xf32>
    %cst_13 = arith.constant dense<0.000000e+00> : vector<8x512xf32>
    %38 = tpu.matmul %36, %6, %cst_13 {dimension_numbers = #tpu.dot_dimension_numbers<[1], [0], [0], [1], [0, 0, 1, 1], [], []>} : vector<8x128xf32>, vector<128x512xf32>, vector<8x512xf32> -> vector<8x512xf32>
    %39 = arith.addf %37, %38 : vector<8x512xf32>
    %40 = vector.extract_strided_slice %39 {offsets = [0, 0], sizes = [8, 128], strides = [1, 1]} : vector<8x512xf32> to vector<8x128xf32>
    %41 = arith.negf %40 : vector<8x128xf32>
    %42 = math.exp %41 : vector<8x128xf32>
    %cst_14 = arith.constant 1.000000e+00 : f32
    %43 = vector.broadcast %cst_14 : f32 to vector<8x128xf32>
    %44 = arith.addf %43, %42 : vector<8x128xf32>
    %45 = arith.divf %43, %44 : vector<8x128xf32>
    %46 = vector.extract_strided_slice %39 {offsets = [0, 128], sizes = [8, 128], strides = [1, 1]} : vector<8x512xf32> to vector<8x128xf32>
    %47 = arith.negf %46 : vector<8x128xf32>
    %48 = math.exp %47 : vector<8x128xf32>
    %cst_15 = arith.constant 1.000000e+00 : f32
    %49 = vector.broadcast %cst_15 : f32 to vector<8x128xf32>
    %50 = arith.addf %49, %48 : vector<8x128xf32>
    %51 = arith.divf %49, %50 : vector<8x128xf32>
    %52 = vector.extract_strided_slice %39 {offsets = [0, 256], sizes = [8, 128], strides = [1, 1]} : vector<8x512xf32> to vector<8x128xf32>
    %53 = math.tanh %52 : vector<8x128xf32>
    %54 = vector.extract_strided_slice %39 {offsets = [0, 384], sizes = [8, 128], strides = [1, 1]} : vector<8x512xf32> to vector<8x128xf32>
    %55 = arith.negf %54 : vector<8x128xf32>
    %56 = math.exp %55 : vector<8x128xf32>
    %cst_16 = arith.constant 1.000000e+00 : f32
    %57 = vector.broadcast %cst_16 : f32 to vector<8x128xf32>
    %58 = arith.addf %57, %56 : vector<8x128xf32>
    %59 = arith.divf %57, %58 : vector<8x128xf32>
    %60 = arith.mulf %51, %34 : vector<8x128xf32>
    %61 = arith.mulf %45, %53 : vector<8x128xf32>
    %62 = arith.addf %60, %61 : vector<8x128xf32>
    %63 = math.tanh %62 : vector<8x128xf32>
    %64 = arith.mulf %59, %63 : vector<8x128xf32>
    %65 = vector.extract_strided_slice %5 {offsets = [16, 0], sizes = [8, 512], strides = [1, 1]} : vector<64x512xf32> to vector<8x512xf32>
    %cst_17 = arith.constant dense<0.000000e+00> : vector<8x512xf32>
    %66 = tpu.matmul %64, %6, %cst_17 {dimension_numbers = #tpu.dot_dimension_numbers<[1], [0], [0], [1], [0, 0, 1, 1], [], []>} : vector<8x128xf32>, vector<128x512xf32>, vector<8x512xf32> -> vector<8x512xf32>
    %67 = arith.addf %65, %66 : vector<8x512xf32>
    %68 = vector.extract_strided_slice %67 {offsets = [0, 0], sizes = [8, 128], strides = [1, 1]} : vector<8x512xf32> to vector<8x128xf32>
    %69 = arith.negf %68 : vector<8x128xf32>
    %70 = math.exp %69 : vector<8x128xf32>
    %cst_18 = arith.constant 1.000000e+00 : f32
    %71 = vector.broadcast %cst_18 : f32 to vector<8x128xf32>
    %72 = arith.addf %71, %70 : vector<8x128xf32>
    %73 = arith.divf %71, %72 : vector<8x128xf32>
    %74 = vector.extract_strided_slice %67 {offsets = [0, 128], sizes = [8, 128], strides = [1, 1]} : vector<8x512xf32> to vector<8x128xf32>
    %75 = arith.negf %74 : vector<8x128xf32>
    %76 = math.exp %75 : vector<8x128xf32>
    %cst_19 = arith.constant 1.000000e+00 : f32
    %77 = vector.broadcast %cst_19 : f32 to vector<8x128xf32>
    %78 = arith.addf %77, %76 : vector<8x128xf32>
    %79 = arith.divf %77, %78 : vector<8x128xf32>
    %80 = vector.extract_strided_slice %67 {offsets = [0, 256], sizes = [8, 128], strides = [1, 1]} : vector<8x512xf32> to vector<8x128xf32>
    %81 = math.tanh %80 : vector<8x128xf32>
    %82 = vector.extract_strided_slice %67 {offsets = [0, 384], sizes = [8, 128], strides = [1, 1]} : vector<8x512xf32> to vector<8x128xf32>
    %83 = arith.negf %82 : vector<8x128xf32>
    %84 = math.exp %83 : vector<8x128xf32>
    %cst_20 = arith.constant 1.000000e+00 : f32
    %85 = vector.broadcast %cst_20 : f32 to vector<8x128xf32>
    %86 = arith.addf %85, %84 : vector<8x128xf32>
    %87 = arith.divf %85, %86 : vector<8x128xf32>
    %88 = arith.mulf %79, %62 : vector<8x128xf32>
    %89 = arith.mulf %73, %81 : vector<8x128xf32>
    %90 = arith.addf %88, %89 : vector<8x128xf32>
    %91 = math.tanh %90 : vector<8x128xf32>
    %92 = arith.mulf %87, %91 : vector<8x128xf32>
    %93 = vector.extract_strided_slice %5 {offsets = [24, 0], sizes = [8, 512], strides = [1, 1]} : vector<64x512xf32> to vector<8x512xf32>
    %cst_21 = arith.constant dense<0.000000e+00> : vector<8x512xf32>
    %94 = tpu.matmul %92, %6, %cst_21 {dimension_numbers = #tpu.dot_dimension_numbers<[1], [0], [0], [1], [0, 0, 1, 1], [], []>} : vector<8x128xf32>, vector<128x512xf32>, vector<8x512xf32> -> vector<8x512xf32>
    %95 = arith.addf %93, %94 : vector<8x512xf32>
    %96 = vector.extract_strided_slice %95 {offsets = [0, 0], sizes = [8, 128], strides = [1, 1]} : vector<8x512xf32> to vector<8x128xf32>
    %97 = arith.negf %96 : vector<8x128xf32>
    %98 = math.exp %97 : vector<8x128xf32>
    %cst_22 = arith.constant 1.000000e+00 : f32
    %99 = vector.broadcast %cst_22 : f32 to vector<8x128xf32>
    %100 = arith.addf %99, %98 : vector<8x128xf32>
    %101 = arith.divf %99, %100 : vector<8x128xf32>
    %102 = vector.extract_strided_slice %95 {offsets = [0, 128], sizes = [8, 128], strides = [1, 1]} : vector<8x512xf32> to vector<8x128xf32>
    %103 = arith.negf %102 : vector<8x128xf32>
    %104 = math.exp %103 : vector<8x128xf32>
    %cst_23 = arith.constant 1.000000e+00 : f32
    %105 = vector.broadcast %cst_23 : f32 to vector<8x128xf32>
    %106 = arith.addf %105, %104 : vector<8x128xf32>
    %107 = arith.divf %105, %106 : vector<8x128xf32>
    %108 = vector.extract_strided_slice %95 {offsets = [0, 256], sizes = [8, 128], strides = [1, 1]} : vector<8x512xf32> to vector<8x128xf32>
    %109 = math.tanh %108 : vector<8x128xf32>
    %110 = vector.extract_strided_slice %95 {offsets = [0, 384], sizes = [8, 128], strides = [1, 1]} : vector<8x512xf32> to vector<8x128xf32>
    %111 = arith.negf %110 : vector<8x128xf32>
    %112 = math.exp %111 : vector<8x128xf32>
    %cst_24 = arith.constant 1.000000e+00 : f32
    %113 = vector.broadcast %cst_24 : f32 to vector<8x128xf32>
    %114 = arith.addf %113, %112 : vector<8x128xf32>
    %115 = arith.divf %113, %114 : vector<8x128xf32>
    %116 = arith.mulf %107, %90 : vector<8x128xf32>
    %117 = arith.mulf %101, %109 : vector<8x128xf32>
    %118 = arith.addf %116, %117 : vector<8x128xf32>
    %119 = math.tanh %118 : vector<8x128xf32>
    %120 = arith.mulf %115, %119 : vector<8x128xf32>
    %121 = vector.extract_strided_slice %5 {offsets = [32, 0], sizes = [8, 512], strides = [1, 1]} : vector<64x512xf32> to vector<8x512xf32>
    %cst_25 = arith.constant dense<0.000000e+00> : vector<8x512xf32>
    %122 = tpu.matmul %120, %6, %cst_25 {dimension_numbers = #tpu.dot_dimension_numbers<[1], [0], [0], [1], [0, 0, 1, 1], [], []>} : vector<8x128xf32>, vector<128x512xf32>, vector<8x512xf32> -> vector<8x512xf32>
    %123 = arith.addf %121, %122 : vector<8x512xf32>
    %124 = vector.extract_strided_slice %123 {offsets = [0, 0], sizes = [8, 128], strides = [1, 1]} : vector<8x512xf32> to vector<8x128xf32>
    %125 = arith.negf %124 : vector<8x128xf32>
    %126 = math.exp %125 : vector<8x128xf32>
    %cst_26 = arith.constant 1.000000e+00 : f32
    %127 = vector.broadcast %cst_26 : f32 to vector<8x128xf32>
    %128 = arith.addf %127, %126 : vector<8x128xf32>
    %129 = arith.divf %127, %128 : vector<8x128xf32>
    %130 = vector.extract_strided_slice %123 {offsets = [0, 128], sizes = [8, 128], strides = [1, 1]} : vector<8x512xf32> to vector<8x128xf32>
    %131 = arith.negf %130 : vector<8x128xf32>
    %132 = math.exp %131 : vector<8x128xf32>
    %cst_27 = arith.constant 1.000000e+00 : f32
    %133 = vector.broadcast %cst_27 : f32 to vector<8x128xf32>
    %134 = arith.addf %133, %132 : vector<8x128xf32>
    %135 = arith.divf %133, %134 : vector<8x128xf32>
    %136 = vector.extract_strided_slice %123 {offsets = [0, 256], sizes = [8, 128], strides = [1, 1]} : vector<8x512xf32> to vector<8x128xf32>
    %137 = math.tanh %136 : vector<8x128xf32>
    %138 = vector.extract_strided_slice %123 {offsets = [0, 384], sizes = [8, 128], strides = [1, 1]} : vector<8x512xf32> to vector<8x128xf32>
    %139 = arith.negf %138 : vector<8x128xf32>
    %140 = math.exp %139 : vector<8x128xf32>
    %cst_28 = arith.constant 1.000000e+00 : f32
    %141 = vector.broadcast %cst_28 : f32 to vector<8x128xf32>
    %142 = arith.addf %141, %140 : vector<8x128xf32>
    %143 = arith.divf %141, %142 : vector<8x128xf32>
    %144 = arith.mulf %135, %118 : vector<8x128xf32>
    %145 = arith.mulf %129, %137 : vector<8x128xf32>
    %146 = arith.addf %144, %145 : vector<8x128xf32>
    %147 = math.tanh %146 : vector<8x128xf32>
    %148 = arith.mulf %143, %147 : vector<8x128xf32>
    %149 = vector.extract_strided_slice %5 {offsets = [40, 0], sizes = [8, 512], strides = [1, 1]} : vector<64x512xf32> to vector<8x512xf32>
    %cst_29 = arith.constant dense<0.000000e+00> : vector<8x512xf32>
    %150 = tpu.matmul %148, %6, %cst_29 {dimension_numbers = #tpu.dot_dimension_numbers<[1], [0], [0], [1], [0, 0, 1, 1], [], []>} : vector<8x128xf32>, vector<128x512xf32>, vector<8x512xf32> -> vector<8x512xf32>
    %151 = arith.addf %149, %150 : vector<8x512xf32>
    %152 = vector.extract_strided_slice %151 {offsets = [0, 0], sizes = [8, 128], strides = [1, 1]} : vector<8x512xf32> to vector<8x128xf32>
    %153 = arith.negf %152 : vector<8x128xf32>
    %154 = math.exp %153 : vector<8x128xf32>
    %cst_30 = arith.constant 1.000000e+00 : f32
    %155 = vector.broadcast %cst_30 : f32 to vector<8x128xf32>
    %156 = arith.addf %155, %154 : vector<8x128xf32>
    %157 = arith.divf %155, %156 : vector<8x128xf32>
    %158 = vector.extract_strided_slice %151 {offsets = [0, 128], sizes = [8, 128], strides = [1, 1]} : vector<8x512xf32> to vector<8x128xf32>
    %159 = arith.negf %158 : vector<8x128xf32>
    %160 = math.exp %159 : vector<8x128xf32>
    %cst_31 = arith.constant 1.000000e+00 : f32
    %161 = vector.broadcast %cst_31 : f32 to vector<8x128xf32>
    %162 = arith.addf %161, %160 : vector<8x128xf32>
    %163 = arith.divf %161, %162 : vector<8x128xf32>
    %164 = vector.extract_strided_slice %151 {offsets = [0, 256], sizes = [8, 128], strides = [1, 1]} : vector<8x512xf32> to vector<8x128xf32>
    %165 = math.tanh %164 : vector<8x128xf32>
    %166 = vector.extract_strided_slice %151 {offsets = [0, 384], sizes = [8, 128], strides = [1, 1]} : vector<8x512xf32> to vector<8x128xf32>
    %167 = arith.negf %166 : vector<8x128xf32>
    %168 = math.exp %167 : vector<8x128xf32>
    %cst_32 = arith.constant 1.000000e+00 : f32
    %169 = vector.broadcast %cst_32 : f32 to vector<8x128xf32>
    %170 = arith.addf %169, %168 : vector<8x128xf32>
    %171 = arith.divf %169, %170 : vector<8x128xf32>
    %172 = arith.mulf %163, %146 : vector<8x128xf32>
    %173 = arith.mulf %157, %165 : vector<8x128xf32>
    %174 = arith.addf %172, %173 : vector<8x128xf32>
    %175 = math.tanh %174 : vector<8x128xf32>
    %176 = arith.mulf %171, %175 : vector<8x128xf32>
    %177 = vector.extract_strided_slice %5 {offsets = [48, 0], sizes = [8, 512], strides = [1, 1]} : vector<64x512xf32> to vector<8x512xf32>
    %cst_33 = arith.constant dense<0.000000e+00> : vector<8x512xf32>
    %178 = tpu.matmul %176, %6, %cst_33 {dimension_numbers = #tpu.dot_dimension_numbers<[1], [0], [0], [1], [0, 0, 1, 1], [], []>} : vector<8x128xf32>, vector<128x512xf32>, vector<8x512xf32> -> vector<8x512xf32>
    %179 = arith.addf %177, %178 : vector<8x512xf32>
    %180 = vector.extract_strided_slice %179 {offsets = [0, 0], sizes = [8, 128], strides = [1, 1]} : vector<8x512xf32> to vector<8x128xf32>
    %181 = arith.negf %180 : vector<8x128xf32>
    %182 = math.exp %181 : vector<8x128xf32>
    %cst_34 = arith.constant 1.000000e+00 : f32
    %183 = vector.broadcast %cst_34 : f32 to vector<8x128xf32>
    %184 = arith.addf %183, %182 : vector<8x128xf32>
    %185 = arith.divf %183, %184 : vector<8x128xf32>
    %186 = vector.extract_strided_slice %179 {offsets = [0, 128], sizes = [8, 128], strides = [1, 1]} : vector<8x512xf32> to vector<8x128xf32>
    %187 = arith.negf %186 : vector<8x128xf32>
    %188 = math.exp %187 : vector<8x128xf32>
    %cst_35 = arith.constant 1.000000e+00 : f32
    %189 = vector.broadcast %cst_35 : f32 to vector<8x128xf32>
    %190 = arith.addf %189, %188 : vector<8x128xf32>
    %191 = arith.divf %189, %190 : vector<8x128xf32>
    %192 = vector.extract_strided_slice %179 {offsets = [0, 256], sizes = [8, 128], strides = [1, 1]} : vector<8x512xf32> to vector<8x128xf32>
    %193 = math.tanh %192 : vector<8x128xf32>
    %194 = vector.extract_strided_slice %179 {offsets = [0, 384], sizes = [8, 128], strides = [1, 1]} : vector<8x512xf32> to vector<8x128xf32>
    %195 = arith.negf %194 : vector<8x128xf32>
    %196 = math.exp %195 : vector<8x128xf32>
    %cst_36 = arith.constant 1.000000e+00 : f32
    %197 = vector.broadcast %cst_36 : f32 to vector<8x128xf32>
    %198 = arith.addf %197, %196 : vector<8x128xf32>
    %199 = arith.divf %197, %198 : vector<8x128xf32>
    %200 = arith.mulf %191, %174 : vector<8x128xf32>
    %201 = arith.mulf %185, %193 : vector<8x128xf32>
    %202 = arith.addf %200, %201 : vector<8x128xf32>
    %203 = math.tanh %202 : vector<8x128xf32>
    %204 = arith.mulf %199, %203 : vector<8x128xf32>
    %205 = vector.extract_strided_slice %5 {offsets = [56, 0], sizes = [8, 512], strides = [1, 1]} : vector<64x512xf32> to vector<8x512xf32>
    %cst_37 = arith.constant dense<0.000000e+00> : vector<8x512xf32>
    %206 = tpu.matmul %204, %6, %cst_37 {dimension_numbers = #tpu.dot_dimension_numbers<[1], [0], [0], [1], [0, 0, 1, 1], [], []>} : vector<8x128xf32>, vector<128x512xf32>, vector<8x512xf32> -> vector<8x512xf32>
    %207 = arith.addf %205, %206 : vector<8x512xf32>
    %208 = vector.extract_strided_slice %207 {offsets = [0, 0], sizes = [8, 128], strides = [1, 1]} : vector<8x512xf32> to vector<8x128xf32>
    %209 = arith.negf %208 : vector<8x128xf32>
    %210 = math.exp %209 : vector<8x128xf32>
    %cst_38 = arith.constant 1.000000e+00 : f32
    %211 = vector.broadcast %cst_38 : f32 to vector<8x128xf32>
    %212 = arith.addf %211, %210 : vector<8x128xf32>
    %213 = arith.divf %211, %212 : vector<8x128xf32>
    %214 = vector.extract_strided_slice %207 {offsets = [0, 128], sizes = [8, 128], strides = [1, 1]} : vector<8x512xf32> to vector<8x128xf32>
    %215 = arith.negf %214 : vector<8x128xf32>
    %216 = math.exp %215 : vector<8x128xf32>
    %cst_39 = arith.constant 1.000000e+00 : f32
    %217 = vector.broadcast %cst_39 : f32 to vector<8x128xf32>
    %218 = arith.addf %217, %216 : vector<8x128xf32>
    %219 = arith.divf %217, %218 : vector<8x128xf32>
    %220 = vector.extract_strided_slice %207 {offsets = [0, 256], sizes = [8, 128], strides = [1, 1]} : vector<8x512xf32> to vector<8x128xf32>
    %221 = math.tanh %220 : vector<8x128xf32>
    %222 = vector.extract_strided_slice %207 {offsets = [0, 384], sizes = [8, 128], strides = [1, 1]} : vector<8x512xf32> to vector<8x128xf32>
    %223 = arith.negf %222 : vector<8x128xf32>
    %224 = math.exp %223 : vector<8x128xf32>
    %cst_40 = arith.constant 1.000000e+00 : f32
    %225 = vector.broadcast %cst_40 : f32 to vector<8x128xf32>
    %226 = arith.addf %225, %224 : vector<8x128xf32>
    %227 = arith.divf %225, %226 : vector<8x128xf32>
    %228 = arith.mulf %219, %202 : vector<8x128xf32>
    %229 = arith.mulf %213, %221 : vector<8x128xf32>
    %230 = arith.addf %228, %229 : vector<8x128xf32>
    %231 = math.tanh %230 : vector<8x128xf32>
    %232 = arith.mulf %227, %231 : vector<8x128xf32>
    %c0_41 = arith.constant 0 : index
    %c0_42 = arith.constant 0 : index
    %233 = vector.load %arg4[%c0_41, %c0_42] : memref<128x512xf32, #tpu.memory_space<vmem>>, vector<128x512xf32>
    %c0_43 = arith.constant 0 : index
    %c0_44 = arith.constant 0 : index
    %234 = vector.load %arg5[%c0_43, %c0_44] : memref<1x512xf32, #tpu.memory_space<vmem>>, vector<1x512xf32>
    %c0_45 = arith.constant 0 : index
    %c0_46 = arith.constant 0 : index
    %235 = vector.load %arg6[%c0_45, %c0_46] : memref<128x512xf32, #tpu.memory_space<vmem>>, vector<128x512xf32>
    %c0_47 = arith.constant 0 : index
    %c0_48 = arith.constant 0 : index
    %236 = vector.load %arg7[%c0_47, %c0_48] : memref<1x512xf32, #tpu.memory_space<vmem>>, vector<1x512xf32>
    %c0_49 = arith.constant 0 : index
    %c0_50 = arith.constant 0 : index
    %237 = vector.load %arg8[%c0_49, %c0_50] : memref<128x128xf32, #tpu.memory_space<vmem>>, vector<128x128xf32>
    %c0_51 = arith.constant 0 : index
    %c0_52 = arith.constant 0 : index
    %238 = vector.load %arg9[%c0_51, %c0_52] : memref<1x128xf32, #tpu.memory_space<vmem>>, vector<1x128xf32>
    %cst_53 = arith.constant dense<0.000000e+00> : vector<8x512xf32>
    %239 = tpu.matmul %232, %233, %cst_53 {dimension_numbers = #tpu.dot_dimension_numbers<[1], [0], [0], [1], [0, 0, 1, 1], [], []>} : vector<8x128xf32>, vector<128x512xf32>, vector<8x512xf32> -> vector<8x512xf32>
    %240 = vector.broadcast %234 : vector<1x512xf32> to vector<8x512xf32>
    %241 = arith.addf %239, %240 : vector<8x512xf32>
    %242 = vector.extract_strided_slice %241 {offsets = [0, 0], sizes = [8, 128], strides = [1, 1]} : vector<8x512xf32> to vector<8x128xf32>
    %243 = arith.negf %242 : vector<8x128xf32>
    %244 = math.exp %243 : vector<8x128xf32>
    %cst_54 = arith.constant 1.000000e+00 : f32
    %245 = vector.broadcast %cst_54 : f32 to vector<8x128xf32>
    %246 = arith.addf %245, %244 : vector<8x128xf32>
    %247 = arith.divf %245, %246 : vector<8x128xf32>
    %248 = vector.extract_strided_slice %241 {offsets = [0, 128], sizes = [8, 128], strides = [1, 1]} : vector<8x512xf32> to vector<8x128xf32>
    %249 = arith.negf %248 : vector<8x128xf32>
    %250 = math.exp %249 : vector<8x128xf32>
    %cst_55 = arith.constant 1.000000e+00 : f32
    %251 = vector.broadcast %cst_55 : f32 to vector<8x128xf32>
    %252 = arith.addf %251, %250 : vector<8x128xf32>
    %253 = arith.divf %251, %252 : vector<8x128xf32>
    %254 = vector.extract_strided_slice %241 {offsets = [0, 256], sizes = [8, 128], strides = [1, 1]} : vector<8x512xf32> to vector<8x128xf32>
    %255 = math.tanh %254 : vector<8x128xf32>
    %256 = vector.extract_strided_slice %241 {offsets = [0, 384], sizes = [8, 128], strides = [1, 1]} : vector<8x512xf32> to vector<8x128xf32>
    %257 = arith.negf %256 : vector<8x128xf32>
    %258 = math.exp %257 : vector<8x128xf32>
    %cst_56 = arith.constant 1.000000e+00 : f32
    %259 = vector.broadcast %cst_56 : f32 to vector<8x128xf32>
    %260 = arith.addf %259, %258 : vector<8x128xf32>
    %261 = arith.divf %259, %260 : vector<8x128xf32>
    %262 = arith.mulf %253, %230 : vector<8x128xf32>
    %263 = arith.mulf %247, %255 : vector<8x128xf32>
    %264 = arith.addf %262, %263 : vector<8x128xf32>
    %265 = math.tanh %264 : vector<8x128xf32>
    %266 = arith.mulf %261, %265 : vector<8x128xf32>
    %cst_57 = arith.constant dense<0.000000e+00> : vector<8x128xf32>
    %267 = tpu.matmul %266, %237, %cst_57 {dimension_numbers = #tpu.dot_dimension_numbers<[1], [0], [0], [1], [0, 0, 1, 1], [], []>} : vector<8x128xf32>, vector<128x128xf32>, vector<8x128xf32> -> vector<8x128xf32>
    %268 = vector.broadcast %238 : vector<1x128xf32> to vector<8x128xf32>
    %269 = arith.addf %267, %268 : vector<8x128xf32>
    %c0_58 = arith.constant 0 : index
    %c0_59 = arith.constant 0 : index
    %c0_60 = arith.constant 0 : index
    %270 = vector.load %arg10[%c0_58, %c0_59, %c0_60] : memref<5x8x128xf32, #tpu.memory_space<vmem>>, vector<1x8x128xf32>
    %271 = vector.shape_cast %270 : vector<1x8x128xf32> to vector<8x128xf32>
    %272 = vector.shape_cast %269 : vector<8x128xf32> to vector<1x8x128xf32>
    tpu.vector_store %arg10[%c0_58, %c0_59, %c0_60], %272 {strides = array<i32>} : memref<5x8x128xf32, #tpu.memory_space<vmem>>, vector<1x8x128xf32>,
    %cst_61 = arith.constant dense<0.000000e+00> : vector<8x512xf32>
    %273 = tpu.matmul %266, %235, %cst_61 {dimension_numbers = #tpu.dot_dimension_numbers<[1], [0], [0], [1], [0, 0, 1, 1], [], []>} : vector<8x128xf32>, vector<128x512xf32>, vector<8x512xf32> -> vector<8x512xf32>
    %274 = vector.broadcast %236 : vector<1x512xf32> to vector<8x512xf32>
    %275 = arith.addf %273, %274 : vector<8x512xf32>
    %276 = vector.extract_strided_slice %275 {offsets = [0, 0], sizes = [8, 128], strides = [1, 1]} : vector<8x512xf32> to vector<8x128xf32>
    %277 = arith.negf %276 : vector<8x128xf32>
    %278 = math.exp %277 : vector<8x128xf32>
    %cst_62 = arith.constant 1.000000e+00 : f32
    %279 = vector.broadcast %cst_62 : f32 to vector<8x128xf32>
    %280 = arith.addf %279, %278 : vector<8x128xf32>
    %281 = arith.divf %279, %280 : vector<8x128xf32>
    %282 = vector.extract_strided_slice %275 {offsets = [0, 128], sizes = [8, 128], strides = [1, 1]} : vector<8x512xf32> to vector<8x128xf32>
    %283 = arith.negf %282 : vector<8x128xf32>
    %284 = math.exp %283 : vector<8x128xf32>
    %cst_63 = arith.constant 1.000000e+00 : f32
    %285 = vector.broadcast %cst_63 : f32 to vector<8x128xf32>
    %286 = arith.addf %285, %284 : vector<8x128xf32>
    %287 = arith.divf %285, %286 : vector<8x128xf32>
    %288 = vector.extract_strided_slice %275 {offsets = [0, 256], sizes = [8, 128], strides = [1, 1]} : vector<8x512xf32> to vector<8x128xf32>
    %289 = math.tanh %288 : vector<8x128xf32>
    %290 = vector.extract_strided_slice %275 {offsets = [0, 384], sizes = [8, 128], strides = [1, 1]} : vector<8x512xf32> to vector<8x128xf32>
    %291 = arith.negf %290 : vector<8x128xf32>
    %292 = math.exp %291 : vector<8x128xf32>
    %cst_64 = arith.constant 1.000000e+00 : f32
    %293 = vector.broadcast %cst_64 : f32 to vector<8x128xf32>
    %294 = arith.addf %293, %292 : vector<8x128xf32>
    %295 = arith.divf %293, %294 : vector<8x128xf32>
    %296 = arith.mulf %287, %264 : vector<8x128xf32>
    %297 = arith.mulf %281, %289 : vector<8x128xf32>
    %298 = arith.addf %296, %297 : vector<8x128xf32>
    %299 = math.tanh %298 : vector<8x128xf32>
    %300 = arith.mulf %295, %299 : vector<8x128xf32>
    %cst_65 = arith.constant dense<0.000000e+00> : vector<8x128xf32>
    %301 = tpu.matmul %300, %237, %cst_65 {dimension_numbers = #tpu.dot_dimension_numbers<[1], [0], [0], [1], [0, 0, 1, 1], [], []>} : vector<8x128xf32>, vector<128x128xf32>, vector<8x128xf32> -> vector<8x128xf32>
    %302 = vector.broadcast %238 : vector<1x128xf32> to vector<8x128xf32>
    %303 = arith.addf %301, %302 : vector<8x128xf32>
    %c1 = arith.constant 1 : index
    %c0_66 = arith.constant 0 : index
    %c0_67 = arith.constant 0 : index
    %304 = vector.load %arg10[%c1, %c0_66, %c0_67] : memref<5x8x128xf32, #tpu.memory_space<vmem>>, vector<1x8x128xf32>
    %305 = vector.shape_cast %304 : vector<1x8x128xf32> to vector<8x128xf32>
    %306 = vector.shape_cast %303 : vector<8x128xf32> to vector<1x8x128xf32>
    tpu.vector_store %arg10[%c1, %c0_66, %c0_67], %306 {strides = array<i32>} : memref<5x8x128xf32, #tpu.memory_space<vmem>>, vector<1x8x128xf32>,
    %cst_68 = arith.constant dense<0.000000e+00> : vector<8x512xf32>
    %307 = tpu.matmul %300, %235, %cst_68 {dimension_numbers = #tpu.dot_dimension_numbers<[1], [0], [0], [1], [0, 0, 1, 1], [], []>} : vector<8x128xf32>, vector<128x512xf32>, vector<8x512xf32> -> vector<8x512xf32>
    %308 = vector.broadcast %236 : vector<1x512xf32> to vector<8x512xf32>
    %309 = arith.addf %307, %308 : vector<8x512xf32>
    %310 = vector.extract_strided_slice %309 {offsets = [0, 0], sizes = [8, 128], strides = [1, 1]} : vector<8x512xf32> to vector<8x128xf32>
    %311 = arith.negf %310 : vector<8x128xf32>
    %312 = math.exp %311 : vector<8x128xf32>
    %cst_69 = arith.constant 1.000000e+00 : f32
    %313 = vector.broadcast %cst_69 : f32 to vector<8x128xf32>
    %314 = arith.addf %313, %312 : vector<8x128xf32>
    %315 = arith.divf %313, %314 : vector<8x128xf32>
    %316 = vector.extract_strided_slice %309 {offsets = [0, 128], sizes = [8, 128], strides = [1, 1]} : vector<8x512xf32> to vector<8x128xf32>
    %317 = arith.negf %316 : vector<8x128xf32>
    %318 = math.exp %317 : vector<8x128xf32>
    %cst_70 = arith.constant 1.000000e+00 : f32
    %319 = vector.broadcast %cst_70 : f32 to vector<8x128xf32>
    %320 = arith.addf %319, %318 : vector<8x128xf32>
    %321 = arith.divf %319, %320 : vector<8x128xf32>
    %322 = vector.extract_strided_slice %309 {offsets = [0, 256], sizes = [8, 128], strides = [1, 1]} : vector<8x512xf32> to vector<8x128xf32>
    %323 = math.tanh %322 : vector<8x128xf32>
    %324 = vector.extract_strided_slice %309 {offsets = [0, 384], sizes = [8, 128], strides = [1, 1]} : vector<8x512xf32> to vector<8x128xf32>
    %325 = arith.negf %324 : vector<8x128xf32>
    %326 = math.exp %325 : vector<8x128xf32>
    %cst_71 = arith.constant 1.000000e+00 : f32
    %327 = vector.broadcast %cst_71 : f32 to vector<8x128xf32>
    %328 = arith.addf %327, %326 : vector<8x128xf32>
    %329 = arith.divf %327, %328 : vector<8x128xf32>
    %330 = arith.mulf %321, %298 : vector<8x128xf32>
    %331 = arith.mulf %315, %323 : vector<8x128xf32>
    %332 = arith.addf %330, %331 : vector<8x128xf32>
    %333 = math.tanh %332 : vector<8x128xf32>
    %334 = arith.mulf %329, %333 : vector<8x128xf32>
    %cst_72 = arith.constant dense<0.000000e+00> : vector<8x128xf32>
    %335 = tpu.matmul %334, %237, %cst_72 {dimension_numbers = #tpu.dot_dimension_numbers<[1], [0], [0], [1], [0, 0, 1, 1], [], []>} : vector<8x128xf32>, vector<128x128xf32>, vector<8x128xf32> -> vector<8x128xf32>
    %336 = vector.broadcast %238 : vector<1x128xf32> to vector<8x128xf32>
    %337 = arith.addf %335, %336 : vector<8x128xf32>
    %c2 = arith.constant 2 : index
    %c0_73 = arith.constant 0 : index
    %c0_74 = arith.constant 0 : index
    %338 = vector.load %arg10[%c2, %c0_73, %c0_74] : memref<5x8x128xf32, #tpu.memory_space<vmem>>, vector<1x8x128xf32>
    %339 = vector.shape_cast %338 : vector<1x8x128xf32> to vector<8x128xf32>
    %340 = vector.shape_cast %337 : vector<8x128xf32> to vector<1x8x128xf32>
    tpu.vector_store %arg10[%c2, %c0_73, %c0_74], %340 {strides = array<i32>} : memref<5x8x128xf32, #tpu.memory_space<vmem>>, vector<1x8x128xf32>,
    %cst_75 = arith.constant dense<0.000000e+00> : vector<8x512xf32>
    %341 = tpu.matmul %334, %235, %cst_75 {dimension_numbers = #tpu.dot_dimension_numbers<[1], [0], [0], [1], [0, 0, 1, 1], [], []>} : vector<8x128xf32>, vector<128x512xf32>, vector<8x512xf32> -> vector<8x512xf32>
    %342 = vector.broadcast %236 : vector<1x512xf32> to vector<8x512xf32>
    %343 = arith.addf %341, %342 : vector<8x512xf32>
    %344 = vector.extract_strided_slice %343 {offsets = [0, 0], sizes = [8, 128], strides = [1, 1]} : vector<8x512xf32> to vector<8x128xf32>
    %345 = arith.negf %344 : vector<8x128xf32>
    %346 = math.exp %345 : vector<8x128xf32>
    %cst_76 = arith.constant 1.000000e+00 : f32
    %347 = vector.broadcast %cst_76 : f32 to vector<8x128xf32>
    %348 = arith.addf %347, %346 : vector<8x128xf32>
    %349 = arith.divf %347, %348 : vector<8x128xf32>
    %350 = vector.extract_strided_slice %343 {offsets = [0, 128], sizes = [8, 128], strides = [1, 1]} : vector<8x512xf32> to vector<8x128xf32>
    %351 = arith.negf %350 : vector<8x128xf32>
    %352 = math.exp %351 : vector<8x128xf32>
    %cst_77 = arith.constant 1.000000e+00 : f32
    %353 = vector.broadcast %cst_77 : f32 to vector<8x128xf32>
    %354 = arith.addf %353, %352 : vector<8x128xf32>
    %355 = arith.divf %353, %354 : vector<8x128xf32>
    %356 = vector.extract_strided_slice %343 {offsets = [0, 256], sizes = [8, 128], strides = [1, 1]} : vector<8x512xf32> to vector<8x128xf32>
    %357 = math.tanh %356 : vector<8x128xf32>
    %358 = vector.extract_strided_slice %343 {offsets = [0, 384], sizes = [8, 128], strides = [1, 1]} : vector<8x512xf32> to vector<8x128xf32>
    %359 = arith.negf %358 : vector<8x128xf32>
    %360 = math.exp %359 : vector<8x128xf32>
    %cst_78 = arith.constant 1.000000e+00 : f32
    %361 = vector.broadcast %cst_78 : f32 to vector<8x128xf32>
    %362 = arith.addf %361, %360 : vector<8x128xf32>
    %363 = arith.divf %361, %362 : vector<8x128xf32>
    %364 = arith.mulf %355, %332 : vector<8x128xf32>
    %365 = arith.mulf %349, %357 : vector<8x128xf32>
    %366 = arith.addf %364, %365 : vector<8x128xf32>
    %367 = math.tanh %366 : vector<8x128xf32>
    %368 = arith.mulf %363, %367 : vector<8x128xf32>
    %cst_79 = arith.constant dense<0.000000e+00> : vector<8x128xf32>
    %369 = tpu.matmul %368, %237, %cst_79 {dimension_numbers = #tpu.dot_dimension_numbers<[1], [0], [0], [1], [0, 0, 1, 1], [], []>} : vector<8x128xf32>, vector<128x128xf32>, vector<8x128xf32> -> vector<8x128xf32>
    %370 = vector.broadcast %238 : vector<1x128xf32> to vector<8x128xf32>
    %371 = arith.addf %369, %370 : vector<8x128xf32>
    %c3 = arith.constant 3 : index
    %c0_80 = arith.constant 0 : index
    %c0_81 = arith.constant 0 : index
    %372 = vector.load %arg10[%c3, %c0_80, %c0_81] : memref<5x8x128xf32, #tpu.memory_space<vmem>>, vector<1x8x128xf32>
    %373 = vector.shape_cast %372 : vector<1x8x128xf32> to vector<8x128xf32>
    %374 = vector.shape_cast %371 : vector<8x128xf32> to vector<1x8x128xf32>
    tpu.vector_store %arg10[%c3, %c0_80, %c0_81], %374 {strides = array<i32>} : memref<5x8x128xf32, #tpu.memory_space<vmem>>, vector<1x8x128xf32>,
    %cst_82 = arith.constant dense<0.000000e+00> : vector<8x512xf32>
    %375 = tpu.matmul %368, %235, %cst_82 {dimension_numbers = #tpu.dot_dimension_numbers<[1], [0], [0], [1], [0, 0, 1, 1], [], []>} : vector<8x128xf32>, vector<128x512xf32>, vector<8x512xf32> -> vector<8x512xf32>
    %376 = vector.broadcast %236 : vector<1x512xf32> to vector<8x512xf32>
    %377 = arith.addf %375, %376 : vector<8x512xf32>
    %378 = vector.extract_strided_slice %377 {offsets = [0, 0], sizes = [8, 128], strides = [1, 1]} : vector<8x512xf32> to vector<8x128xf32>
    %379 = arith.negf %378 : vector<8x128xf32>
    %380 = math.exp %379 : vector<8x128xf32>
    %cst_83 = arith.constant 1.000000e+00 : f32
    %381 = vector.broadcast %cst_83 : f32 to vector<8x128xf32>
    %382 = arith.addf %381, %380 : vector<8x128xf32>
    %383 = arith.divf %381, %382 : vector<8x128xf32>
    %384 = vector.extract_strided_slice %377 {offsets = [0, 128], sizes = [8, 128], strides = [1, 1]} : vector<8x512xf32> to vector<8x128xf32>
    %385 = arith.negf %384 : vector<8x128xf32>
    %386 = math.exp %385 : vector<8x128xf32>
    %cst_84 = arith.constant 1.000000e+00 : f32
    %387 = vector.broadcast %cst_84 : f32 to vector<8x128xf32>
    %388 = arith.addf %387, %386 : vector<8x128xf32>
    %389 = arith.divf %387, %388 : vector<8x128xf32>
    %390 = vector.extract_strided_slice %377 {offsets = [0, 256], sizes = [8, 128], strides = [1, 1]} : vector<8x512xf32> to vector<8x128xf32>
    %391 = math.tanh %390 : vector<8x128xf32>
    %392 = vector.extract_strided_slice %377 {offsets = [0, 384], sizes = [8, 128], strides = [1, 1]} : vector<8x512xf32> to vector<8x128xf32>
    %393 = arith.negf %392 : vector<8x128xf32>
    %394 = math.exp %393 : vector<8x128xf32>
    %cst_85 = arith.constant 1.000000e+00 : f32
    %395 = vector.broadcast %cst_85 : f32 to vector<8x128xf32>
    %396 = arith.addf %395, %394 : vector<8x128xf32>
    %397 = arith.divf %395, %396 : vector<8x128xf32>
    %398 = arith.mulf %389, %366 : vector<8x128xf32>
    %399 = arith.mulf %383, %391 : vector<8x128xf32>
    %400 = arith.addf %398, %399 : vector<8x128xf32>
    %401 = math.tanh %400 : vector<8x128xf32>
    %402 = arith.mulf %397, %401 : vector<8x128xf32>
    %cst_86 = arith.constant dense<0.000000e+00> : vector<8x128xf32>
    %403 = tpu.matmul %402, %237, %cst_86 {dimension_numbers = #tpu.dot_dimension_numbers<[1], [0], [0], [1], [0, 0, 1, 1], [], []>} : vector<8x128xf32>, vector<128x128xf32>, vector<8x128xf32> -> vector<8x128xf32>
    %404 = vector.broadcast %238 : vector<1x128xf32> to vector<8x128xf32>
    %405 = arith.addf %403, %404 : vector<8x128xf32>
    %c4 = arith.constant 4 : index
    %c0_87 = arith.constant 0 : index
    %c0_88 = arith.constant 0 : index
    %406 = vector.load %arg10[%c4, %c0_87, %c0_88] : memref<5x8x128xf32, #tpu.memory_space<vmem>>, vector<1x8x128xf32>
    %407 = vector.shape_cast %406 : vector<1x8x128xf32> to vector<8x128xf32>
    %408 = vector.shape_cast %405 : vector<8x128xf32> to vector<1x8x128xf32>
    tpu.vector_store %arg10[%c4, %c0_87, %c0_88], %408 {strides = array<i32>} : memref<5x8x128xf32, #tpu.memory_space<vmem>>, vector<1x8x128xf32>,
    return
  }
}

</mosaic_0001>

<llo_original>
// kernel: seq2seq_forward.1
$region0: #{seq2seq_forward.1}
  #allocation0 [shape = 'u32[]', space=smem, size = 0x4, offset = 0x4, fixed_abs, tag = 'smem constant byte address 0x4 - core index']
  #allocation1 [shape = 'u32[72,128]{1,0:T(1,128)}', space=vmem, size = 0x9000, scoped, tag = 'internal scratch']
  %s0 = inlined_call_operand.vmem [shape: f32[64,4], index: 0, kind: input, shape index: {}]
  %s1 = inlined_call_operand.vmem [shape: f32[4,512], index: 1, kind: input, shape index: {}]
  %s2 = inlined_call_operand.vmem [shape: f32[1,512], index: 2, kind: input, shape index: {}]
  %s3 = inlined_call_operand.vmem [shape: f32[128,512], index: 3, kind: input, shape index: {}]
  %s4 = inlined_call_operand.vmem [shape: f32[128,512], index: 4, kind: input, shape index: {}]
  %s5 = inlined_call_operand.vmem [shape: f32[1,512], index: 5, kind: input, shape index: {}]
  %s6 = inlined_call_operand.vmem [shape: f32[128,512], index: 6, kind: input, shape index: {}]
  %s7 = inlined_call_operand.vmem [shape: f32[1,512], index: 7, kind: input, shape index: {}]
  %s8 = inlined_call_operand.vmem [shape: f32[128,128], index: 8, kind: input, shape index: {}]
  %s9 = inlined_call_operand.vmem [shape: f32[1,128], index: 9, kind: input, shape index: {}]
  %s10 = inlined_call_operand.vmem [shape: f32[5,8,128], index: 10, kind: output, shape index: {}]
  %s11 = sld [smem:[#allocation0]]
  $region50: #{seq2seq_forward.1} parent=0
    _
  %s13 = ssub.s32 1, %s11
  %s14 = scalar_select 0, %s13, %s11
  // Predicated region
  $region2: #{seq2seq_forward.1} parent=0 // pred_check
    _
  $region3: #{seq2seq_forward.1} parent=0 // pred_check_branch
    %16 = sbr.rel (0) target = $region5
  $region4: #{seq2seq_forward.1} parent=0 // pred_region
    _
  $region5: #{seq2seq_forward.1} parent=0 // pred_fallthru
    _
  // Predicated region
  $region6: #{seq2seq_forward.1} parent=0 // pred_check
    _
  $region7: #{seq2seq_forward.1} parent=0 // pred_check_branch
    %18 = sbr.rel (0) target = $region9
  $region8: #{seq2seq_forward.1} parent=0 // pred_region
    _
  $region9: #{seq2seq_forward.1} parent=0 // pred_fallthru
    _
  // Predicated region
  $region10: #{seq2seq_forward.1} parent=0 // pred_check
    _
  $region11: #{seq2seq_forward.1} parent=0 // pred_check_branch
    %20 = sbr.rel (0) target = $region13
  $region12: #{seq2seq_forward.1} parent=0 // pred_region
    _
  $region13: #{seq2seq_forward.1} parent=0 // pred_fallthru
    _
  // Predicated region
  $region14: #{seq2seq_forward.1} parent=0 // pred_check
    _
  $region15: #{seq2seq_forward.1} parent=0 // pred_check_branch
    %22 = sbr.rel (0) target = $region17
  $region16: #{seq2seq_forward.1} parent=0 // pred_region
    _
  $region17: #{seq2seq_forward.1} parent=0 // pred_fallthru
    _
  // Predicated region
  $region18: #{seq2seq_forward.1} parent=0 // pred_check
    _
  $region19: #{seq2seq_forward.1} parent=0 // pred_check_branch
    %24 = sbr.rel (0) target = $region21
  $region20: #{seq2seq_forward.1} parent=0 // pred_region
    _
  $region21: #{seq2seq_forward.1} parent=0 // pred_fallthru
    _
  // Predicated region
  $region22: #{seq2seq_forward.1} parent=0 // pred_check
    _
  $region23: #{seq2seq_forward.1} parent=0 // pred_check_branch
    %26 = sbr.rel (0) target = $region25
  $region24: #{seq2seq_forward.1} parent=0 // pred_region
    _
  $region25: #{seq2seq_forward.1} parent=0 // pred_fallthru
    _
  // Predicated region
  $region26: #{seq2seq_forward.1} parent=0 // pred_check
    _
  $region27: #{seq2seq_forward.1} parent=0 // pred_check_branch
    %28 = sbr.rel (0) target = $region29
  $region28: #{seq2seq_forward.1} parent=0 // pred_region
    _
  $region29: #{seq2seq_forward.1} parent=0 // pred_fallthru
    _
  // Predicated region
  $region30: #{seq2seq_forward.1} parent=0 // pred_check
    _
  $region31: #{seq2seq_forward.1} parent=0 // pred_check_branch
    %30 = sbr.rel (0) target = $region33
  $region32: #{seq2seq_forward.1} parent=0 // pred_region
    _
  $region33: #{seq2seq_forward.1} parent=0 // pred_fallthru
    _
  // Predicated region
  $region34: #{seq2seq_forward.1} parent=0 // pred_check
    _
  $region35: #{seq2seq_forward.1} parent=0 // pred_check_branch
    %32 = sbr.rel (0) target = $region37
  $region36: #{seq2seq_forward.1} parent=0 // pred_region
    _
  $region37: #{seq2seq_forward.1} parent=0 // pred_fallthru
    _
  // Predicated region
  $region38: #{seq2seq_forward.1} parent=0 // pred_check
    _
  $region39: #{seq2seq_forward.1} parent=0 // pred_check_branch
    %34 = sbr.rel (0) target = $region41
  $region40: #{seq2seq_forward.1} parent=0 // pred_region
    _
  $region41: #{seq2seq_forward.1} parent=0 // pred_fallthru
    _
  %v35 = vld [vmem:[%s0] sm:$0xff]
  %v36 = vld [vmem:[%s0 + $0x8] sm:$0xff]
  %v37 = vld [vmem:[%s0 + $0x10] sm:$0xff]
  %v38 = vld [vmem:[%s0 + $0x18] sm:$0xff]
  %v39 = vld [vmem:[%s0 + $0x20] sm:$0xff]
  %v40 = vld [vmem:[%s0 + $0x28] sm:$0xff]
  %v41 = vld [vmem:[%s0 + $0x30] sm:$0xff]
  %v42 = vld [vmem:[%s0 + $0x38] sm:$0xff]
  %v43 = vld [vmem:[%s1] sm:$0xff]
  %v44 = vld [vmem:[%s1 + $0x8] sm:$0xff]
  %v45 = vld [vmem:[%s2] sm:$0xf]
  %v47 = vperm.slane %v45, 0
  %v48 = vperm.slane %v45, 1
  %v49 = vperm.slane %v45, 2
  %v50 = vperm.slane %v45, 3
  %57 = vst [vmem:[#allocation1] ss:$2 sm:$0xff] %v43
  %s58 = scalar_lea.vmem [#allocation1], 16
  %59 = vst [vmem:[%s58] ss:$2 sm:$0xff] %v44
  %v60 = vld.sshfl [vmem:[#allocation1] sm:$0xff pattern:$0x75316420]
  %v61 = vld.sshfl [vmem:[#allocation1 + $0x8] sm:$0xff pattern:$0x75316420]
  %v62 = vld.sshfl [vmem:[#allocation1 + $0x10] sm:$0xff pattern:$0x75316420]
  %v63 = vld.sshfl [vmem:[#allocation1 + $0x18] sm:$0xff pattern:$0x75316420]
  %vm64 = vcmask 31744
  %v66 = vsel %vm64, %v35, 0
  %v69 = vsel %vm64, %v36, 0
  %v72 = vsel %vm64, %v37, 0
  %v75 = vsel %vm64, %v38, 0
  %v78 = vsel %vm64, %v39, 0
  %v81 = vsel %vm64, %v40, 0
  %v84 = vsel %vm64, %v41, 0
  %v87 = vsel %vm64, %v42, 0
  %vm89 = vcmask 1043456
  %v90 = vsel %vm89, %v60, 0
  %v92 = vsel %vm89, %v61, 0
  %v94 = vsel %vm89, %v62, 0
  %v96 = vsel %vm89, %v63, 0
  %98 = vmatpush.msra.mxu0 0.0
  %99 = vmatpush.msra.mxu0 0.0
  %100 = vmatpush.msra.mxu0 0.0
  %101 = vmatpush.msra.mxu0 0.0
  %102 = vmatpush.msra.mxu0 0.0
  %103 = vmatpush.msra.mxu0 0.0
  %104 = vmatpush.msra.mxu0 0.0
  %105 = vmatpush.msra.mxu0 0.0
  %106 = vmatpush.msra.mxu0 0.0
  %107 = vmatpush.msra.mxu0 0.0
  %108 = vmatpush.msra.mxu0 0.0
  %109 = vmatpush.msra.mxu0 0.0
  %110 = vmatpush.msra.mxu0 0.0
  %111 = vmatpush.msra.mxu0 0.0
  %112 = vmatpush.msra.mxu0 0.0
  %113 = vmatpush.msra.mxu0 %v90
  %114 = vmatmul.f32.gmra.mxu0 %v66
  %v115 = vpop.f32.mrf.mxu0
  %v116 = vadd.f32 %v47, %v115
  %117 = vmatmul.f32.gmra.mxu0 %v69
  %v118 = vpop.f32.mrf.mxu0
  %v119 = vadd.f32 %v47, %v118
  %120 = vmatmul.f32.gmra.mxu0 %v72
  %v121 = vpop.f32.mrf.mxu0
  %v122 = vadd.f32 %v47, %v121
  %123 = vmatmul.f32.gmra.mxu0 %v75
  %v124 = vpop.f32.mrf.mxu0
  %v125 = vadd.f32 %v47, %v124
  %126 = vmatmul.f32.gmra.mxu0 %v78
  %v127 = vpop.f32.mrf.mxu0
  %v128 = vadd.f32 %v47, %v127
  %129 = vmatmul.f32.gmra.mxu0 %v81
  %v130 = vpop.f32.mrf.mxu0
  %v131 = vadd.f32 %v47, %v130
  %132 = vmatmul.f32.gmra.mxu0 %v84
  %v133 = vpop.f32.mrf.mxu0
  %v134 = vadd.f32 %v47, %v133
  %135 = vmatmul.f32.gmra.mxu0 %v87
  %v136 = vpop.f32.mrf.mxu0
  %v137 = vadd.f32 %v47, %v136
  %138 = vdwg.mxu0
  %139 = vmatpush.msra.mxu0 0.0
  %140 = vmatpush.msra.mxu0 0.0
  %141 = vmatpush.msra.mxu0 0.0
  %142 = vmatpush.msra.mxu0 0.0
  %143 = vmatpush.msra.mxu0 0.0
  %144 = vmatpush.msra.mxu0 0.0
  %145 = vmatpush.msra.mxu0 0.0
  %146 = vmatpush.msra.mxu0 0.0
  %147 = vmatpush.msra.mxu0 0.0
  %148 = vmatpush.msra.mxu0 0.0
  %149 = vmatpush.msra.mxu0 0.0
  %150 = vmatpush.msra.mxu0 0.0
  %151 = vmatpush.msra.mxu0 0.0
  %152 = vmatpush.msra.mxu0 0.0
  %153 = vmatpush.msra.mxu0 0.0
  %154 = vmatpush.msra.mxu0 %v92
  %155 = vmatmul.f32.gmra.mxu0 %v66
  %v156 = vpop.f32.mrf.mxu0
  %v157 = vadd.f32 %v48, %v156
  %158 = vmatmul.f32.gmra.mxu0 %v69
  %v159 = vpop.f32.mrf.mxu0
  %v160 = vadd.f32 %v48, %v159
  %161 = vmatmul.f32.gmra.mxu0 %v72
  %v162 = vpop.f32.mrf.mxu0
  %v163 = vadd.f32 %v48, %v162
  %164 = vmatmul.f32.gmra.mxu0 %v75
  %v165 = vpop.f32.mrf.mxu0
  %v166 = vadd.f32 %v48, %v165
  %167 = vmatmul.f32.gmra.mxu0 %v78
  %v168 = vpop.f32.mrf.mxu0
  %v169 = vadd.f32 %v48, %v168
  %170 = vmatmul.f32.gmra.mxu0 %v81
  %v171 = vpop.f32.mrf.mxu0
  %v172 = vadd.f32 %v48, %v171
  %173 = vmatmul.f32.gmra.mxu0 %v84
  %v174 = vpop.f32.mrf.mxu0
  %v175 = vadd.f32 %v48, %v174
  %176 = vmatmul.f32.gmra.mxu0 %v87
  %v177 = vpop.f32.mrf.mxu0
  %v178 = vadd.f32 %v48, %v177
  %179 = vdwg.mxu0
  %180 = vmatpush.msra.mxu0 0.0
  %181 = vmatpush.msra.mxu0 0.0
  %182 = vmatpush.msra.mxu0 0.0
  %183 = vmatpush.msra.mxu0 0.0
  %184 = vmatpush.msra.mxu0 0.0
  %185 = vmatpush.msra.mxu0 0.0
  %186 = vmatpush.msra.mxu0 0.0
  %187 = vmatpush.msra.mxu0 0.0
  %188 = vmatpush.msra.mxu0 0.0
  %189 = vmatpush.msra.mxu0 0.0
  %190 = vmatpush.msra.mxu0 0.0
  %191 = vmatpush.msra.mxu0 0.0
  %192 = vmatpush.msra.mxu0 0.0
  %193 = vmatpush.msra.mxu0 0.0
  %194 = vmatpush.msra.mxu0 0.0
  %195 = vmatpush.msra.mxu0 %v94
  %196 = vmatmul.f32.gmra.mxu0 %v66
  %v197 = vpop.f32.mrf.mxu0
  %v198 = vadd.f32 %v49, %v197
  %199 = vmatmul.f32.gmra.mxu0 %v69
  %v200 = vpop.f32.mrf.mxu0
  %v201 = vadd.f32 %v49, %v200
  %202 = vmatmul.f32.gmra.mxu0 %v72
  %v203 = vpop.f32.mrf.mxu0
  %v204 = vadd.f32 %v49, %v203
  %205 = vmatmul.f32.gmra.mxu0 %v75
  %v206 = vpop.f32.mrf.mxu0
  %v207 = vadd.f32 %v49, %v206
  %208 = vmatmul.f32.gmra.mxu0 %v78
  %v209 = vpop.f32.mrf.mxu0
  %v210 = vadd.f32 %v49, %v209
  %211 = vmatmul.f32.gmra.mxu0 %v81
  %v212 = vpop.f32.mrf.mxu0
  %v213 = vadd.f32 %v49, %v212
  %214 = vmatmul.f32.gmra.mxu0 %v84
  %v215 = vpop.f32.mrf.mxu0
  %v216 = vadd.f32 %v49, %v215
  %217 = vmatmul.f32.gmra.mxu0 %v87
  %v218 = vpop.f32.mrf.mxu0
  %v219 = vadd.f32 %v49, %v218
  %220 = vdwg.mxu0
  %221 = vmatpush.msra.mxu0 0.0
  %222 = vmatpush.msra.mxu0 0.0
  %223 = vmatpush.msra.mxu0 0.0
  %224 = vmatpush.msra.mxu0 0.0
  %225 = vmatpush.msra.mxu0 0.0
  %226 = vmatpush.msra.mxu0 0.0
  %227 = vmatpush.msra.mxu0 0.0
  %228 = vmatpush.msra.mxu0 0.0
  %229 = vmatpush.msra.mxu0 0.0
  %230 = vmatpush.msra.mxu0 0.0
  %231 = vmatpush.msra.mxu0 0.0
  %232 = vmatpush.msra.mxu0 0.0
  %233 = vmatpush.msra.mxu0 0.0
  %234 = vmatpush.msra.mxu0 0.0
  %235 = vmatpush.msra.mxu0 0.0
  %236 = vmatpush.msra.mxu0 %v96
  %237 = vmatmul.f32.gmra.mxu0 %v66
  %v238 = vpop.f32.mrf.mxu0
  %v239 = vadd.f32 %v50, %v238
  %240 = vmatmul.f32.gmra.mxu0 %v69
  %v241 = vpop.f32.mrf.mxu0
  %v242 = vadd.f32 %v50, %v241
  %243 = vmatmul.f32.gmra.mxu0 %v72
  %v244 = vpop.f32.mrf.mxu0
  %v245 = vadd.f32 %v50, %v244
  %246 = vmatmul.f32.gmra.mxu0 %v75
  %v247 = vpop.f32.mrf.mxu0
  %v248 = vadd.f32 %v50, %v247
  %249 = vmatmul.f32.gmra.mxu0 %v78
  %v250 = vpop.f32.mrf.mxu0
  %v251 = vadd.f32 %v50, %v250
  %252 = vmatmul.f32.gmra.mxu0 %v81
  %v253 = vpop.f32.mrf.mxu0
  %v254 = vadd.f32 %v50, %v253
  %255 = vmatmul.f32.gmra.mxu0 %v84
  %v256 = vpop.f32.mrf.mxu0
  %v257 = vadd.f32 %v50, %v256
  %258 = vmatmul.f32.gmra.mxu0 %v87
  %v259 = vpop.f32.mrf.mxu0
  %v260 = vadd.f32 %v50, %v259
  %261 = vdwg.mxu0
  %v262 = vld [vmem:[%s3] sm:$0xff]
  %v263 = vld [vmem:[%s3 + $0x8] sm:$0xff]
  %v264 = vld [vmem:[%s3 + $0x10] sm:$0xff]
  %v265 = vld [vmem:[%s3 + $0x18] sm:$0xff]
  %v266 = vld [vmem:[%s3 + $0x20] sm:$0xff]
  %v267 = vld [vmem:[%s3 + $0x28] sm:$0xff]
  %v268 = vld [vmem:[%s3 + $0x30] sm:$0xff]
  %v269 = vld [vmem:[%s3 + $0x38] sm:$0xff]
  %v270 = vld [vmem:[%s3 + $0x40] sm:$0xff]
  %v271 = vld [vmem:[%s3 + $0x48] sm:$0xff]
  %v272 = vld [vmem:[%s3 + $0x50] sm:$0xff]
  %v273 = vld [vmem:[%s3 + $0x58] sm:$0xff]
  %v274 = vld [vmem:[%s3 + $0x60] sm:$0xff]
  %v275 = vld [vmem:[%s3 + $0x68] sm:$0xff]
  %v276 = vld [vmem:[%s3 + $0x70] sm:$0xff]
  %v277 = vld [vmem:[%s3 + $0x78] sm:$0xff]
  %v278 = vld [vmem:[%s3 + $0x80] sm:$0xff]
  %v279 = vld [vmem:[%s3 + $0x88] sm:$0xff]
  %v280 = vld [vmem:[%s3 + $0x90] sm:$0xff]
  %v281 = vld [vmem:[%s3 + $0x98] sm:$0xff]
  %v282 = vld [vmem:[%s3 + $0xa0] sm:$0xff]
  %v283 = vld [vmem:[%s3 + $0xa8] sm:$0xff]
  %v284 = vld [vmem:[%s3 + $0xb0] sm:$0xff]
  %v285 = vld [vmem:[%s3 + $0xb8] sm:$0xff]
  %v286 = vld [vmem:[%s3 + $0xc0] sm:$0xff]
  %v287 = vld [vmem:[%s3 + $0xc8] sm:$0xff]
  %v288 = vld [vmem:[%s3 + $0xd0] sm:$0xff]
  %v289 = vld [vmem:[%s3 + $0xd8] sm:$0xff]
  %v290 = vld [vmem:[%s3 + $0xe0] sm:$0xff]
  %v291 = vld [vmem:[%s3 + $0xe8] sm:$0xff]
  %v292 = vld [vmem:[%s3 + $0xf0] sm:$0xff]
  %v293 = vld [vmem:[%s3 + $0xf8] sm:$0xff]
  %v294 = vld [vmem:[%s3 + $0x100] sm:$0xff]
  %v295 = vld [vmem:[%s3 + $0x108] sm:$0xff]
  %v296 = vld [vmem:[%s3 + $0x110] sm:$0xff]
  %v297 = vld [vmem:[%s3 + $0x118] sm:$0xff]
  %v298 = vld [vmem:[%s3 + $0x120] sm:$0xff]
  %v299 = vld [vmem:[%s3 + $0x128] sm:$0xff]
  %v300 = vld [vmem:[%s3 + $0x130] sm:$0xff]
  %v301 = vld [vmem:[%s3 + $0x138] sm:$0xff]
  %v302 = vld [vmem:[%s3 + $0x140] sm:$0xff]
  %v303 = vld [vmem:[%s3 + $0x148] sm:$0xff]
  %v304 = vld [vmem:[%s3 + $0x150] sm:$0xff]
  %v305 = vld [vmem:[%s3 + $0x158] sm:$0xff]
  %v306 = vld [vmem:[%s3 + $0x160] sm:$0xff]
  %v307 = vld [vmem:[%s3 + $0x168] sm:$0xff]
  %v308 = vld [vmem:[%s3 + $0x170] sm:$0xff]
  %v309 = vld [vmem:[%s3 + $0x178] sm:$0xff]
  %v310 = vld [vmem:[%s3 + $0x180] sm:$0xff]
  %v311 = vld [vmem:[%s3 + $0x188] sm:$0xff]
  %v312 = vld [vmem:[%s3 + $0x190] sm:$0xff]
  %v313 = vld [vmem:[%s3 + $0x198] sm:$0xff]
  %v314 = vld [vmem:[%s3 + $0x1a0] sm:$0xff]
  %v315 = vld [vmem:[%s3 + $0x1a8] sm:$0xff]
  %v316 = vld [vmem:[%s3 + $0x1b0] sm:$0xff]
  %v317 = vld [vmem:[%s3 + $0x1b8] sm:$0xff]
  %v318 = vld [vmem:[%s3 + $0x1c0] sm:$0xff]
  %v319 = vld [vmem:[%s3 + $0x1c8] sm:$0xff]
  %v320 = vld [vmem:[%s3 + $0x1d0] sm:$0xff]
  %v321 = vld [vmem:[%s3 + $0x1d8] sm:$0xff]
  %v322 = vld [vmem:[%s3 + $0x1e0] sm:$0xff]
  %v323 = vld [vmem:[%s3 + $0x1e8] sm:$0xff]
  %v324 = vld [vmem:[%s3 + $0x1f0] sm:$0xff]
  %v325 = vld [vmem:[%s3 + $0x1f8] sm:$0xff]
  %326 = vmatpush.msra.mxu0 %v322
  %327 = vmatpush.msra.mxu0 %v318
  %328 = vmatpush.msra.mxu0 %v314
  %329 = vmatpush.msra.mxu0 %v310
  %330 = vmatpush.msra.mxu0 %v306
  %331 = vmatpush.msra.mxu0 %v302
  %332 = vmatpush.msra.mxu0 %v298
  %333 = vmatpush.msra.mxu0 %v294
  %334 = vmatpush.msra.mxu0 %v290
  %335 = vmatpush.msra.mxu0 %v286
  %336 = vmatpush.msra.mxu0 %v282
  %337 = vmatpush.msra.mxu0 %v278
  %338 = vmatpush.msra.mxu0 %v274
  %339 = vmatpush.msra.mxu0 %v270
  %340 = vmatpush.msra.mxu0 %v266
  %341 = vmatpush.msra.mxu0 %v262
  %342 = vmatmul.f32.gmra.mxu0 0.0
  %v343 = vpop.f32.mrf.mxu0
  %v344 = vadd.f32 0.0, %v343
  %345 = vdwg.mxu0
  %346 = vmatpush.msra.mxu0 %v323
  %347 = vmatpush.msra.mxu0 %v319
  %348 = vmatpush.msra.mxu0 %v315
  %349 = vmatpush.msra.mxu0 %v311
  %350 = vmatpush.msra.mxu0 %v307
  %351 = vmatpush.msra.mxu0 %v303
  %352 = vmatpush.msra.mxu0 %v299
  %353 = vmatpush.msra.mxu0 %v295
  %354 = vmatpush.msra.mxu0 %v291
  %355 = vmatpush.msra.mxu0 %v287
  %356 = vmatpush.msra.mxu0 %v283
  %357 = vmatpush.msra.mxu0 %v279
  %358 = vmatpush.msra.mxu0 %v275
  %359 = vmatpush.msra.mxu0 %v271
  %360 = vmatpush.msra.mxu0 %v267
  %361 = vmatpush.msra.mxu0 %v263
  %362 = vmatmul.f32.gmra.mxu0 0.0
  %v363 = vpop.f32.mrf.mxu0
  %v364 = vadd.f32 0.0, %v363
  %365 = vdwg.mxu0
  %366 = vmatpush.msra.mxu0 %v324
  %367 = vmatpush.msra.mxu0 %v320
  %368 = vmatpush.msra.mxu0 %v316
  %369 = vmatpush.msra.mxu0 %v312
  %370 = vmatpush.msra.mxu0 %v308
  %371 = vmatpush.msra.mxu0 %v304
  %372 = vmatpush.msra.mxu0 %v300
  %373 = vmatpush.msra.mxu0 %v296
  %374 = vmatpush.msra.mxu0 %v292
  %375 = vmatpush.msra.mxu0 %v288
  %376 = vmatpush.msra.mxu0 %v284
  %377 = vmatpush.msra.mxu0 %v280
  %378 = vmatpush.msra.mxu0 %v276
  %379 = vmatpush.msra.mxu0 %v272
  %380 = vmatpush.msra.mxu0 %v268
  %381 = vmatpush.msra.mxu0 %v264
  %382 = vmatmul.f32.gmra.mxu0 0.0
  %v383 = vpop.f32.mrf.mxu0
  %v384 = vadd.f32 0.0, %v383
  %385 = vdwg.mxu0
  %386 = vmatpush.msra.mxu0 %v325
  %387 = vmatpush.msra.mxu0 %v321
  %388 = vmatpush.msra.mxu0 %v317
  %389 = vmatpush.msra.mxu0 %v313
  %390 = vmatpush.msra.mxu0 %v309
  %391 = vmatpush.msra.mxu0 %v305
  %392 = vmatpush.msra.mxu0 %v301
  %393 = vmatpush.msra.mxu0 %v297
  %394 = vmatpush.msra.mxu0 %v293
  %395 = vmatpush.msra.mxu0 %v289
  %396 = vmatpush.msra.mxu0 %v285
  %397 = vmatpush.msra.mxu0 %v281
  %398 = vmatpush.msra.mxu0 %v277
  %399 = vmatpush.msra.mxu0 %v273
  %400 = vmatpush.msra.mxu0 %v269
  %401 = vmatpush.msra.mxu0 %v265
  %402 = vmatmul.f32.gmra.mxu0 0.0
  %v403 = vpop.f32.mrf.mxu0
  %v404 = vadd.f32 0.0, %v403
  %405 = vdwg.mxu0
  %v406 = vadd.f32 %v116, %v344
  %v407 = vadd.f32 %v157, %v364
  %v408 = vadd.f32 %v198, %v384
  %v409 = vadd.f32 %v239, %v404
  %v410 = vxor.u32 %v406, 2147483648
  %v411 = vmul.f32 %v410, 1.442695
  %v412 = vpow.pop %v411
  %v413 = vadd.f32 %v412, 1.0
  %v414 = vrcp.pop %v413
  %v415 = vmul.f32 %v413, %v414
  %v416 = vsub.f32 1.0, %v415
  %v417 = vmul.f32 %v414, %v416
  %v418 = vadd.f32 %v414, %v417
  %vm419 = vweird.f32 %v413
  %vm420 = vweird.f32 %v414
  %vm421 = vmor %vm419, %vm420
  %v422 = vsel %vm421, %v414, %v418
  %v423 = vand.u32 2147483647, %v413
  %vm424 = vcmp.eq.f32.partialorder %v423, 8.507059e+37
  %v425 = vand.u32 %v413, 2147483648
  %v426 = vor.u32 1.1754944e-38, %v425
  %v427 = vsel %vm424, %v426, %v422
  %v428 = vmul.f32 1.0, %v427
  %v429 = vxor.u32 %v407, 2147483648
  %v430 = vmul.f32 %v429, 1.442695
  %v431 = vpow.pop %v430
  %v432 = vadd.f32 %v431, 1.0
  %v433 = vrcp.pop %v432
  %v434 = vmul.f32 %v432, %v433
  %v435 = vsub.f32 1.0, %v434
  %v436 = vmul.f32 %v433, %v435
  %v437 = vadd.f32 %v433, %v436
  %vm438 = vweird.f32 %v432
  %vm439 = vweird.f32 %v433
  %vm440 = vmor %vm438, %vm439
  %v441 = vsel %vm440, %v433, %v437
  %v442 = vand.u32 2147483647, %v432
  %vm443 = vcmp.eq.f32.partialorder %v442, 8.507059e+37
  %v444 = vand.u32 %v432, 2147483648
  %v445 = vor.u32 1.1754944e-38, %v444
  %v446 = vsel %vm443, %v445, %v441
  %v447 = vmul.f32 1.0, %v446
  %v448 = vtanh.pop %v408
  %v449 = vxor.u32 %v409, 2147483648
  %v450 = vmul.f32 %v449, 1.442695
  %v451 = vpow.pop %v450
  %v452 = vadd.f32 %v451, 1.0
  %v453 = vrcp.pop %v452
  %v454 = vmul.f32 %v452, %v453
  %v455 = vsub.f32 1.0, %v454
  %v456 = vmul.f32 %v453, %v455
  %v457 = vadd.f32 %v453, %v456
  %vm458 = vweird.f32 %v452
  %vm459 = vweird.f32 %v453
  %vm460 = vmor %vm458, %vm459
  %v461 = vsel %vm460, %v453, %v457
  %v462 = vand.u32 2147483647, %v452
  %vm463 = vcmp.eq.f32.partialorder %v462, 8.507059e+37
  %v464 = vand.u32 %v452, 2147483648
  %v465 = vor.u32 1.1754944e-38, %v464
  %v466 = vsel %vm463, %v465, %v461
  %v467 = vmul.f32 1.0, %v466
  %v468 = vmul.f32 %v447, 0.0
  %v469 = vmul.f32 %v428, %v448
  %v470 = vadd.f32 %v468, %v469
  %v471 = vtanh.pop %v470
  %v472 = vmul.f32 %v467, %v471
  %473 = vmatpush.msra.mxu0 %v322
  %474 = vmatpush.msra.mxu0 %v318
  %475 = vmatpush.msra.mxu0 %v314
  %476 = vmatpush.msra.mxu0 %v310
  %477 = vmatpush.msra.mxu0 %v306
  %478 = vmatpush.msra.mxu0 %v302
  %479 = vmatpush.msra.mxu0 %v298
  %480 = vmatpush.msra.mxu0 %v294
  %481 = vmatpush.msra.mxu0 %v290
  %482 = vmatpush.msra.mxu0 %v286
  %483 = vmatpush.msra.mxu0 %v282
  %484 = vmatpush.msra.mxu0 %v278
  %485 = vmatpush.msra.mxu0 %v274
  %486 = vmatpush.msra.mxu0 %v270
  %487 = vmatpush.msra.mxu0 %v266
  %488 = vmatpush.msra.mxu0 %v262
  %489 = vmatmul.f32.gmra.mxu0 %v472
  %v490 = vpop.f32.mrf.mxu0
  %v491 = vadd.f32 0.0, %v490
  %492 = vdwg.mxu0
  %493 = vmatpush.msra.mxu0 %v323
  %494 = vmatpush.msra.mxu0 %v319
  %495 = vmatpush.msra.mxu0 %v315
  %496 = vmatpush.msra.mxu0 %v311
  %497 = vmatpush.msra.mxu0 %v307
  %498 = vmatpush.msra.mxu0 %v303
  %499 = vmatpush.msra.mxu0 %v299
  %500 = vmatpush.msra.mxu0 %v295
  %501 = vmatpush.msra.mxu0 %v291
  %502 = vmatpush.msra.mxu0 %v287
  %503 = vmatpush.msra.mxu0 %v283
  %504 = vmatpush.msra.mxu0 %v279
  %505 = vmatpush.msra.mxu0 %v275
  %506 = vmatpush.msra.mxu0 %v271
  %507 = vmatpush.msra.mxu0 %v267
  %508 = vmatpush.msra.mxu0 %v263
  %509 = vmatmul.f32.gmra.mxu0 %v472
  %v510 = vpop.f32.mrf.mxu0
  %v511 = vadd.f32 0.0, %v510
  %512 = vdwg.mxu0
  %513 = vmatpush.msra.mxu0 %v324
  %514 = vmatpush.msra.mxu0 %v320
  %515 = vmatpush.msra.mxu0 %v316
  %516 = vmatpush.msra.mxu0 %v312
  %517 = vmatpush.msra.mxu0 %v308
  %518 = vmatpush.msra.mxu0 %v304
  %519 = vmatpush.msra.mxu0 %v300
  %520 = vmatpush.msra.mxu0 %v296
  %521 = vmatpush.msra.mxu0 %v292
  %522 = vmatpush.msra.mxu0 %v288
  %523 = vmatpush.msra.mxu0 %v284
  %524 = vmatpush.msra.mxu0 %v280
  %525 = vmatpush.msra.mxu0 %v276
  %526 = vmatpush.msra.mxu0 %v272
  %527 = vmatpush.msra.mxu0 %v268
  %528 = vmatpush.msra.mxu0 %v264
  %529 = vmatmul.f32.gmra.mxu0 %v472
  %v530 = vpop.f32.mrf.mxu0
  %v531 = vadd.f32 0.0, %v530
  %532 = vdwg.mxu0
  %533 = vmatpush.msra.mxu0 %v325
  %534 = vmatpush.msra.mxu0 %v321
  %535 = vmatpush.msra.mxu0 %v317
  %536 = vmatpush.msra.mxu0 %v313
  %537 = vmatpush.msra.mxu0 %v309
  %538 = vmatpush.msra.mxu0 %v305
  %539 = vmatpush.msra.mxu0 %v301
  %540 = vmatpush.msra.mxu0 %v297
  %541 = vmatpush.msra.mxu0 %v293
  %542 = vmatpush.msra.mxu0 %v289
  %543 = vmatpush.msra.mxu0 %v285
  %544 = vmatpush.msra.mxu0 %v281
  %545 = vmatpush.msra.mxu0 %v277
  %546 = vmatpush.msra.mxu0 %v273
  %547 = vmatpush.msra.mxu0 %v269
  %548 = vmatpush.msra.mxu0 %v265
  %549 = vmatmul.f32.gmra.mxu0 %v472
  %v550 = vpop.f32.mrf.mxu0
  %v551 = vadd.f32 0.0, %v550
  %552 = vdwg.mxu0
  %v553 = vadd.f32 %v119, %v491
  %v554 = vadd.f32 %v160, %v511
  %v555 = vadd.f32 %v201, %v531
  %v556 = vadd.f32 %v242, %v551
  %v557 = vxor.u32 %v553, 2147483648
  %v558 = vmul.f32 %v557, 1.442695
  %v559 = vpow.pop %v558
  %v560 = vadd.f32 %v559, 1.0
  %v561 = vrcp.pop %v560
  %v562 = vmul.f32 %v560, %v561
  %v563 = vsub.f32 1.0, %v562
  %v564 = vmul.f32 %v561, %v563
  %v565 = vadd.f32 %v561, %v564
  %vm566 = vweird.f32 %v560
  %vm567 = vweird.f32 %v561
  %vm568 = vmor %vm566, %vm567
  %v569 = vsel %vm568, %v561, %v565
  %v570 = vand.u32 2147483647, %v560
  %vm571 = vcmp.eq.f32.partialorder %v570, 8.507059e+37
  %v572 = vand.u32 %v560, 2147483648
  %v573 = vor.u32 1.1754944e-38, %v572
  %v574 = vsel %vm571, %v573, %v569
  %v575 = vmul.f32 1.0, %v574
  %v576 = vxor.u32 %v554, 2147483648
  %v577 = vmul.f32 %v576, 1.442695
  %v578 = vpow.pop %v577
  %v579 = vadd.f32 %v578, 1.0
  %v580 = vrcp.pop %v579
  %v581 = vmul.f32 %v579, %v580
  %v582 = vsub.f32 1.0, %v581
  %v583 = vmul.f32 %v580, %v582
  %v584 = vadd.f32 %v580, %v583
  %vm585 = vweird.f32 %v579
  %vm586 = vweird.f32 %v580
  %vm587 = vmor %vm585, %vm586
  %v588 = vsel %vm587, %v580, %v584
  %v589 = vand.u32 2147483647, %v579
  %vm590 = vcmp.eq.f32.partialorder %v589, 8.507059e+37
  %v591 = vand.u32 %v579, 2147483648
  %v592 = vor.u32 1.1754944e-38, %v591
  %v593 = vsel %vm590, %v592, %v588
  %v594 = vmul.f32 1.0, %v593
  %v595 = vtanh.pop %v555
  %v596 = vxor.u32 %v556, 2147483648
  %v597 = vmul.f32 %v596, 1.442695
  %v598 = vpow.pop %v597
  %v599 = vadd.f32 %v598, 1.0
  %v600 = vrcp.pop %v599
  %v601 = vmul.f32 %v599, %v600
  %v602 = vsub.f32 1.0, %v601
  %v603 = vmul.f32 %v600, %v602
  %v604 = vadd.f32 %v600, %v603
  %vm605 = vweird.f32 %v599
  %vm606 = vweird.f32 %v600
  %vm607 = vmor %vm605, %vm606
  %v608 = vsel %vm607, %v600, %v604
  %v609 = vand.u32 2147483647, %v599
  %vm610 = vcmp.eq.f32.partialorder %v609, 8.507059e+37
  %v611 = vand.u32 %v599, 2147483648
  %v612 = vor.u32 1.1754944e-38, %v611
  %v613 = vsel %vm610, %v612, %v608
  %v614 = vmul.f32 1.0, %v613
  %v615 = vmul.f32 %v594, %v470
  %v616 = vmul.f32 %v575, %v595
  %v617 = vadd.f32 %v615, %v616
  %v618 = vtanh.pop %v617
  %v619 = vmul.f32 %v614, %v618
  %620 = vmatpush.msra.mxu0 %v322
  %621 = vmatpush.msra.mxu0 %v318
  %622 = vmatpush.msra.mxu0 %v314
  %623 = vmatpush.msra.mxu0 %v310
  %624 = vmatpush.msra.mxu0 %v306
  %625 = vmatpush.msra.mxu0 %v302
  %626 = vmatpush.msra.mxu0 %v298
  %627 = vmatpush.msra.mxu0 %v294
  %628 = vmatpush.msra.mxu0 %v290
  %629 = vmatpush.msra.mxu0 %v286
  %630 = vmatpush.msra.mxu0 %v282
  %631 = vmatpush.msra.mxu0 %v278
  %632 = vmatpush.msra.mxu0 %v274
  %633 = vmatpush.msra.mxu0 %v270
  %634 = vmatpush.msra.mxu0 %v266
  %635 = vmatpush.msra.mxu0 %v262
  %636 = vmatmul.f32.gmra.mxu0 %v619
  %v637 = vpop.f32.mrf.mxu0
  %v638 = vadd.f32 0.0, %v637
  %639 = vdwg.mxu0
  %640 = vmatpush.msra.mxu0 %v323
  %641 = vmatpush.msra.mxu0 %v319
  %642 = vmatpush.msra.mxu0 %v315
  %643 = vmatpush.msra.mxu0 %v311
  %644 = vmatpush.msra.mxu0 %v307
  %645 = vmatpush.msra.mxu0 %v303
  %646 = vmatpush.msra.mxu0 %v299
  %647 = vmatpush.msra.mxu0 %v295
  %648 = vmatpush.msra.mxu0 %v291
  %649 = vmatpush.msra.mxu0 %v287
  %650 = vmatpush.msra.mxu0 %v283
  %651 = vmatpush.msra.mxu0 %v279
  %652 = vmatpush.msra.mxu0 %v275
  %653 = vmatpush.msra.mxu0 %v271
  %654 = vmatpush.msra.mxu0 %v267
  %655 = vmatpush.msra.mxu0 %v263
  %656 = vmatmul.f32.gmra.mxu0 %v619
  %v657 = vpop.f32.mrf.mxu0
  %v658 = vadd.f32 0.0, %v657
  %659 = vdwg.mxu0
  %660 = vmatpush.msra.mxu0 %v324
  %661 = vmatpush.msra.mxu0 %v320
  %662 = vmatpush.msra.mxu0 %v316
  %663 = vmatpush.msra.mxu0 %v312
  %664 = vmatpush.msra.mxu0 %v308
  %665 = vmatpush.msra.mxu0 %v304
  %666 = vmatpush.msra.mxu0 %v300
  %667 = vmatpush.msra.mxu0 %v296
  %668 = vmatpush.msra.mxu0 %v292
  %669 = vmatpush.msra.mxu0 %v288
  %670 = vmatpush.msra.mxu0 %v284
  %671 = vmatpush.msra.mxu0 %v280
  %672 = vmatpush.msra.mxu0 %v276
  %673 = vmatpush.msra.mxu0 %v272
  %674 = vmatpush.msra.mxu0 %v268
  %675 = vmatpush.msra.mxu0 %v264
  %676 = vmatmul.f32.gmra.mxu0 %v619
  %v677 = vpop.f32.mrf.mxu0
  %v678 = vadd.f32 0.0, %v677
  %679 = vdwg.mxu0
  %680 = vmatpush.msra.mxu0 %v325
  %681 = vmatpush.msra.mxu0 %v321
  %682 = vmatpush.msra.mxu0 %v317
  %683 = vmatpush.msra.mxu0 %v313
  %684 = vmatpush.msra.mxu0 %v309
  %685 = vmatpush.msra.mxu0 %v305
  %686 = vmatpush.msra.mxu0 %v301
  %687 = vmatpush.msra.mxu0 %v297
  %688 = vmatpush.msra.mxu0 %v293
  %689 = vmatpush.msra.mxu0 %v289
  %690 = vmatpush.msra.mxu0 %v285
  %691 = vmatpush.msra.mxu0 %v281
  %692 = vmatpush.msra.mxu0 %v277
  %693 = vmatpush.msra.mxu0 %v273
  %694 = vmatpush.msra.mxu0 %v269
  %695 = vmatpush.msra.mxu0 %v265
  %696 = vmatmul.f32.gmra.mxu0 %v619
  %v697 = vpop.f32.mrf.mxu0
  %v698 = vadd.f32 0.0, %v697
  %699 = vdwg.mxu0
  %v700 = vadd.f32 %v122, %v638
  %v701 = vadd.f32 %v163, %v658
  %v702 = vadd.f32 %v204, %v678
  %v703 = vadd.f32 %v245, %v698
  %v704 = vxor.u32 %v700, 2147483648
  %v705 = vmul.f32 %v704, 1.442695
  %v706 = vpow.pop %v705
  %v707 = vadd.f32 %v706, 1.0
  %v708 = vrcp.pop %v707
  %v709 = vmul.f32 %v707, %v708
  %v710 = vsub.f32 1.0, %v709
  %v711 = vmul.f32 %v708, %v710
  %v712 = vadd.f32 %v708, %v711
  %vm713 = vweird.f32 %v707
  %vm714 = vweird.f32 %v708
  %vm715 = vmor %vm713, %vm714
  %v716 = vsel %vm715, %v708, %v712
  %v717 = vand.u32 2147483647, %v707
  %vm718 = vcmp.eq.f32.partialorder %v717, 8.507059e+37
  %v719 = vand.u32 %v707, 2147483648
  %v720 = vor.u32 1.1754944e-38, %v719
  %v721 = vsel %vm718, %v720, %v716
  %v722 = vmul.f32 1.0, %v721
  %v723 = vxor.u32 %v701, 2147483648
  %v724 = vmul.f32 %v723, 1.442695
  %v725 = vpow.pop %v724
  %v726 = vadd.f32 %v725, 1.0
  %v727 = vrcp.pop %v726
  %v728 = vmul.f32 %v726, %v727
  %v729 = vsub.f32 1.0, %v728
  %v730 = vmul.f32 %v727, %v729
  %v731 = vadd.f32 %v727, %v730
  %vm732 = vweird.f32 %v726
  %vm733 = vweird.f32 %v727
  %vm734 = vmor %vm732, %vm733
  %v735 = vsel %vm734, %v727, %v731
  %v736 = vand.u32 2147483647, %v726
  %vm737 = vcmp.eq.f32.partialorder %v736, 8.507059e+37
  %v738 = vand.u32 %v726, 2147483648
  %v739 = vor.u32 1.1754944e-38, %v738
  %v740 = vsel %vm737, %v739, %v735
  %v741 = vmul.f32 1.0, %v740
  %v742 = vtanh.pop %v702
  %v743 = vxor.u32 %v703, 2147483648
  %v744 = vmul.f32 %v743, 1.442695
  %v745 = vpow.pop %v744
  %v746 = vadd.f32 %v745, 1.0
  %v747 = vrcp.pop %v746
  %v748 = vmul.f32 %v746, %v747
  %v749 = vsub.f32 1.0, %v748
  %v750 = vmul.f32 %v747, %v749
  %v751 = vadd.f32 %v747, %v750
  %vm752 = vweird.f32 %v746
  %vm753 = vweird.f32 %v747
  %vm754 = vmor %vm752, %vm753
  %v755 = vsel %vm754, %v747, %v751
  %v756 = vand.u32 2147483647, %v746
  %vm757 = vcmp.eq.f32.partialorder %v756, 8.507059e+37
  %v758 = vand.u32 %v746, 2147483648
  %v759 = vor.u32 1.1754944e-38, %v758
  %v760 = vsel %vm757, %v759, %v755
  %v761 = vmul.f32 1.0, %v760
  %v762 = vmul.f32 %v741, %v617
  %v763 = vmul.f32 %v722, %v742
  %v764 = vadd.f32 %v762, %v763
  %v765 = vtanh.pop %v764
  %v766 = vmul.f32 %v761, %v765
  %767 = vmatpush.msra.mxu0 %v322
  %768 = vmatpush.msra.mxu0 %v318
  %769 = vmatpush.msra.mxu0 %v314
  %770 = vmatpush.msra.mxu0 %v310
  %771 = vmatpush.msra.mxu0 %v306
  %772 = vmatpush.msra.mxu0 %v302
  %773 = vmatpush.msra.mxu0 %v298
  %774 = vmatpush.msra.mxu0 %v294
  %775 = vmatpush.msra.mxu0 %v290
  %776 = vmatpush.msra.mxu0 %v286
  %777 = vmatpush.msra.mxu0 %v282
  %778 = vmatpush.msra.mxu0 %v278
  %779 = vmatpush.msra.mxu0 %v274
  %780 = vmatpush.msra.mxu0 %v270
  %781 = vmatpush.msra.mxu0 %v266
  %782 = vmatpush.msra.mxu0 %v262
  %783 = vmatmul.f32.gmra.mxu0 %v766
  %v784 = vpop.f32.mrf.mxu0
  %v785 = vadd.f32 0.0, %v784
  %786 = vdwg.mxu0
  %787 = vmatpush.msra.mxu0 %v323
  %788 = vmatpush.msra.mxu0 %v319
  %789 = vmatpush.msra.mxu0 %v315
  %790 = vmatpush.msra.mxu0 %v311
  %791 = vmatpush.msra.mxu0 %v307
  %792 = vmatpush.msra.mxu0 %v303
  %793 = vmatpush.msra.mxu0 %v299
  %794 = vmatpush.msra.mxu0 %v295
  %795 = vmatpush.msra.mxu0 %v291
  %796 = vmatpush.msra.mxu0 %v287
  %797 = vmatpush.msra.mxu0 %v283
  %798 = vmatpush.msra.mxu0 %v279
  %799 = vmatpush.msra.mxu0 %v275
  %800 = vmatpush.msra.mxu0 %v271
  %801 = vmatpush.msra.mxu0 %v267
  %802 = vmatpush.msra.mxu0 %v263
  %803 = vmatmul.f32.gmra.mxu0 %v766
  %v804 = vpop.f32.mrf.mxu0
  %v805 = vadd.f32 0.0, %v804
  %806 = vdwg.mxu0
  %807 = vmatpush.msra.mxu0 %v324
  %808 = vmatpush.msra.mxu0 %v320
  %809 = vmatpush.msra.mxu0 %v316
  %810 = vmatpush.msra.mxu0 %v312
  %811 = vmatpush.msra.mxu0 %v308
  %812 = vmatpush.msra.mxu0 %v304
  %813 = vmatpush.msra.mxu0 %v300
  %814 = vmatpush.msra.mxu0 %v296
  %815 = vmatpush.msra.mxu0 %v292
  %816 = vmatpush.msra.mxu0 %v288
  %817 = vmatpush.msra.mxu0 %v284
  %818 = vmatpush.msra.mxu0 %v280
  %819 = vmatpush.msra.mxu0 %v276
  %820 = vmatpush.msra.mxu0 %v272
  %821 = vmatpush.msra.mxu0 %v268
  %822 = vmatpush.msra.mxu0 %v264
  %823 = vmatmul.f32.gmra.mxu0 %v766
  %v824 = vpop.f32.mrf.mxu0
  %v825 = vadd.f32 0.0, %v824
  %826 = vdwg.mxu0
  %827 = vmatpush.msra.mxu0 %v325
  %828 = vmatpush.msra.mxu0 %v321
  %829 = vmatpush.msra.mxu0 %v317
  %830 = vmatpush.msra.mxu0 %v313
  %831 = vmatpush.msra.mxu0 %v309
  %832 = vmatpush.msra.mxu0 %v305
  %833 = vmatpush.msra.mxu0 %v301
  %834 = vmatpush.msra.mxu0 %v297
  %835 = vmatpush.msra.mxu0 %v293
  %836 = vmatpush.msra.mxu0 %v289
  %837 = vmatpush.msra.mxu0 %v285
  %838 = vmatpush.msra.mxu0 %v281
  %839 = vmatpush.msra.mxu0 %v277
  %840 = vmatpush.msra.mxu0 %v273
  %841 = vmatpush.msra.mxu0 %v269
  %842 = vmatpush.msra.mxu0 %v265
  %843 = vmatmul.f32.gmra.mxu0 %v766
  %v844 = vpop.f32.mrf.mxu0
  %v845 = vadd.f32 0.0, %v844
  %846 = vdwg.mxu0
  %v847 = vadd.f32 %v125, %v785
  %v848 = vadd.f32 %v166, %v805
  %v849 = vadd.f32 %v207, %v825
  %v850 = vadd.f32 %v248, %v845
  %v851 = vxor.u32 %v847, 2147483648
  %v852 = vmul.f32 %v851, 1.442695
  %v853 = vpow.pop %v852
  %v854 = vadd.f32 %v853, 1.0
  %v855 = vrcp.pop %v854
  %v856 = vmul.f32 %v854, %v855
  %v857 = vsub.f32 1.0, %v856
  %v858 = vmul.f32 %v855, %v857
  %v859 = vadd.f32 %v855, %v858
  %vm860 = vweird.f32 %v854
  %vm861 = vweird.f32 %v855
  %vm862 = vmor %vm860, %vm861
  %v863 = vsel %vm862, %v855, %v859
  %v864 = vand.u32 2147483647, %v854
  %vm865 = vcmp.eq.f32.partialorder %v864, 8.507059e+37
  %v866 = vand.u32 %v854, 2147483648
  %v867 = vor.u32 1.1754944e-38, %v866
  %v868 = vsel %vm865, %v867, %v863
  %v869 = vmul.f32 1.0, %v868
  %v870 = vxor.u32 %v848, 2147483648
  %v871 = vmul.f32 %v870, 1.442695
  %v872 = vpow.pop %v871
  %v873 = vadd.f32 %v872, 1.0
  %v874 = vrcp.pop %v873
  %v875 = vmul.f32 %v873, %v874
  %v876 = vsub.f32 1.0, %v875
  %v877 = vmul.f32 %v874, %v876
  %v878 = vadd.f32 %v874, %v877
  %vm879 = vweird.f32 %v873
  %vm880 = vweird.f32 %v874
  %vm881 = vmor %vm879, %vm880
  %v882 = vsel %vm881, %v874, %v878
  %v883 = vand.u32 2147483647, %v873
  %vm884 = vcmp.eq.f32.partialorder %v883, 8.507059e+37
  %v885 = vand.u32 %v873, 2147483648
  %v886 = vor.u32 1.1754944e-38, %v885
  %v887 = vsel %vm884, %v886, %v882
  %v888 = vmul.f32 1.0, %v887
  %v889 = vtanh.pop %v849
  %v890 = vxor.u32 %v850, 2147483648
  %v891 = vmul.f32 %v890, 1.442695
  %v892 = vpow.pop %v891
  %v893 = vadd.f32 %v892, 1.0
  %v894 = vrcp.pop %v893
  %v895 = vmul.f32 %v893, %v894
  %v896 = vsub.f32 1.0, %v895
  %v897 = vmul.f32 %v894, %v896
  %v898 = vadd.f32 %v894, %v897
  %vm899 = vweird.f32 %v893
  %vm900 = vweird.f32 %v894
  %vm901 = vmor %vm899, %vm900
  %v902 = vsel %vm901, %v894, %v898
  %v903 = vand.u32 2147483647, %v893
  %vm904 = vcmp.eq.f32.partialorder %v903, 8.507059e+37
  %v905 = vand.u32 %v893, 2147483648
  %v906 = vor.u32 1.1754944e-38, %v905
  %v907 = vsel %vm904, %v906, %v902
  %v908 = vmul.f32 1.0, %v907
  %v909 = vmul.f32 %v888, %v764
  %v910 = vmul.f32 %v869, %v889
  %v911 = vadd.f32 %v909, %v910
  %v912 = vtanh.pop %v911
  %v913 = vmul.f32 %v908, %v912
  %914 = vmatpush.msra.mxu0 %v322
  %915 = vmatpush.msra.mxu0 %v318
  %916 = vmatpush.msra.mxu0 %v314
  %917 = vmatpush.msra.mxu0 %v310
  %918 = vmatpush.msra.mxu0 %v306
  %919 = vmatpush.msra.mxu0 %v302
  %920 = vmatpush.msra.mxu0 %v298
  %921 = vmatpush.msra.mxu0 %v294
  %922 = vmatpush.msra.mxu0 %v290
  %923 = vmatpush.msra.mxu0 %v286
  %924 = vmatpush.msra.mxu0 %v282
  %925 = vmatpush.msra.mxu0 %v278
  %926 = vmatpush.msra.mxu0 %v274
  %927 = vmatpush.msra.mxu0 %v270
  %928 = vmatpush.msra.mxu0 %v266
  %929 = vmatpush.msra.mxu0 %v262
  %930 = vmatmul.f32.gmra.mxu0 %v913
  %v931 = vpop.f32.mrf.mxu0
  %v932 = vadd.f32 0.0, %v931
  %933 = vdwg.mxu0
  %934 = vmatpush.msra.mxu0 %v323
  %935 = vmatpush.msra.mxu0 %v319
  %936 = vmatpush.msra.mxu0 %v315
  %937 = vmatpush.msra.mxu0 %v311
  %938 = vmatpush.msra.mxu0 %v307
  %939 = vmatpush.msra.mxu0 %v303
  %940 = vmatpush.msra.mxu0 %v299
  %941 = vmatpush.msra.mxu0 %v295
  %942 = vmatpush.msra.mxu0 %v291
  %943 = vmatpush.msra.mxu0 %v287
  %944 = vmatpush.msra.mxu0 %v283
  %945 = vmatpush.msra.mxu0 %v279
  %946 = vmatpush.msra.mxu0 %v275
  %947 = vmatpush.msra.mxu0 %v271
  %948 = vmatpush.msra.mxu0 %v267
  %949 = vmatpush.msra.mxu0 %v263
  %950 = vmatmul.f32.gmra.mxu0 %v913
  %v951 = vpop.f32.mrf.mxu0
  %v952 = vadd.f32 0.0, %v951
  %953 = vdwg.mxu0
  %954 = vmatpush.msra.mxu0 %v324
  %955 = vmatpush.msra.mxu0 %v320
  %956 = vmatpush.msra.mxu0 %v316
  %957 = vmatpush.msra.mxu0 %v312
  %958 = vmatpush.msra.mxu0 %v308
  %959 = vmatpush.msra.mxu0 %v304
  %960 = vmatpush.msra.mxu0 %v300
  %961 = vmatpush.msra.mxu0 %v296
  %962 = vmatpush.msra.mxu0 %v292
  %963 = vmatpush.msra.mxu0 %v288
  %964 = vmatpush.msra.mxu0 %v284
  %965 = vmatpush.msra.mxu0 %v280
  %966 = vmatpush.msra.mxu0 %v276
  %967 = vmatpush.msra.mxu0 %v272
  %968 = vmatpush.msra.mxu0 %v268
  %969 = vmatpush.msra.mxu0 %v264
  %970 = vmatmul.f32.gmra.mxu0 %v913
  %v971 = vpop.f32.mrf.mxu0
  %v972 = vadd.f32 0.0, %v971
  %973 = vdwg.mxu0
  %974 = vmatpush.msra.mxu0 %v325
  %975 = vmatpush.msra.mxu0 %v321
  %976 = vmatpush.msra.mxu0 %v317
  %977 = vmatpush.msra.mxu0 %v313
  %978 = vmatpush.msra.mxu0 %v309
  %979 = vmatpush.msra.mxu0 %v305
  %980 = vmatpush.msra.mxu0 %v301
  %981 = vmatpush.msra.mxu0 %v297
  %982 = vmatpush.msra.mxu0 %v293
  %983 = vmatpush.msra.mxu0 %v289
  %984 = vmatpush.msra.mxu0 %v285
  %985 = vmatpush.msra.mxu0 %v281
  %986 = vmatpush.msra.mxu0 %v277
  %987 = vmatpush.msra.mxu0 %v273
  %988 = vmatpush.msra.mxu0 %v269
  %989 = vmatpush.msra.mxu0 %v265
  %990 = vmatmul.f32.gmra.mxu0 %v913
  %v991 = vpop.f32.mrf.mxu0
  %v992 = vadd.f32 0.0, %v991
  %993 = vdwg.mxu0
  %v994 = vadd.f32 %v128, %v932
  %v995 = vadd.f32 %v169, %v952
  %v996 = vadd.f32 %v210, %v972
  %v997 = vadd.f32 %v251, %v992
  %v998 = vxor.u32 %v994, 2147483648
  %v999 = vmul.f32 %v998, 1.442695
  %v1000 = vpow.pop %v999
  %v1001 = vadd.f32 %v1000, 1.0
  %v1002 = vrcp.pop %v1001
  %v1003 = vmul.f32 %v1001, %v1002
  %v1004 = vsub.f32 1.0, %v1003
  %v1005 = vmul.f32 %v1002, %v1004
  %v1006 = vadd.f32 %v1002, %v1005
  %vm1007 = vweird.f32 %v1001
  %vm1008 = vweird.f32 %v1002
  %vm1009 = vmor %vm1007, %vm1008
  %v1010 = vsel %vm1009, %v1002, %v1006
  %v1011 = vand.u32 2147483647, %v1001
  %vm1012 = vcmp.eq.f32.partialorder %v1011, 8.507059e+37
  %v1013 = vand.u32 %v1001, 2147483648
  %v1014 = vor.u32 1.1754944e-38, %v1013
  %v1015 = vsel %vm1012, %v1014, %v1010
  %v1016 = vmul.f32 1.0, %v1015
  %v1017 = vxor.u32 %v995, 2147483648
  %v1018 = vmul.f32 %v1017, 1.442695
  %v1019 = vpow.pop %v1018
  %v1020 = vadd.f32 %v1019, 1.0
  %v1021 = vrcp.pop %v1020
  %v1022 = vmul.f32 %v1020, %v1021
  %v1023 = vsub.f32 1.0, %v1022
  %v1024 = vmul.f32 %v1021, %v1023
  %v1025 = vadd.f32 %v1021, %v1024
  %vm1026 = vweird.f32 %v1020
  %vm1027 = vweird.f32 %v1021
  %vm1028 = vmor %vm1026, %vm1027
  %v1029 = vsel %vm1028, %v1021, %v1025
  %v1030 = vand.u32 2147483647, %v1020
  %vm1031 = vcmp.eq.f32.partialorder %v1030, 8.507059e+37
  %v1032 = vand.u32 %v1020, 2147483648
  %v1033 = vor.u32 1.1754944e-38, %v1032
  %v1034 = vsel %vm1031, %v1033, %v1029
  %v1035 = vmul.f32 1.0, %v1034
  %v1036 = vtanh.pop %v996
  %v1037 = vxor.u32 %v997, 2147483648
  %v1038 = vmul.f32 %v1037, 1.442695
  %v1039 = vpow.pop %v1038
  %v1040 = vadd.f32 %v1039, 1.0
  %v1041 = vrcp.pop %v1040
  %v1042 = vmul.f32 %v1040, %v1041
  %v1043 = vsub.f32 1.0, %v1042
  %v1044 = vmul.f32 %v1041, %v1043
  %v1045 = vadd.f32 %v1041, %v1044
  %vm1046 = vweird.f32 %v1040
  %vm1047 = vweird.f32 %v1041
  %vm1048 = vmor %vm1046, %vm1047
  %v1049 = vsel %vm1048, %v1041, %v1045
  %v1050 = vand.u32 2147483647, %v1040
  %vm1051 = vcmp.eq.f32.partialorder %v1050, 8.507059e+37
  %v1052 = vand.u32 %v1040, 2147483648
  %v1053 = vor.u32 1.1754944e-38, %v1052
  %v1054 = vsel %vm1051, %v1053, %v1049
  %v1055 = vmul.f32 1.0, %v1054
  %v1056 = vmul.f32 %v1035, %v911
  %v1057 = vmul.f32 %v1016, %v1036
  %v1058 = vadd.f32 %v1056, %v1057
  %v1059 = vtanh.pop %v1058
  %v1060 = vmul.f32 %v1055, %v1059
  %1061 = vmatpush.msra.mxu0 %v322
  %1062 = vmatpush.msra.mxu0 %v318
  %1063 = vmatpush.msra.mxu0 %v314
  %1064 = vmatpush.msra.mxu0 %v310
  %1065 = vmatpush.msra.mxu0 %v306
  %1066 = vmatpush.msra.mxu0 %v302
  %1067 = vmatpush.msra.mxu0 %v298
  %1068 = vmatpush.msra.mxu0 %v294
  %1069 = vmatpush.msra.mxu0 %v290
  %1070 = vmatpush.msra.mxu0 %v286
  %1071 = vmatpush.msra.mxu0 %v282
  %1072 = vmatpush.msra.mxu0 %v278
  %1073 = vmatpush.msra.mxu0 %v274
  %1074 = vmatpush.msra.mxu0 %v270
  %1075 = vmatpush.msra.mxu0 %v266
  %1076 = vmatpush.msra.mxu0 %v262
  %1077 = vmatmul.f32.gmra.mxu0 %v1060
  %v1078 = vpop.f32.mrf.mxu0
  %v1079 = vadd.f32 0.0, %v1078
  %1080 = vdwg.mxu0
  %1081 = vmatpush.msra.mxu0 %v323
  %1082 = vmatpush.msra.mxu0 %v319
  %1083 = vmatpush.msra.mxu0 %v315
  %1084 = vmatpush.msra.mxu0 %v311
  %1085 = vmatpush.msra.mxu0 %v307
  %1086 = vmatpush.msra.mxu0 %v303
  %1087 = vmatpush.msra.mxu0 %v299
  %1088 = vmatpush.msra.mxu0 %v295
  %1089 = vmatpush.msra.mxu0 %v291
  %1090 = vmatpush.msra.mxu0 %v287
  %1091 = vmatpush.msra.mxu0 %v283
  %1092 = vmatpush.msra.mxu0 %v279
  %1093 = vmatpush.msra.mxu0 %v275
  %1094 = vmatpush.msra.mxu0 %v271
  %1095 = vmatpush.msra.mxu0 %v267
  %1096 = vmatpush.msra.mxu0 %v263
  %1097 = vmatmul.f32.gmra.mxu0 %v1060
  %v1098 = vpop.f32.mrf.mxu0
  %v1099 = vadd.f32 0.0, %v1098
  %1100 = vdwg.mxu0
  %1101 = vmatpush.msra.mxu0 %v324
  %1102 = vmatpush.msra.mxu0 %v320
  %1103 = vmatpush.msra.mxu0 %v316
  %1104 = vmatpush.msra.mxu0 %v312
  %1105 = vmatpush.msra.mxu0 %v308
  %1106 = vmatpush.msra.mxu0 %v304
  %1107 = vmatpush.msra.mxu0 %v300
  %1108 = vmatpush.msra.mxu0 %v296
  %1109 = vmatpush.msra.mxu0 %v292
  %1110 = vmatpush.msra.mxu0 %v288
  %1111 = vmatpush.msra.mxu0 %v284
  %1112 = vmatpush.msra.mxu0 %v280
  %1113 = vmatpush.msra.mxu0 %v276
  %1114 = vmatpush.msra.mxu0 %v272
  %1115 = vmatpush.msra.mxu0 %v268
  %1116 = vmatpush.msra.mxu0 %v264
  %1117 = vmatmul.f32.gmra.mxu0 %v1060
  %v1118 = vpop.f32.mrf.mxu0
  %v1119 = vadd.f32 0.0, %v1118
  %1120 = vdwg.mxu0
  %1121 = vmatpush.msra.mxu0 %v325
  %1122 = vmatpush.msra.mxu0 %v321
  %1123 = vmatpush.msra.mxu0 %v317
  %1124 = vmatpush.msra.mxu0 %v313
  %1125 = vmatpush.msra.mxu0 %v309
  %1126 = vmatpush.msra.mxu0 %v305
  %1127 = vmatpush.msra.mxu0 %v301
  %1128 = vmatpush.msra.mxu0 %v297
  %1129 = vmatpush.msra.mxu0 %v293
  %1130 = vmatpush.msra.mxu0 %v289
  %1131 = vmatpush.msra.mxu0 %v285
  %1132 = vmatpush.msra.mxu0 %v281
  %1133 = vmatpush.msra.mxu0 %v277
  %1134 = vmatpush.msra.mxu0 %v273
  %1135 = vmatpush.msra.mxu0 %v269
  %1136 = vmatpush.msra.mxu0 %v265
  %1137 = vmatmul.f32.gmra.mxu0 %v1060
  %v1138 = vpop.f32.mrf.mxu0
  %v1139 = vadd.f32 0.0, %v1138
  %1140 = vdwg.mxu0
  %v1141 = vadd.f32 %v131, %v1079
  %v1142 = vadd.f32 %v172, %v1099
  %v1143 = vadd.f32 %v213, %v1119
  %v1144 = vadd.f32 %v254, %v1139
  %v1145 = vxor.u32 %v1141, 2147483648
  %v1146 = vmul.f32 %v1145, 1.442695
  %v1147 = vpow.pop %v1146
  %v1148 = vadd.f32 %v1147, 1.0
  %v1149 = vrcp.pop %v1148
  %v1150 = vmul.f32 %v1148, %v1149
  %v1151 = vsub.f32 1.0, %v1150
  %v1152 = vmul.f32 %v1149, %v1151
  %v1153 = vadd.f32 %v1149, %v1152
  %vm1154 = vweird.f32 %v1148
  %vm1155 = vweird.f32 %v1149
  %vm1156 = vmor %vm1154, %vm1155
  %v1157 = vsel %vm1156, %v1149, %v1153
  %v1158 = vand.u32 2147483647, %v1148
  %vm1159 = vcmp.eq.f32.partialorder %v1158, 8.507059e+37
  %v1160 = vand.u32 %v1148, 2147483648
  %v1161 = vor.u32 1.1754944e-38, %v1160
  %v1162 = vsel %vm1159, %v1161, %v1157
  %v1163 = vmul.f32 1.0, %v1162
  %v1164 = vxor.u32 %v1142, 2147483648
  %v1165 = vmul.f32 %v1164, 1.442695
  %v1166 = vpow.pop %v1165
  %v1167 = vadd.f32 %v1166, 1.0
  %v1168 = vrcp.pop %v1167
  %v1169 = vmul.f32 %v1167, %v1168
  %v1170 = vsub.f32 1.0, %v1169
  %v1171 = vmul.f32 %v1168, %v1170
  %v1172 = vadd.f32 %v1168, %v1171
  %vm1173 = vweird.f32 %v1167
  %vm1174 = vweird.f32 %v1168
  %vm1175 = vmor %vm1173, %vm1174
  %v1176 = vsel %vm1175, %v1168, %v1172
  %v1177 = vand.u32 2147483647, %v1167
  %vm1178 = vcmp.eq.f32.partialorder %v1177, 8.507059e+37
  %v1179 = vand.u32 %v1167, 2147483648
  %v1180 = vor.u32 1.1754944e-38, %v1179
  %v1181 = vsel %vm1178, %v1180, %v1176
  %v1182 = vmul.f32 1.0, %v1181
  %v1183 = vtanh.pop %v1143
  %v1184 = vxor.u32 %v1144, 2147483648
  %v1185 = vmul.f32 %v1184, 1.442695
  %v1186 = vpow.pop %v1185
  %v1187 = vadd.f32 %v1186, 1.0
  %v1188 = vrcp.pop %v1187
  %v1189 = vmul.f32 %v1187, %v1188
  %v1190 = vsub.f32 1.0, %v1189
  %v1191 = vmul.f32 %v1188, %v1190
  %v1192 = vadd.f32 %v1188, %v1191
  %vm1193 = vweird.f32 %v1187
  %vm1194 = vweird.f32 %v1188
  %vm1195 = vmor %vm1193, %vm1194
  %v1196 = vsel %vm1195, %v1188, %v1192
  %v1197 = vand.u32 2147483647, %v1187
  %vm1198 = vcmp.eq.f32.partialorder %v1197, 8.507059e+37
  %v1199 = vand.u32 %v1187, 2147483648
  %v1200 = vor.u32 1.1754944e-38, %v1199
  %v1201 = vsel %vm1198, %v1200, %v1196
  %v1202 = vmul.f32 1.0, %v1201
  %v1203 = vmul.f32 %v1182, %v1058
  %v1204 = vmul.f32 %v1163, %v1183
  %v1205 = vadd.f32 %v1203, %v1204
  %v1206 = vtanh.pop %v1205
  %v1207 = vmul.f32 %v1202, %v1206
  %1208 = vmatpush.msra.mxu0 %v322
  %1209 = vmatpush.msra.mxu0 %v318
  %1210 = vmatpush.msra.mxu0 %v314
  %1211 = vmatpush.msra.mxu0 %v310
  %1212 = vmatpush.msra.mxu0 %v306
  %1213 = vmatpush.msra.mxu0 %v302
  %1214 = vmatpush.msra.mxu0 %v298
  %1215 = vmatpush.msra.mxu0 %v294
  %1216 = vmatpush.msra.mxu0 %v290
  %1217 = vmatpush.msra.mxu0 %v286
  %1218 = vmatpush.msra.mxu0 %v282
  %1219 = vmatpush.msra.mxu0 %v278
  %1220 = vmatpush.msra.mxu0 %v274
  %1221 = vmatpush.msra.mxu0 %v270
  %1222 = vmatpush.msra.mxu0 %v266
  %1223 = vmatpush.msra.mxu0 %v262
  %1224 = vmatmul.f32.gmra.mxu0 %v1207
  %v1225 = vpop.f32.mrf.mxu0
  %v1226 = vadd.f32 0.0, %v1225
  %1227 = vdwg.mxu0
  %1228 = vmatpush.msra.mxu0 %v323
  %1229 = vmatpush.msra.mxu0 %v319
  %1230 = vmatpush.msra.mxu0 %v315
  %1231 = vmatpush.msra.mxu0 %v311
  %1232 = vmatpush.msra.mxu0 %v307
  %1233 = vmatpush.msra.mxu0 %v303
  %1234 = vmatpush.msra.mxu0 %v299
  %1235 = vmatpush.msra.mxu0 %v295
  %1236 = vmatpush.msra.mxu0 %v291
  %1237 = vmatpush.msra.mxu0 %v287
  %1238 = vmatpush.msra.mxu0 %v283
  %1239 = vmatpush.msra.mxu0 %v279
  %1240 = vmatpush.msra.mxu0 %v275
  %1241 = vmatpush.msra.mxu0 %v271
  %1242 = vmatpush.msra.mxu0 %v267
  %1243 = vmatpush.msra.mxu0 %v263
  %1244 = vmatmul.f32.gmra.mxu0 %v1207
  %v1245 = vpop.f32.mrf.mxu0
  %v1246 = vadd.f32 0.0, %v1245
  %1247 = vdwg.mxu0
  %1248 = vmatpush.msra.mxu0 %v324
  %1249 = vmatpush.msra.mxu0 %v320
  %1250 = vmatpush.msra.mxu0 %v316
  %1251 = vmatpush.msra.mxu0 %v312
  %1252 = vmatpush.msra.mxu0 %v308
  %1253 = vmatpush.msra.mxu0 %v304
  %1254 = vmatpush.msra.mxu0 %v300
  %1255 = vmatpush.msra.mxu0 %v296
  %1256 = vmatpush.msra.mxu0 %v292
  %1257 = vmatpush.msra.mxu0 %v288
  %1258 = vmatpush.msra.mxu0 %v284
  %1259 = vmatpush.msra.mxu0 %v280
  %1260 = vmatpush.msra.mxu0 %v276
  %1261 = vmatpush.msra.mxu0 %v272
  %1262 = vmatpush.msra.mxu0 %v268
  %1263 = vmatpush.msra.mxu0 %v264
  %1264 = vmatmul.f32.gmra.mxu0 %v1207
  %v1265 = vpop.f32.mrf.mxu0
  %v1266 = vadd.f32 0.0, %v1265
  %1267 = vdwg.mxu0
  %1268 = vmatpush.msra.mxu0 %v325
  %1269 = vmatpush.msra.mxu0 %v321
  %1270 = vmatpush.msra.mxu0 %v317
  %1271 = vmatpush.msra.mxu0 %v313
  %1272 = vmatpush.msra.mxu0 %v309
  %1273 = vmatpush.msra.mxu0 %v305
  %1274 = vmatpush.msra.mxu0 %v301
  %1275 = vmatpush.msra.mxu0 %v297
  %1276 = vmatpush.msra.mxu0 %v293
  %1277 = vmatpush.msra.mxu0 %v289
  %1278 = vmatpush.msra.mxu0 %v285
  %1279 = vmatpush.msra.mxu0 %v281
  %1280 = vmatpush.msra.mxu0 %v277
  %1281 = vmatpush.msra.mxu0 %v273
  %1282 = vmatpush.msra.mxu0 %v269
  %1283 = vmatpush.msra.mxu0 %v265
  %1284 = vmatmul.f32.gmra.mxu0 %v1207
  %v1285 = vpop.f32.mrf.mxu0
  %v1286 = vadd.f32 0.0, %v1285
  %1287 = vdwg.mxu0
  %v1288 = vadd.f32 %v134, %v1226
  %v1289 = vadd.f32 %v175, %v1246
  %v1290 = vadd.f32 %v216, %v1266
  %v1291 = vadd.f32 %v257, %v1286
  %v1292 = vxor.u32 %v1288, 2147483648
  %v1293 = vmul.f32 %v1292, 1.442695
  %v1294 = vpow.pop %v1293
  %v1295 = vadd.f32 %v1294, 1.0
  %v1296 = vrcp.pop %v1295
  %v1297 = vmul.f32 %v1295, %v1296
  %v1298 = vsub.f32 1.0, %v1297
  %v1299 = vmul.f32 %v1296, %v1298
  %v1300 = vadd.f32 %v1296, %v1299
  %vm1301 = vweird.f32 %v1295
  %vm1302 = vweird.f32 %v1296
  %vm1303 = vmor %vm1301, %vm1302
  %v1304 = vsel %vm1303, %v1296, %v1300
  %v1305 = vand.u32 2147483647, %v1295
  %vm1306 = vcmp.eq.f32.partialorder %v1305, 8.507059e+37
  %v1307 = vand.u32 %v1295, 2147483648
  %v1308 = vor.u32 1.1754944e-38, %v1307
  %v1309 = vsel %vm1306, %v1308, %v1304
  %v1310 = vmul.f32 1.0, %v1309
  %v1311 = vxor.u32 %v1289, 2147483648
  %v1312 = vmul.f32 %v1311, 1.442695
  %v1313 = vpow.pop %v1312
  %v1314 = vadd.f32 %v1313, 1.0
  %v1315 = vrcp.pop %v1314
  %v1316 = vmul.f32 %v1314, %v1315
  %v1317 = vsub.f32 1.0, %v1316
  %v1318 = vmul.f32 %v1315, %v1317
  %v1319 = vadd.f32 %v1315, %v1318
  %vm1320 = vweird.f32 %v1314
  %vm1321 = vweird.f32 %v1315
  %vm1322 = vmor %vm1320, %vm1321
  %v1323 = vsel %vm1322, %v1315, %v1319
  %v1324 = vand.u32 2147483647, %v1314
  %vm1325 = vcmp.eq.f32.partialorder %v1324, 8.507059e+37
  %v1326 = vand.u32 %v1314, 2147483648
  %v1327 = vor.u32 1.1754944e-38, %v1326
  %v1328 = vsel %vm1325, %v1327, %v1323
  %v1329 = vmul.f32 1.0, %v1328
  %v1330 = vtanh.pop %v1290
  %v1331 = vxor.u32 %v1291, 2147483648
  %v1332 = vmul.f32 %v1331, 1.442695
  %v1333 = vpow.pop %v1332
  %v1334 = vadd.f32 %v1333, 1.0
  %v1335 = vrcp.pop %v1334
  %v1336 = vmul.f32 %v1334, %v1335
  %v1337 = vsub.f32 1.0, %v1336
  %v1338 = vmul.f32 %v1335, %v1337
  %v1339 = vadd.f32 %v1335, %v1338
  %vm1340 = vweird.f32 %v1334
  %vm1341 = vweird.f32 %v1335
  %vm1342 = vmor %vm1340, %vm1341
  %v1343 = vsel %vm1342, %v1335, %v1339
  %v1344 = vand.u32 2147483647, %v1334
  %vm1345 = vcmp.eq.f32.partialorder %v1344, 8.507059e+37
  %v1346 = vand.u32 %v1334, 2147483648
  %v1347 = vor.u32 1.1754944e-38, %v1346
  %v1348 = vsel %vm1345, %v1347, %v1343
  %v1349 = vmul.f32 1.0, %v1348
  %v1350 = vmul.f32 %v1329, %v1205
  %v1351 = vmul.f32 %v1310, %v1330
  %v1352 = vadd.f32 %v1350, %v1351
  %v1353 = vtanh.pop %v1352
  %v1354 = vmul.f32 %v1349, %v1353
  %1355 = vmatpush.msra.mxu0 %v322
  %1356 = vmatpush.msra.mxu0 %v318
  %1357 = vmatpush.msra.mxu0 %v314
  %1358 = vmatpush.msra.mxu0 %v310
  %1359 = vmatpush.msra.mxu0 %v306
  %1360 = vmatpush.msra.mxu0 %v302
  %1361 = vmatpush.msra.mxu0 %v298
  %1362 = vmatpush.msra.mxu0 %v294
  %1363 = vmatpush.msra.mxu0 %v290
  %1364 = vmatpush.msra.mxu0 %v286
  %1365 = vmatpush.msra.mxu0 %v282
  %1366 = vmatpush.msra.mxu0 %v278
  %1367 = vmatpush.msra.mxu0 %v274
  %1368 = vmatpush.msra.mxu0 %v270
  %1369 = vmatpush.msra.mxu0 %v266
  %1370 = vmatpush.msra.mxu0 %v262
  %1371 = vmatmul.f32.gmra.mxu0 %v1354
  %v1372 = vpop.f32.mrf.mxu0
  %v1373 = vadd.f32 0.0, %v1372
  %1374 = vdwg.mxu0
  %1375 = vmatpush.msra.mxu0 %v323
  %1376 = vmatpush.msra.mxu0 %v319
  %1377 = vmatpush.msra.mxu0 %v315
  %1378 = vmatpush.msra.mxu0 %v311
  %1379 = vmatpush.msra.mxu0 %v307
  %1380 = vmatpush.msra.mxu0 %v303
  %1381 = vmatpush.msra.mxu0 %v299
  %1382 = vmatpush.msra.mxu0 %v295
  %1383 = vmatpush.msra.mxu0 %v291
  %1384 = vmatpush.msra.mxu0 %v287
  %1385 = vmatpush.msra.mxu0 %v283
  %1386 = vmatpush.msra.mxu0 %v279
  %1387 = vmatpush.msra.mxu0 %v275
  %1388 = vmatpush.msra.mxu0 %v271
  %1389 = vmatpush.msra.mxu0 %v267
  %1390 = vmatpush.msra.mxu0 %v263
  %1391 = vmatmul.f32.gmra.mxu0 %v1354
  %v1392 = vpop.f32.mrf.mxu0
  %v1393 = vadd.f32 0.0, %v1392
  %1394 = vdwg.mxu0
  %1395 = vmatpush.msra.mxu0 %v324
  %1396 = vmatpush.msra.mxu0 %v320
  %1397 = vmatpush.msra.mxu0 %v316
  %1398 = vmatpush.msra.mxu0 %v312
  %1399 = vmatpush.msra.mxu0 %v308
  %1400 = vmatpush.msra.mxu0 %v304
  %1401 = vmatpush.msra.mxu0 %v300
  %1402 = vmatpush.msra.mxu0 %v296
  %1403 = vmatpush.msra.mxu0 %v292
  %1404 = vmatpush.msra.mxu0 %v288
  %1405 = vmatpush.msra.mxu0 %v284
  %1406 = vmatpush.msra.mxu0 %v280
  %1407 = vmatpush.msra.mxu0 %v276
  %1408 = vmatpush.msra.mxu0 %v272
  %1409 = vmatpush.msra.mxu0 %v268
  %1410 = vmatpush.msra.mxu0 %v264
  %1411 = vmatmul.f32.gmra.mxu0 %v1354
  %v1412 = vpop.f32.mrf.mxu0
  %v1413 = vadd.f32 0.0, %v1412
  %1414 = vdwg.mxu0
  %1415 = vmatpush.msra.mxu0 %v325
  %1416 = vmatpush.msra.mxu0 %v321
  %1417 = vmatpush.msra.mxu0 %v317
  %1418 = vmatpush.msra.mxu0 %v313
  %1419 = vmatpush.msra.mxu0 %v309
  %1420 = vmatpush.msra.mxu0 %v305
  %1421 = vmatpush.msra.mxu0 %v301
  %1422 = vmatpush.msra.mxu0 %v297
  %1423 = vmatpush.msra.mxu0 %v293
  %1424 = vmatpush.msra.mxu0 %v289
  %1425 = vmatpush.msra.mxu0 %v285
  %1426 = vmatpush.msra.mxu0 %v281
  %1427 = vmatpush.msra.mxu0 %v277
  %1428 = vmatpush.msra.mxu0 %v273
  %1429 = vmatpush.msra.mxu0 %v269
  %1430 = vmatpush.msra.mxu0 %v265
  %1431 = vmatmul.f32.gmra.mxu0 %v1354
  %v1432 = vpop.f32.mrf.mxu0
  %v1433 = vadd.f32 0.0, %v1432
  %1434 = vdwg.mxu0
  %v1435 = vadd.f32 %v137, %v1373
  %v1436 = vadd.f32 %v178, %v1393
  %v1437 = vadd.f32 %v219, %v1413
  %v1438 = vadd.f32 %v260, %v1433
  %v1439 = vxor.u32 %v1435, 2147483648
  %v1440 = vmul.f32 %v1439, 1.442695
  %v1441 = vpow.pop %v1440
  %v1442 = vadd.f32 %v1441, 1.0
  %v1443 = vrcp.pop %v1442
  %v1444 = vmul.f32 %v1442, %v1443
  %v1445 = vsub.f32 1.0, %v1444
  %v1446 = vmul.f32 %v1443, %v1445
  %v1447 = vadd.f32 %v1443, %v1446
  %vm1448 = vweird.f32 %v1442
  %vm1449 = vweird.f32 %v1443
  %vm1450 = vmor %vm1448, %vm1449
  %v1451 = vsel %vm1450, %v1443, %v1447
  %v1452 = vand.u32 2147483647, %v1442
  %vm1453 = vcmp.eq.f32.partialorder %v1452, 8.507059e+37
  %v1454 = vand.u32 %v1442, 2147483648
  %v1455 = vor.u32 1.1754944e-38, %v1454
  %v1456 = vsel %vm1453, %v1455, %v1451
  %v1457 = vmul.f32 1.0, %v1456
  %v1458 = vxor.u32 %v1436, 2147483648
  %v1459 = vmul.f32 %v1458, 1.442695
  %v1460 = vpow.pop %v1459
  %v1461 = vadd.f32 %v1460, 1.0
  %v1462 = vrcp.pop %v1461
  %v1463 = vmul.f32 %v1461, %v1462
  %v1464 = vsub.f32 1.0, %v1463
  %v1465 = vmul.f32 %v1462, %v1464
  %v1466 = vadd.f32 %v1462, %v1465
  %vm1467 = vweird.f32 %v1461
  %vm1468 = vweird.f32 %v1462
  %vm1469 = vmor %vm1467, %vm1468
  %v1470 = vsel %vm1469, %v1462, %v1466
  %v1471 = vand.u32 2147483647, %v1461
  %vm1472 = vcmp.eq.f32.partialorder %v1471, 8.507059e+37
  %v1473 = vand.u32 %v1461, 2147483648
  %v1474 = vor.u32 1.1754944e-38, %v1473
  %v1475 = vsel %vm1472, %v1474, %v1470
  %v1476 = vmul.f32 1.0, %v1475
  %v1477 = vtanh.pop %v1437
  %v1478 = vxor.u32 %v1438, 2147483648
  %v1479 = vmul.f32 %v1478, 1.442695
  %v1480 = vpow.pop %v1479
  %v1481 = vadd.f32 %v1480, 1.0
  %v1482 = vrcp.pop %v1481
  %v1483 = vmul.f32 %v1481, %v1482
  %v1484 = vsub.f32 1.0, %v1483
  %v1485 = vmul.f32 %v1482, %v1484
  %v1486 = vadd.f32 %v1482, %v1485
  %vm1487 = vweird.f32 %v1481
  %vm1488 = vweird.f32 %v1482
  %vm1489 = vmor %vm1487, %vm1488
  %v1490 = vsel %vm1489, %v1482, %v1486
  %v1491 = vand.u32 2147483647, %v1481
  %vm1492 = vcmp.eq.f32.partialorder %v1491, 8.507059e+37
  %v1493 = vand.u32 %v1481, 2147483648
  %v1494 = vor.u32 1.1754944e-38, %v1493
  %v1495 = vsel %vm1492, %v1494, %v1490
  %v1496 = vmul.f32 1.0, %v1495
  %v1497 = vmul.f32 %v1476, %v1352
  %v1498 = vmul.f32 %v1457, %v1477
  %v1499 = vadd.f32 %v1497, %v1498
  %v1500 = vtanh.pop %v1499
  %v1501 = vmul.f32 %v1496, %v1500
  %v1502 = vld [vmem:[%s4] sm:$0xff]
  %v1503 = vld [vmem:[%s4 + $0x8] sm:$0xff]
  %v1504 = vld [vmem:[%s4 + $0x10] sm:$0xff]
  %v1505 = vld [vmem:[%s4 + $0x18] sm:$0xff]
  %v1506 = vld [vmem:[%s4 + $0x20] sm:$0xff]
  %v1507 = vld [vmem:[%s4 + $0x28] sm:$0xff]
  %v1508 = vld [vmem:[%s4 + $0x30] sm:$0xff]
  %v1509 = vld [vmem:[%s4 + $0x38] sm:$0xff]
  %v1510 = vld [vmem:[%s4 + $0x40] sm:$0xff]
  %v1511 = vld [vmem:[%s4 + $0x48] sm:$0xff]
  %v1512 = vld [vmem:[%s4 + $0x50] sm:$0xff]
  %v1513 = vld [vmem:[%s4 + $0x58] sm:$0xff]
  %v1514 = vld [vmem:[%s4 + $0x60] sm:$0xff]
  %v1515 = vld [vmem:[%s4 + $0x68] sm:$0xff]
  %v1516 = vld [vmem:[%s4 + $0x70] sm:$0xff]
  %v1517 = vld [vmem:[%s4 + $0x78] sm:$0xff]
  %v1518 = vld [vmem:[%s4 + $0x80] sm:$0xff]
  %v1519 = vld [vmem:[%s4 + $0x88] sm:$0xff]
  %v1520 = vld [vmem:[%s4 + $0x90] sm:$0xff]
  %v1521 = vld [vmem:[%s4 + $0x98] sm:$0xff]
  %v1522 = vld [vmem:[%s4 + $0xa0] sm:$0xff]
  %v1523 = vld [vmem:[%s4 + $0xa8] sm:$0xff]
  %v1524 = vld [vmem:[%s4 + $0xb0] sm:$0xff]
  %v1525 = vld [vmem:[%s4 + $0xb8] sm:$0xff]
  %v1526 = vld [vmem:[%s4 + $0xc0] sm:$0xff]
  %v1527 = vld [vmem:[%s4 + $0xc8] sm:$0xff]
  %v1528 = vld [vmem:[%s4 + $0xd0] sm:$0xff]
  %v1529 = vld [vmem:[%s4 + $0xd8] sm:$0xff]
  %v1530 = vld [vmem:[%s4 + $0xe0] sm:$0xff]
  %v1531 = vld [vmem:[%s4 + $0xe8] sm:$0xff]
  %v1532 = vld [vmem:[%s4 + $0xf0] sm:$0xff]
  %v1533 = vld [vmem:[%s4 + $0xf8] sm:$0xff]
  %v1534 = vld [vmem:[%s4 + $0x100] sm:$0xff]
  %v1535 = vld [vmem:[%s4 + $0x108] sm:$0xff]
  %v1536 = vld [vmem:[%s4 + $0x110] sm:$0xff]
  %v1537 = vld [vmem:[%s4 + $0x118] sm:$0xff]
  %v1538 = vld [vmem:[%s4 + $0x120] sm:$0xff]
  %v1539 = vld [vmem:[%s4 + $0x128] sm:$0xff]
  %v1540 = vld [vmem:[%s4 + $0x130] sm:$0xff]
  %v1541 = vld [vmem:[%s4 + $0x138] sm:$0xff]
  %v1542 = vld [vmem:[%s4 + $0x140] sm:$0xff]
  %v1543 = vld [vmem:[%s4 + $0x148] sm:$0xff]
  %v1544 = vld [vmem:[%s4 + $0x150] sm:$0xff]
  %v1545 = vld [vmem:[%s4 + $0x158] sm:$0xff]
  %v1546 = vld [vmem:[%s4 + $0x160] sm:$0xff]
  %v1547 = vld [vmem:[%s4 + $0x168] sm:$0xff]
  %v1548 = vld [vmem:[%s4 + $0x170] sm:$0xff]
  %v1549 = vld [vmem:[%s4 + $0x178] sm:$0xff]
  %v1550 = vld [vmem:[%s4 + $0x180] sm:$0xff]
  %v1551 = vld [vmem:[%s4 + $0x188] sm:$0xff]
  %v1552 = vld [vmem:[%s4 + $0x190] sm:$0xff]
  %v1553 = vld [vmem:[%s4 + $0x198] sm:$0xff]
  %v1554 = vld [vmem:[%s4 + $0x1a0] sm:$0xff]
  %v1555 = vld [vmem:[%s4 + $0x1a8] sm:$0xff]
  %v1556 = vld [vmem:[%s4 + $0x1b0] sm:$0xff]
  %v1557 = vld [vmem:[%s4 + $0x1b8] sm:$0xff]
  %v1558 = vld [vmem:[%s4 + $0x1c0] sm:$0xff]
  %v1559 = vld [vmem:[%s4 + $0x1c8] sm:$0xff]
  %v1560 = vld [vmem:[%s4 + $0x1d0] sm:$0xff]
  %v1561 = vld [vmem:[%s4 + $0x1d8] sm:$0xff]
  %v1562 = vld [vmem:[%s4 + $0x1e0] sm:$0xff]
  %v1563 = vld [vmem:[%s4 + $0x1e8] sm:$0xff]
  %v1564 = vld [vmem:[%s4 + $0x1f0] sm:$0xff]
  %v1565 = vld [vmem:[%s4 + $0x1f8] sm:$0xff]
  %v1566 = vld [vmem:[%s5] sm:$0xf]
  %v1567 = vld [vmem:[%s6] sm:$0xff]
  %v1568 = vld [vmem:[%s6 + $0x8] sm:$0xff]
  %v1569 = vld [vmem:[%s6 + $0x10] sm:$0xff]
  %v1570 = vld [vmem:[%s6 + $0x18] sm:$0xff]
  %v1571 = vld [vmem:[%s6 + $0x20] sm:$0xff]
  %v1572 = vld [vmem:[%s6 + $0x28] sm:$0xff]
  %v1573 = vld [vmem:[%s6 + $0x30] sm:$0xff]
  %v1574 = vld [vmem:[%s6 + $0x38] sm:$0xff]
  %v1575 = vld [vmem:[%s6 + $0x40] sm:$0xff]
  %v1576 = vld [vmem:[%s6 + $0x48] sm:$0xff]
  %v1577 = vld [vmem:[%s6 + $0x50] sm:$0xff]
  %v1578 = vld [vmem:[%s6 + $0x58] sm:$0xff]
  %v1579 = vld [vmem:[%s6 + $0x60] sm:$0xff]
  %v1580 = vld [vmem:[%s6 + $0x68] sm:$0xff]
  %v1581 = vld [vmem:[%s6 + $0x70] sm:$0xff]
  %v1582 = vld [vmem:[%s6 + $0x78] sm:$0xff]
  %v1583 = vld [vmem:[%s6 + $0x80] sm:$0xff]
  %v1584 = vld [vmem:[%s6 + $0x88] sm:$0xff]
  %v1585 = vld [vmem:[%s6 + $0x90] sm:$0xff]
  %v1586 = vld [vmem:[%s6 + $0x98] sm:$0xff]
  %v1587 = vld [vmem:[%s6 + $0xa0] sm:$0xff]
  %v1588 = vld [vmem:[%s6 + $0xa8] sm:$0xff]
  %v1589 = vld [vmem:[%s6 + $0xb0] sm:$0xff]
  %v1590 = vld [vmem:[%s6 + $0xb8] sm:$0xff]
  %v1591 = vld [vmem:[%s6 + $0xc0] sm:$0xff]
  %v1592 = vld [vmem:[%s6 + $0xc8] sm:$0xff]
  %v1593 = vld [vmem:[%s6 + $0xd0] sm:$0xff]
  %v1594 = vld [vmem:[%s6 + $0xd8] sm:$0xff]
  %v1595 = vld [vmem:[%s6 + $0xe0] sm:$0xff]
  %v1596 = vld [vmem:[%s6 + $0xe8] sm:$0xff]
  %v1597 = vld [vmem:[%s6 + $0xf0] sm:$0xff]
  %v1598 = vld [vmem:[%s6 + $0xf8] sm:$0xff]
  %v1599 = vld [vmem:[%s6 + $0x100] sm:$0xff]
  %v1600 = vld [vmem:[%s6 + $0x108] sm:$0xff]
  %v1601 = vld [vmem:[%s6 + $0x110] sm:$0xff]
  %v1602 = vld [vmem:[%s6 + $0x118] sm:$0xff]
  %v1603 = vld [vmem:[%s6 + $0x120] sm:$0xff]
  %v1604 = vld [vmem:[%s6 + $0x128] sm:$0xff]
  %v1605 = vld [vmem:[%s6 + $0x130] sm:$0xff]
  %v1606 = vld [vmem:[%s6 + $0x138] sm:$0xff]
  %v1607 = vld [vmem:[%s6 + $0x140] sm:$0xff]
  %v1608 = vld [vmem:[%s6 + $0x148] sm:$0xff]
  %v1609 = vld [vmem:[%s6 + $0x150] sm:$0xff]
  %v1610 = vld [vmem:[%s6 + $0x158] sm:$0xff]
  %v1611 = vld [vmem:[%s6 + $0x160] sm:$0xff]
  %v1612 = vld [vmem:[%s6 + $0x168] sm:$0xff]
  %v1613 = vld [vmem:[%s6 + $0x170] sm:$0xff]
  %v1614 = vld [vmem:[%s6 + $0x178] sm:$0xff]
  %v1615 = vld [vmem:[%s6 + $0x180] sm:$0xff]
  %v1616 = vld [vmem:[%s6 + $0x188] sm:$0xff]
  %v1617 = vld [vmem:[%s6 + $0x190] sm:$0xff]
  %v1618 = vld [vmem:[%s6 + $0x198] sm:$0xff]
  %v1619 = vld [vmem:[%s6 + $0x1a0] sm:$0xff]
  %v1620 = vld [vmem:[%s6 + $0x1a8] sm:$0xff]
  %v1621 = vld [vmem:[%s6 + $0x1b0] sm:$0xff]
  %v1622 = vld [vmem:[%s6 + $0x1b8] sm:$0xff]
  %v1623 = vld [vmem:[%s6 + $0x1c0] sm:$0xff]
  %v1624 = vld [vmem:[%s6 + $0x1c8] sm:$0xff]
  %v1625 = vld [vmem:[%s6 + $0x1d0] sm:$0xff]
  %v1626 = vld [vmem:[%s6 + $0x1d8] sm:$0xff]
  %v1627 = vld [vmem:[%s6 + $0x1e0] sm:$0xff]
  %v1628 = vld [vmem:[%s6 + $0x1e8] sm:$0xff]
  %v1629 = vld [vmem:[%s6 + $0x1f0] sm:$0xff]
  %v1630 = vld [vmem:[%s6 + $0x1f8] sm:$0xff]
  %v1631 = vld [vmem:[%s7] sm:$0xf]
  %v1632 = vld [vmem:[%s8] sm:$0xff]
  %v1633 = vld [vmem:[%s8 + $0x8] sm:$0xff]
  %v1634 = vld [vmem:[%s8 + $0x10] sm:$0xff]
  %v1635 = vld [vmem:[%s8 + $0x18] sm:$0xff]
  %v1636 = vld [vmem:[%s8 + $0x20] sm:$0xff]
  %v1637 = vld [vmem:[%s8 + $0x28] sm:$0xff]
  %v1638 = vld [vmem:[%s8 + $0x30] sm:$0xff]
  %v1639 = vld [vmem:[%s8 + $0x38] sm:$0xff]
  %v1640 = vld [vmem:[%s8 + $0x40] sm:$0xff]
  %v1641 = vld [vmem:[%s8 + $0x48] sm:$0xff]
  %v1642 = vld [vmem:[%s8 + $0x50] sm:$0xff]
  %v1643 = vld [vmem:[%s8 + $0x58] sm:$0xff]
  %v1644 = vld [vmem:[%s8 + $0x60] sm:$0xff]
  %v1645 = vld [vmem:[%s8 + $0x68] sm:$0xff]
  %v1646 = vld [vmem:[%s8 + $0x70] sm:$0xff]
  %v1647 = vld [vmem:[%s8 + $0x78] sm:$0xff]
  %v1648 = vld [vmem:[%s9] sm:$0x1]
  %v1650 = vperm.slane %v1566, 0
  %v1651 = vperm.slane %v1566, 1
  %v1652 = vperm.slane %v1566, 2
  %v1653 = vperm.slane %v1566, 3
  %1658 = vmatpush.msra.mxu0 %v1562
  %1659 = vmatpush.msra.mxu0 %v1558
  %1660 = vmatpush.msra.mxu0 %v1554
  %1661 = vmatpush.msra.mxu0 %v1550
  %1662 = vmatpush.msra.mxu0 %v1546
  %1663 = vmatpush.msra.mxu0 %v1542
  %1664 = vmatpush.msra.mxu0 %v1538
  %1665 = vmatpush.msra.mxu0 %v1534
  %1666 = vmatpush.msra.mxu0 %v1530
  %1667 = vmatpush.msra.mxu0 %v1526
  %1668 = vmatpush.msra.mxu0 %v1522
  %1669 = vmatpush.msra.mxu0 %v1518
  %1670 = vmatpush.msra.mxu0 %v1514
  %1671 = vmatpush.msra.mxu0 %v1510
  %1672 = vmatpush.msra.mxu0 %v1506
  %1673 = vmatpush.msra.mxu0 %v1502
  %1674 = vmatmul.f32.gmra.mxu0 %v1501
  %v1675 = vpop.f32.mrf.mxu0
  %v1676 = vadd.f32 %v1650, %v1675
  %1677 = vdwg.mxu0
  %1678 = vmatpush.msra.mxu0 %v1563
  %1679 = vmatpush.msra.mxu0 %v1559
  %1680 = vmatpush.msra.mxu0 %v1555
  %1681 = vmatpush.msra.mxu0 %v1551
  %1682 = vmatpush.msra.mxu0 %v1547
  %1683 = vmatpush.msra.mxu0 %v1543
  %1684 = vmatpush.msra.mxu0 %v1539
  %1685 = vmatpush.msra.mxu0 %v1535
  %1686 = vmatpush.msra.mxu0 %v1531
  %1687 = vmatpush.msra.mxu0 %v1527
  %1688 = vmatpush.msra.mxu0 %v1523
  %1689 = vmatpush.msra.mxu0 %v1519
  %1690 = vmatpush.msra.mxu0 %v1515
  %1691 = vmatpush.msra.mxu0 %v1511
  %1692 = vmatpush.msra.mxu0 %v1507
  %1693 = vmatpush.msra.mxu0 %v1503
  %1694 = vmatmul.f32.gmra.mxu0 %v1501
  %v1695 = vpop.f32.mrf.mxu0
  %v1696 = vadd.f32 %v1651, %v1695
  %1697 = vdwg.mxu0
  %1698 = vmatpush.msra.mxu0 %v1564
  %1699 = vmatpush.msra.mxu0 %v1560
  %1700 = vmatpush.msra.mxu0 %v1556
  %1701 = vmatpush.msra.mxu0 %v1552
  %1702 = vmatpush.msra.mxu0 %v1548
  %1703 = vmatpush.msra.mxu0 %v1544
  %1704 = vmatpush.msra.mxu0 %v1540
  %1705 = vmatpush.msra.mxu0 %v1536
  %1706 = vmatpush.msra.mxu0 %v1532
  %1707 = vmatpush.msra.mxu0 %v1528
  %1708 = vmatpush.msra.mxu0 %v1524
  %1709 = vmatpush.msra.mxu0 %v1520
  %1710 = vmatpush.msra.mxu0 %v1516
  %1711 = vmatpush.msra.mxu0 %v1512
  %1712 = vmatpush.msra.mxu0 %v1508
  %1713 = vmatpush.msra.mxu0 %v1504
  %1714 = vmatmul.f32.gmra.mxu0 %v1501
  %v1715 = vpop.f32.mrf.mxu0
  %v1716 = vadd.f32 %v1652, %v1715
  %1717 = vdwg.mxu0
  %1718 = vmatpush.msra.mxu0 %v1565
  %1719 = vmatpush.msra.mxu0 %v1561
  %1720 = vmatpush.msra.mxu0 %v1557
  %1721 = vmatpush.msra.mxu0 %v1553
  %1722 = vmatpush.msra.mxu0 %v1549
  %1723 = vmatpush.msra.mxu0 %v1545
  %1724 = vmatpush.msra.mxu0 %v1541
  %1725 = vmatpush.msra.mxu0 %v1537
  %1726 = vmatpush.msra.mxu0 %v1533
  %1727 = vmatpush.msra.mxu0 %v1529
  %1728 = vmatpush.msra.mxu0 %v1525
  %1729 = vmatpush.msra.mxu0 %v1521
  %1730 = vmatpush.msra.mxu0 %v1517
  %1731 = vmatpush.msra.mxu0 %v1513
  %1732 = vmatpush.msra.mxu0 %v1509
  %1733 = vmatpush.msra.mxu0 %v1505
  %1734 = vmatmul.f32.gmra.mxu0 %v1501
  %v1735 = vpop.f32.mrf.mxu0
  %v1736 = vadd.f32 %v1653, %v1735
  %1737 = vdwg.mxu0
  %v1738 = vxor.u32 %v1676, 2147483648
  %v1739 = vmul.f32 %v1738, 1.442695
  %v1740 = vpow.pop %v1739
  %v1741 = vadd.f32 %v1740, 1.0
  %v1742 = vrcp.pop %v1741
  %v1743 = vmul.f32 %v1741, %v1742
  %v1744 = vsub.f32 1.0, %v1743
  %v1745 = vmul.f32 %v1742, %v1744
  %v1746 = vadd.f32 %v1742, %v1745
  %vm1747 = vweird.f32 %v1741
  %vm1748 = vweird.f32 %v1742
  %vm1749 = vmor %vm1747, %vm1748
  %v1750 = vsel %vm1749, %v1742, %v1746
  %v1751 = vand.u32 2147483647, %v1741
  %vm1752 = vcmp.eq.f32.partialorder %v1751, 8.507059e+37
  %v1753 = vand.u32 %v1741, 2147483648
  %v1754 = vor.u32 1.1754944e-38, %v1753
  %v1755 = vsel %vm1752, %v1754, %v1750
  %v1756 = vmul.f32 1.0, %v1755
  %v1757 = vxor.u32 %v1696, 2147483648
  %v1758 = vmul.f32 %v1757, 1.442695
  %v1759 = vpow.pop %v1758
  %v1760 = vadd.f32 %v1759, 1.0
  %v1761 = vrcp.pop %v1760
  %v1762 = vmul.f32 %v1760, %v1761
  %v1763 = vsub.f32 1.0, %v1762
  %v1764 = vmul.f32 %v1761, %v1763
  %v1765 = vadd.f32 %v1761, %v1764
  %vm1766 = vweird.f32 %v1760
  %vm1767 = vweird.f32 %v1761
  %vm1768 = vmor %vm1766, %vm1767
  %v1769 = vsel %vm1768, %v1761, %v1765
  %v1770 = vand.u32 2147483647, %v1760
  %vm1771 = vcmp.eq.f32.partialorder %v1770, 8.507059e+37
  %v1772 = vand.u32 %v1760, 2147483648
  %v1773 = vor.u32 1.1754944e-38, %v1772
  %v1774 = vsel %vm1771, %v1773, %v1769
  %v1775 = vmul.f32 1.0, %v1774
  %v1776 = vtanh.pop %v1716
  %v1777 = vxor.u32 %v1736, 2147483648
  %v1778 = vmul.f32 %v1777, 1.442695
  %v1779 = vpow.pop %v1778
  %v1780 = vadd.f32 %v1779, 1.0
  %v1781 = vrcp.pop %v1780
  %v1782 = vmul.f32 %v1780, %v1781
  %v1783 = vsub.f32 1.0, %v1782
  %v1784 = vmul.f32 %v1781, %v1783
  %v1785 = vadd.f32 %v1781, %v1784
  %vm1786 = vweird.f32 %v1780
  %vm1787 = vweird.f32 %v1781
  %vm1788 = vmor %vm1786, %vm1787
  %v1789 = vsel %vm1788, %v1781, %v1785
  %v1790 = vand.u32 2147483647, %v1780
  %vm1791 = vcmp.eq.f32.partialorder %v1790, 8.507059e+37
  %v1792 = vand.u32 %v1780, 2147483648
  %v1793 = vor.u32 1.1754944e-38, %v1792
  %v1794 = vsel %vm1791, %v1793, %v1789
  %v1795 = vmul.f32 1.0, %v1794
  %v1796 = vmul.f32 %v1775, %v1499
  %v1797 = vmul.f32 %v1756, %v1776
  %v1798 = vadd.f32 %v1796, %v1797
  %v1799 = vtanh.pop %v1798
  %v1800 = vmul.f32 %v1795, %v1799
  %v1802 = vperm.slane %v1648, 0
  %1804 = vmatpush.msra.mxu0 %v1647
  %1805 = vmatpush.msra.mxu0 %v1646
  %1806 = vmatpush.msra.mxu0 %v1645
  %1807 = vmatpush.msra.mxu0 %v1644
  %1808 = vmatpush.msra.mxu0 %v1643
  %1809 = vmatpush.msra.mxu0 %v1642
  %1810 = vmatpush.msra.mxu0 %v1641
  %1811 = vmatpush.msra.mxu0 %v1640
  %1812 = vmatpush.msra.mxu0 %v1639
  %1813 = vmatpush.msra.mxu0 %v1638
  %1814 = vmatpush.msra.mxu0 %v1637
  %1815 = vmatpush.msra.mxu0 %v1636
  %1816 = vmatpush.msra.mxu0 %v1635
  %1817 = vmatpush.msra.mxu0 %v1634
  %1818 = vmatpush.msra.mxu0 %v1633
  %1819 = vmatpush.msra.mxu0 %v1632
  %1820 = vmatmul.f32.gmra.mxu0 %v1800
  %v1821 = vpop.f32.mrf.mxu0
  %v1822 = vadd.f32 %v1802, %v1821
  %1823 = vdwg.mxu0
  %1824 = vst [vmem:[%s10] sm:$0xff] %v1822
  %v1826 = vperm.slane %v1631, 0
  %v1827 = vperm.slane %v1631, 1
  %v1828 = vperm.slane %v1631, 2
  %v1829 = vperm.slane %v1631, 3
  %1834 = vmatpush.msra.mxu0 %v1627
  %1835 = vmatpush.msra.mxu0 %v1623
  %1836 = vmatpush.msra.mxu0 %v1619
  %1837 = vmatpush.msra.mxu0 %v1615
  %1838 = vmatpush.msra.mxu0 %v1611
  %1839 = vmatpush.msra.mxu0 %v1607
  %1840 = vmatpush.msra.mxu0 %v1603
  %1841 = vmatpush.msra.mxu0 %v1599
  %1842 = vmatpush.msra.mxu0 %v1595
  %1843 = vmatpush.msra.mxu0 %v1591
  %1844 = vmatpush.msra.mxu0 %v1587
  %1845 = vmatpush.msra.mxu0 %v1583
  %1846 = vmatpush.msra.mxu0 %v1579
  %1847 = vmatpush.msra.mxu0 %v1575
  %1848 = vmatpush.msra.mxu0 %v1571
  %1849 = vmatpush.msra.mxu0 %v1567
  %1850 = vmatmul.f32.gmra.mxu0 %v1800
  %v1851 = vpop.f32.mrf.mxu0
  %v1852 = vadd.f32 %v1826, %v1851
  %1853 = vdwg.mxu0
  %1854 = vmatpush.msra.mxu0 %v1628
  %1855 = vmatpush.msra.mxu0 %v1624
  %1856 = vmatpush.msra.mxu0 %v1620
  %1857 = vmatpush.msra.mxu0 %v1616
  %1858 = vmatpush.msra.mxu0 %v1612
  %1859 = vmatpush.msra.mxu0 %v1608
  %1860 = vmatpush.msra.mxu0 %v1604
  %1861 = vmatpush.msra.mxu0 %v1600
  %1862 = vmatpush.msra.mxu0 %v1596
  %1863 = vmatpush.msra.mxu0 %v1592
  %1864 = vmatpush.msra.mxu0 %v1588
  %1865 = vmatpush.msra.mxu0 %v1584
  %1866 = vmatpush.msra.mxu0 %v1580
  %1867 = vmatpush.msra.mxu0 %v1576
  %1868 = vmatpush.msra.mxu0 %v1572
  %1869 = vmatpush.msra.mxu0 %v1568
  %1870 = vmatmul.f32.gmra.mxu0 %v1800
  %v1871 = vpop.f32.mrf.mxu0
  %v1872 = vadd.f32 %v1827, %v1871
  %1873 = vdwg.mxu0
  %1874 = vmatpush.msra.mxu0 %v1629
  %1875 = vmatpush.msra.mxu0 %v1625
  %1876 = vmatpush.msra.mxu0 %v1621
  %1877 = vmatpush.msra.mxu0 %v1617
  %1878 = vmatpush.msra.mxu0 %v1613
  %1879 = vmatpush.msra.mxu0 %v1609
  %1880 = vmatpush.msra.mxu0 %v1605
  %1881 = vmatpush.msra.mxu0 %v1601
  %1882 = vmatpush.msra.mxu0 %v1597
  %1883 = vmatpush.msra.mxu0 %v1593
  %1884 = vmatpush.msra.mxu0 %v1589
  %1885 = vmatpush.msra.mxu0 %v1585
  %1886 = vmatpush.msra.mxu0 %v1581
  %1887 = vmatpush.msra.mxu0 %v1577
  %1888 = vmatpush.msra.mxu0 %v1573
  %1889 = vmatpush.msra.mxu0 %v1569
  %1890 = vmatmul.f32.gmra.mxu0 %v1800
  %v1891 = vpop.f32.mrf.mxu0
  %v1892 = vadd.f32 %v1828, %v1891
  %1893 = vdwg.mxu0
  %1894 = vmatpush.msra.mxu0 %v1630
  %1895 = vmatpush.msra.mxu0 %v1626
  %1896 = vmatpush.msra.mxu0 %v1622
  %1897 = vmatpush.msra.mxu0 %v1618
  %1898 = vmatpush.msra.mxu0 %v1614
  %1899 = vmatpush.msra.mxu0 %v1610
  %1900 = vmatpush.msra.mxu0 %v1606
  %1901 = vmatpush.msra.mxu0 %v1602
  %1902 = vmatpush.msra.mxu0 %v1598
  %1903 = vmatpush.msra.mxu0 %v1594
  %1904 = vmatpush.msra.mxu0 %v1590
  %1905 = vmatpush.msra.mxu0 %v1586
  %1906 = vmatpush.msra.mxu0 %v1582
  %1907 = vmatpush.msra.mxu0 %v1578
  %1908 = vmatpush.msra.mxu0 %v1574
  %1909 = vmatpush.msra.mxu0 %v1570
  %1910 = vmatmul.f32.gmra.mxu0 %v1800
  %v1911 = vpop.f32.mrf.mxu0
  %v1912 = vadd.f32 %v1829, %v1911
  %1913 = vdwg.mxu0
  %v1914 = vxor.u32 %v1852, 2147483648
  %v1915 = vmul.f32 %v1914, 1.442695
  %v1916 = vpow.pop %v1915
  %v1917 = vadd.f32 %v1916, 1.0
  %v1918 = vrcp.pop %v1917
  %v1919 = vmul.f32 %v1917, %v1918
  %v1920 = vsub.f32 1.0, %v1919
  %v1921 = vmul.f32 %v1918, %v1920
  %v1922 = vadd.f32 %v1918, %v1921
  %vm1923 = vweird.f32 %v1917
  %vm1924 = vweird.f32 %v1918
  %vm1925 = vmor %vm1923, %vm1924
  %v1926 = vsel %vm1925, %v1918, %v1922
  %v1927 = vand.u32 2147483647, %v1917
  %vm1928 = vcmp.eq.f32.partialorder %v1927, 8.507059e+37
  %v1929 = vand.u32 %v1917, 2147483648
  %v1930 = vor.u32 1.1754944e-38, %v1929
  %v1931 = vsel %vm1928, %v1930, %v1926
  %v1932 = vmul.f32 1.0, %v1931
  %v1933 = vxor.u32 %v1872, 2147483648
  %v1934 = vmul.f32 %v1933, 1.442695
  %v1935 = vpow.pop %v1934
  %v1936 = vadd.f32 %v1935, 1.0
  %v1937 = vrcp.pop %v1936
  %v1938 = vmul.f32 %v1936, %v1937
  %v1939 = vsub.f32 1.0, %v1938
  %v1940 = vmul.f32 %v1937, %v1939
  %v1941 = vadd.f32 %v1937, %v1940
  %vm1942 = vweird.f32 %v1936
  %vm1943 = vweird.f32 %v1937
  %vm1944 = vmor %vm1942, %vm1943
  %v1945 = vsel %vm1944, %v1937, %v1941
  %v1946 = vand.u32 2147483647, %v1936
  %vm1947 = vcmp.eq.f32.partialorder %v1946, 8.507059e+37
  %v1948 = vand.u32 %v1936, 2147483648
  %v1949 = vor.u32 1.1754944e-38, %v1948
  %v1950 = vsel %vm1947, %v1949, %v1945
  %v1951 = vmul.f32 1.0, %v1950
  %v1952 = vtanh.pop %v1892
  %v1953 = vxor.u32 %v1912, 2147483648
  %v1954 = vmul.f32 %v1953, 1.442695
  %v1955 = vpow.pop %v1954
  %v1956 = vadd.f32 %v1955, 1.0
  %v1957 = vrcp.pop %v1956
  %v1958 = vmul.f32 %v1956, %v1957
  %v1959 = vsub.f32 1.0, %v1958
  %v1960 = vmul.f32 %v1957, %v1959
  %v1961 = vadd.f32 %v1957, %v1960
  %vm1962 = vweird.f32 %v1956
  %vm1963 = vweird.f32 %v1957
  %vm1964 = vmor %vm1962, %vm1963
  %v1965 = vsel %vm1964, %v1957, %v1961
  %v1966 = vand.u32 2147483647, %v1956
  %vm1967 = vcmp.eq.f32.partialorder %v1966, 8.507059e+37
  %v1968 = vand.u32 %v1956, 2147483648
  %v1969 = vor.u32 1.1754944e-38, %v1968
  %v1970 = vsel %vm1967, %v1969, %v1965
  %v1971 = vmul.f32 1.0, %v1970
  %v1972 = vmul.f32 %v1951, %v1798
  %v1973 = vmul.f32 %v1932, %v1952
  %v1974 = vadd.f32 %v1972, %v1973
  %v1975 = vtanh.pop %v1974
  %v1976 = vmul.f32 %v1971, %v1975
  %1977 = vmatpush.msra.mxu0 %v1647
  %1978 = vmatpush.msra.mxu0 %v1646
  %1979 = vmatpush.msra.mxu0 %v1645
  %1980 = vmatpush.msra.mxu0 %v1644
  %1981 = vmatpush.msra.mxu0 %v1643
  %1982 = vmatpush.msra.mxu0 %v1642
  %1983 = vmatpush.msra.mxu0 %v1641
  %1984 = vmatpush.msra.mxu0 %v1640
  %1985 = vmatpush.msra.mxu0 %v1639
  %1986 = vmatpush.msra.mxu0 %v1638
  %1987 = vmatpush.msra.mxu0 %v1637
  %1988 = vmatpush.msra.mxu0 %v1636
  %1989 = vmatpush.msra.mxu0 %v1635
  %1990 = vmatpush.msra.mxu0 %v1634
  %1991 = vmatpush.msra.mxu0 %v1633
  %1992 = vmatpush.msra.mxu0 %v1632
  %1993 = vmatmul.f32.gmra.mxu0 %v1976
  %v1994 = vpop.f32.mrf.mxu0
  %v1995 = vadd.f32 %v1802, %v1994
  %1996 = vdwg.mxu0
  %s1997 = scalar_lea.vmem %s10, 8
  %1998 = vst [vmem:[%s1997] sm:$0xff] %v1995
  %1999 = vmatpush.msra.mxu0 %v1627
  %2000 = vmatpush.msra.mxu0 %v1623
  %2001 = vmatpush.msra.mxu0 %v1619
  %2002 = vmatpush.msra.mxu0 %v1615
  %2003 = vmatpush.msra.mxu0 %v1611
  %2004 = vmatpush.msra.mxu0 %v1607
  %2005 = vmatpush.msra.mxu0 %v1603
  %2006 = vmatpush.msra.mxu0 %v1599
  %2007 = vmatpush.msra.mxu0 %v1595
  %2008 = vmatpush.msra.mxu0 %v1591
  %2009 = vmatpush.msra.mxu0 %v1587
  %2010 = vmatpush.msra.mxu0 %v1583
  %2011 = vmatpush.msra.mxu0 %v1579
  %2012 = vmatpush.msra.mxu0 %v1575
  %2013 = vmatpush.msra.mxu0 %v1571
  %2014 = vmatpush.msra.mxu0 %v1567
  %2015 = vmatmul.f32.gmra.mxu0 %v1976
  %v2016 = vpop.f32.mrf.mxu0
  %v2017 = vadd.f32 %v1826, %v2016
  %2018 = vdwg.mxu0
  %2019 = vmatpush.msra.mxu0 %v1628
  %2020 = vmatpush.msra.mxu0 %v1624
  %2021 = vmatpush.msra.mxu0 %v1620
  %2022 = vmatpush.msra.mxu0 %v1616
  %2023 = vmatpush.msra.mxu0 %v1612
  %2024 = vmatpush.msra.mxu0 %v1608
  %2025 = vmatpush.msra.mxu0 %v1604
  %2026 = vmatpush.msra.mxu0 %v1600
  %2027 = vmatpush.msra.mxu0 %v1596
  %2028 = vmatpush.msra.mxu0 %v1592
  %2029 = vmatpush.msra.mxu0 %v1588
  %2030 = vmatpush.msra.mxu0 %v1584
  %2031 = vmatpush.msra.mxu0 %v1580
  %2032 = vmatpush.msra.mxu0 %v1576
  %2033 = vmatpush.msra.mxu0 %v1572
  %2034 = vmatpush.msra.mxu0 %v1568
  %2035 = vmatmul.f32.gmra.mxu0 %v1976
  %v2036 = vpop.f32.mrf.mxu0
  %v2037 = vadd.f32 %v1827, %v2036
  %2038 = vdwg.mxu0
  %2039 = vmatpush.msra.mxu0 %v1629
  %2040 = vmatpush.msra.mxu0 %v1625
  %2041 = vmatpush.msra.mxu0 %v1621
  %2042 = vmatpush.msra.mxu0 %v1617
  %2043 = vmatpush.msra.mxu0 %v1613
  %2044 = vmatpush.msra.mxu0 %v1609
  %2045 = vmatpush.msra.mxu0 %v1605
  %2046 = vmatpush.msra.mxu0 %v1601
  %2047 = vmatpush.msra.mxu0 %v1597
  %2048 = vmatpush.msra.mxu0 %v1593
  %2049 = vmatpush.msra.mxu0 %v1589
  %2050 = vmatpush.msra.mxu0 %v1585
  %2051 = vmatpush.msra.mxu0 %v1581
  %2052 = vmatpush.msra.mxu0 %v1577
  %2053 = vmatpush.msra.mxu0 %v1573
  %2054 = vmatpush.msra.mxu0 %v1569
  %2055 = vmatmul.f32.gmra.mxu0 %v1976
  %v2056 = vpop.f32.mrf.mxu0
  %v2057 = vadd.f32 %v1828, %v2056
  %2058 = vdwg.mxu0
  %2059 = vmatpush.msra.mxu0 %v1630
  %2060 = vmatpush.msra.mxu0 %v1626
  %2061 = vmatpush.msra.mxu0 %v1622
  %2062 = vmatpush.msra.mxu0 %v1618
  %2063 = vmatpush.msra.mxu0 %v1614
  %2064 = vmatpush.msra.mxu0 %v1610
  %2065 = vmatpush.msra.mxu0 %v1606
  %2066 = vmatpush.msra.mxu0 %v1602
  %2067 = vmatpush.msra.mxu0 %v1598
  %2068 = vmatpush.msra.mxu0 %v1594
  %2069 = vmatpush.msra.mxu0 %v1590
  %2070 = vmatpush.msra.mxu0 %v1586
  %2071 = vmatpush.msra.mxu0 %v1582
  %2072 = vmatpush.msra.mxu0 %v1578
  %2073 = vmatpush.msra.mxu0 %v1574
  %2074 = vmatpush.msra.mxu0 %v1570
  %2075 = vmatmul.f32.gmra.mxu0 %v1976
  %v2076 = vpop.f32.mrf.mxu0
  %v2077 = vadd.f32 %v1829, %v2076
  %2078 = vdwg.mxu0
  %v2079 = vxor.u32 %v2017, 2147483648
  %v2080 = vmul.f32 %v2079, 1.442695
  %v2081 = vpow.pop %v2080
  %v2082 = vadd.f32 %v2081, 1.0
  %v2083 = vrcp.pop %v2082
  %v2084 = vmul.f32 %v2082, %v2083
  %v2085 = vsub.f32 1.0, %v2084
  %v2086 = vmul.f32 %v2083, %v2085
  %v2087 = vadd.f32 %v2083, %v2086
  %vm2088 = vweird.f32 %v2082
  %vm2089 = vweird.f32 %v2083
  %vm2090 = vmor %vm2088, %vm2089
  %v2091 = vsel %vm2090, %v2083, %v2087
  %v2092 = vand.u32 2147483647, %v2082
  %vm2093 = vcmp.eq.f32.partialorder %v2092, 8.507059e+37
  %v2094 = vand.u32 %v2082, 2147483648
  %v2095 = vor.u32 1.1754944e-38, %v2094
  %v2096 = vsel %vm2093, %v2095, %v2091
  %v2097 = vmul.f32 1.0, %v2096
  %v2098 = vxor.u32 %v2037, 2147483648
  %v2099 = vmul.f32 %v2098, 1.442695
  %v2100 = vpow.pop %v2099
  %v2101 = vadd.f32 %v2100, 1.0
  %v2102 = vrcp.pop %v2101
  %v2103 = vmul.f32 %v2101, %v2102
  %v2104 = vsub.f32 1.0, %v2103
  %v2105 = vmul.f32 %v2102, %v2104
  %v2106 = vadd.f32 %v2102, %v2105
  %vm2107 = vweird.f32 %v2101
  %vm2108 = vweird.f32 %v2102
  %vm2109 = vmor %vm2107, %vm2108
  %v2110 = vsel %vm2109, %v2102, %v2106
  %v2111 = vand.u32 2147483647, %v2101
  %vm2112 = vcmp.eq.f32.partialorder %v2111, 8.507059e+37
  %v2113 = vand.u32 %v2101, 2147483648
  %v2114 = vor.u32 1.1754944e-38, %v2113
  %v2115 = vsel %vm2112, %v2114, %v2110
  %v2116 = vmul.f32 1.0, %v2115
  %v2117 = vtanh.pop %v2057
  %v2118 = vxor.u32 %v2077, 2147483648
  %v2119 = vmul.f32 %v2118, 1.442695
  %v2120 = vpow.pop %v2119
  %v2121 = vadd.f32 %v2120, 1.0
  %v2122 = vrcp.pop %v2121
  %v2123 = vmul.f32 %v2121, %v2122
  %v2124 = vsub.f32 1.0, %v2123
  %v2125 = vmul.f32 %v2122, %v2124
  %v2126 = vadd.f32 %v2122, %v2125
  %vm2127 = vweird.f32 %v2121
  %vm2128 = vweird.f32 %v2122
  %vm2129 = vmor %vm2127, %vm2128
  %v2130 = vsel %vm2129, %v2122, %v2126
  %v2131 = vand.u32 2147483647, %v2121
  %vm2132 = vcmp.eq.f32.partialorder %v2131, 8.507059e+37
  %v2133 = vand.u32 %v2121, 2147483648
  %v2134 = vor.u32 1.1754944e-38, %v2133
  %v2135 = vsel %vm2132, %v2134, %v2130
  %v2136 = vmul.f32 1.0, %v2135
  %v2137 = vmul.f32 %v2116, %v1974
  %v2138 = vmul.f32 %v2097, %v2117
  %v2139 = vadd.f32 %v2137, %v2138
  %v2140 = vtanh.pop %v2139
  %v2141 = vmul.f32 %v2136, %v2140
  %2142 = vmatpush.msra.mxu0 %v1647
  %2143 = vmatpush.msra.mxu0 %v1646
  %2144 = vmatpush.msra.mxu0 %v1645
  %2145 = vmatpush.msra.mxu0 %v1644
  %2146 = vmatpush.msra.mxu0 %v1643
  %2147 = vmatpush.msra.mxu0 %v1642
  %2148 = vmatpush.msra.mxu0 %v1641
  %2149 = vmatpush.msra.mxu0 %v1640
  %2150 = vmatpush.msra.mxu0 %v1639
  %2151 = vmatpush.msra.mxu0 %v1638
  %2152 = vmatpush.msra.mxu0 %v1637
  %2153 = vmatpush.msra.mxu0 %v1636
  %2154 = vmatpush.msra.mxu0 %v1635
  %2155 = vmatpush.msra.mxu0 %v1634
  %2156 = vmatpush.msra.mxu0 %v1633
  %2157 = vmatpush.msra.mxu0 %v1632
  %2158 = vmatmul.f32.gmra.mxu0 %v2141
  %v2159 = vpop.f32.mrf.mxu0
  %v2160 = vadd.f32 %v1802, %v2159
  %2161 = vdwg.mxu0
  %s2162 = scalar_lea.vmem %s10, 16
  %2163 = vst [vmem:[%s2162] sm:$0xff] %v2160
  %2164 = vmatpush.msra.mxu0 %v1627
  %2165 = vmatpush.msra.mxu0 %v1623
  %2166 = vmatpush.msra.mxu0 %v1619
  %2167 = vmatpush.msra.mxu0 %v1615
  %2168 = vmatpush.msra.mxu0 %v1611
  %2169 = vmatpush.msra.mxu0 %v1607
  %2170 = vmatpush.msra.mxu0 %v1603
  %2171 = vmatpush.msra.mxu0 %v1599
  %2172 = vmatpush.msra.mxu0 %v1595
  %2173 = vmatpush.msra.mxu0 %v1591
  %2174 = vmatpush.msra.mxu0 %v1587
  %2175 = vmatpush.msra.mxu0 %v1583
  %2176 = vmatpush.msra.mxu0 %v1579
  %2177 = vmatpush.msra.mxu0 %v1575
  %2178 = vmatpush.msra.mxu0 %v1571
  %2179 = vmatpush.msra.mxu0 %v1567
  %2180 = vmatmul.f32.gmra.mxu0 %v2141
  %v2181 = vpop.f32.mrf.mxu0
  %v2182 = vadd.f32 %v1826, %v2181
  %2183 = vdwg.mxu0
  %2184 = vmatpush.msra.mxu0 %v1628
  %2185 = vmatpush.msra.mxu0 %v1624
  %2186 = vmatpush.msra.mxu0 %v1620
  %2187 = vmatpush.msra.mxu0 %v1616
  %2188 = vmatpush.msra.mxu0 %v1612
  %2189 = vmatpush.msra.mxu0 %v1608
  %2190 = vmatpush.msra.mxu0 %v1604
  %2191 = vmatpush.msra.mxu0 %v1600
  %2192 = vmatpush.msra.mxu0 %v1596
  %2193 = vmatpush.msra.mxu0 %v1592
  %2194 = vmatpush.msra.mxu0 %v1588
  %2195 = vmatpush.msra.mxu0 %v1584
  %2196 = vmatpush.msra.mxu0 %v1580
  %2197 = vmatpush.msra.mxu0 %v1576
  %2198 = vmatpush.msra.mxu0 %v1572
  %2199 = vmatpush.msra.mxu0 %v1568
  %2200 = vmatmul.f32.gmra.mxu0 %v2141
  %v2201 = vpop.f32.mrf.mxu0
  %v2202 = vadd.f32 %v1827, %v2201
  %2203 = vdwg.mxu0
  %2204 = vmatpush.msra.mxu0 %v1629
  %2205 = vmatpush.msra.mxu0 %v1625
  %2206 = vmatpush.msra.mxu0 %v1621
  %2207 = vmatpush.msra.mxu0 %v1617
  %2208 = vmatpush.msra.mxu0 %v1613
  %2209 = vmatpush.msra.mxu0 %v1609
  %2210 = vmatpush.msra.mxu0 %v1605
  %2211 = vmatpush.msra.mxu0 %v1601
  %2212 = vmatpush.msra.mxu0 %v1597
  %2213 = vmatpush.msra.mxu0 %v1593
  %2214 = vmatpush.msra.mxu0 %v1589
  %2215 = vmatpush.msra.mxu0 %v1585
  %2216 = vmatpush.msra.mxu0 %v1581
  %2217 = vmatpush.msra.mxu0 %v1577
  %2218 = vmatpush.msra.mxu0 %v1573
  %2219 = vmatpush.msra.mxu0 %v1569
  %2220 = vmatmul.f32.gmra.mxu0 %v2141
  %v2221 = vpop.f32.mrf.mxu0
  %v2222 = vadd.f32 %v1828, %v2221
  %2223 = vdwg.mxu0
  %2224 = vmatpush.msra.mxu0 %v1630
  %2225 = vmatpush.msra.mxu0 %v1626
  %2226 = vmatpush.msra.mxu0 %v1622
  %2227 = vmatpush.msra.mxu0 %v1618
  %2228 = vmatpush.msra.mxu0 %v1614
  %2229 = vmatpush.msra.mxu0 %v1610
  %2230 = vmatpush.msra.mxu0 %v1606
  %2231 = vmatpush.msra.mxu0 %v1602
  %2232 = vmatpush.msra.mxu0 %v1598
  %2233 = vmatpush.msra.mxu0 %v1594
  %2234 = vmatpush.msra.mxu0 %v1590
  %2235 = vmatpush.msra.mxu0 %v1586
  %2236 = vmatpush.msra.mxu0 %v1582
  %2237 = vmatpush.msra.mxu0 %v1578
  %2238 = vmatpush.msra.mxu0 %v1574
  %2239 = vmatpush.msra.mxu0 %v1570
  %2240 = vmatmul.f32.gmra.mxu0 %v2141
  %v2241 = vpop.f32.mrf.mxu0
  %v2242 = vadd.f32 %v1829, %v2241
  %2243 = vdwg.mxu0
  %v2244 = vxor.u32 %v2182, 2147483648
  %v2245 = vmul.f32 %v2244, 1.442695
  %v2246 = vpow.pop %v2245
  %v2247 = vadd.f32 %v2246, 1.0
  %v2248 = vrcp.pop %v2247
  %v2249 = vmul.f32 %v2247, %v2248
  %v2250 = vsub.f32 1.0, %v2249
  %v2251 = vmul.f32 %v2248, %v2250
  %v2252 = vadd.f32 %v2248, %v2251
  %vm2253 = vweird.f32 %v2247
  %vm2254 = vweird.f32 %v2248
  %vm2255 = vmor %vm2253, %vm2254
  %v2256 = vsel %vm2255, %v2248, %v2252
  %v2257 = vand.u32 2147483647, %v2247
  %vm2258 = vcmp.eq.f32.partialorder %v2257, 8.507059e+37
  %v2259 = vand.u32 %v2247, 2147483648
  %v2260 = vor.u32 1.1754944e-38, %v2259
  %v2261 = vsel %vm2258, %v2260, %v2256
  %v2262 = vmul.f32 1.0, %v2261
  %v2263 = vxor.u32 %v2202, 2147483648
  %v2264 = vmul.f32 %v2263, 1.442695
  %v2265 = vpow.pop %v2264
  %v2266 = vadd.f32 %v2265, 1.0
  %v2267 = vrcp.pop %v2266
  %v2268 = vmul.f32 %v2266, %v2267
  %v2269 = vsub.f32 1.0, %v2268
  %v2270 = vmul.f32 %v2267, %v2269
  %v2271 = vadd.f32 %v2267, %v2270
  %vm2272 = vweird.f32 %v2266
  %vm2273 = vweird.f32 %v2267
  %vm2274 = vmor %vm2272, %vm2273
  %v2275 = vsel %vm2274, %v2267, %v2271
  %v2276 = vand.u32 2147483647, %v2266
  %vm2277 = vcmp.eq.f32.partialorder %v2276, 8.507059e+37
  %v2278 = vand.u32 %v2266, 2147483648
  %v2279 = vor.u32 1.1754944e-38, %v2278
  %v2280 = vsel %vm2277, %v2279, %v2275
  %v2281 = vmul.f32 1.0, %v2280
  %v2282 = vtanh.pop %v2222
  %v2283 = vxor.u32 %v2242, 2147483648
  %v2284 = vmul.f32 %v2283, 1.442695
  %v2285 = vpow.pop %v2284
  %v2286 = vadd.f32 %v2285, 1.0
  %v2287 = vrcp.pop %v2286
  %v2288 = vmul.f32 %v2286, %v2287
  %v2289 = vsub.f32 1.0, %v2288
  %v2290 = vmul.f32 %v2287, %v2289
  %v2291 = vadd.f32 %v2287, %v2290
  %vm2292 = vweird.f32 %v2286
  %vm2293 = vweird.f32 %v2287
  %vm2294 = vmor %vm2292, %vm2293
  %v2295 = vsel %vm2294, %v2287, %v2291
  %v2296 = vand.u32 2147483647, %v2286
  %vm2297 = vcmp.eq.f32.partialorder %v2296, 8.507059e+37
  %v2298 = vand.u32 %v2286, 2147483648
  %v2299 = vor.u32 1.1754944e-38, %v2298
  %v2300 = vsel %vm2297, %v2299, %v2295
  %v2301 = vmul.f32 1.0, %v2300
  %v2302 = vmul.f32 %v2281, %v2139
  %v2303 = vmul.f32 %v2262, %v2282
  %v2304 = vadd.f32 %v2302, %v2303
  %v2305 = vtanh.pop %v2304
  %v2306 = vmul.f32 %v2301, %v2305
  %2307 = vmatpush.msra.mxu0 %v1647
  %2308 = vmatpush.msra.mxu0 %v1646
  %2309 = vmatpush.msra.mxu0 %v1645
  %2310 = vmatpush.msra.mxu0 %v1644
  %2311 = vmatpush.msra.mxu0 %v1643
  %2312 = vmatpush.msra.mxu0 %v1642
  %2313 = vmatpush.msra.mxu0 %v1641
  %2314 = vmatpush.msra.mxu0 %v1640
  %2315 = vmatpush.msra.mxu0 %v1639
  %2316 = vmatpush.msra.mxu0 %v1638
  %2317 = vmatpush.msra.mxu0 %v1637
  %2318 = vmatpush.msra.mxu0 %v1636
  %2319 = vmatpush.msra.mxu0 %v1635
  %2320 = vmatpush.msra.mxu0 %v1634
  %2321 = vmatpush.msra.mxu0 %v1633
  %2322 = vmatpush.msra.mxu0 %v1632
  %2323 = vmatmul.f32.gmra.mxu0 %v2306
  %v2324 = vpop.f32.mrf.mxu0
  %v2325 = vadd.f32 %v1802, %v2324
  %2326 = vdwg.mxu0
  %s2327 = scalar_lea.vmem %s10, 24
  %2328 = vst [vmem:[%s2327] sm:$0xff] %v2325
  %2329 = vmatpush.msra.mxu0 %v1627
  %2330 = vmatpush.msra.mxu0 %v1623
  %2331 = vmatpush.msra.mxu0 %v1619
  %2332 = vmatpush.msra.mxu0 %v1615
  %2333 = vmatpush.msra.mxu0 %v1611
  %2334 = vmatpush.msra.mxu0 %v1607
  %2335 = vmatpush.msra.mxu0 %v1603
  %2336 = vmatpush.msra.mxu0 %v1599
  %2337 = vmatpush.msra.mxu0 %v1595
  %2338 = vmatpush.msra.mxu0 %v1591
  %2339 = vmatpush.msra.mxu0 %v1587
  %2340 = vmatpush.msra.mxu0 %v1583
  %2341 = vmatpush.msra.mxu0 %v1579
  %2342 = vmatpush.msra.mxu0 %v1575
  %2343 = vmatpush.msra.mxu0 %v1571
  %2344 = vmatpush.msra.mxu0 %v1567
  %2345 = vmatmul.f32.gmra.mxu0 %v2306
  %v2346 = vpop.f32.mrf.mxu0
  %v2347 = vadd.f32 %v1826, %v2346
  %2348 = vdwg.mxu0
  %2349 = vmatpush.msra.mxu0 %v1628
  %2350 = vmatpush.msra.mxu0 %v1624
  %2351 = vmatpush.msra.mxu0 %v1620
  %2352 = vmatpush.msra.mxu0 %v1616
  %2353 = vmatpush.msra.mxu0 %v1612
  %2354 = vmatpush.msra.mxu0 %v1608
  %2355 = vmatpush.msra.mxu0 %v1604
  %2356 = vmatpush.msra.mxu0 %v1600
  %2357 = vmatpush.msra.mxu0 %v1596
  %2358 = vmatpush.msra.mxu0 %v1592
  %2359 = vmatpush.msra.mxu0 %v1588
  %2360 = vmatpush.msra.mxu0 %v1584
  %2361 = vmatpush.msra.mxu0 %v1580
  %2362 = vmatpush.msra.mxu0 %v1576
  %2363 = vmatpush.msra.mxu0 %v1572
  %2364 = vmatpush.msra.mxu0 %v1568
  %2365 = vmatmul.f32.gmra.mxu0 %v2306
  %v2366 = vpop.f32.mrf.mxu0
  %v2367 = vadd.f32 %v1827, %v2366
  %2368 = vdwg.mxu0
  %2369 = vmatpush.msra.mxu0 %v1629
  %2370 = vmatpush.msra.mxu0 %v1625
  %2371 = vmatpush.msra.mxu0 %v1621
  %2372 = vmatpush.msra.mxu0 %v1617
  %2373 = vmatpush.msra.mxu0 %v1613
  %2374 = vmatpush.msra.mxu0 %v1609
  %2375 = vmatpush.msra.mxu0 %v1605
  %2376 = vmatpush.msra.mxu0 %v1601
  %2377 = vmatpush.msra.mxu0 %v1597
  %2378 = vmatpush.msra.mxu0 %v1593
  %2379 = vmatpush.msra.mxu0 %v1589
  %2380 = vmatpush.msra.mxu0 %v1585
  %2381 = vmatpush.msra.mxu0 %v1581
  %2382 = vmatpush.msra.mxu0 %v1577
  %2383 = vmatpush.msra.mxu0 %v1573
  %2384 = vmatpush.msra.mxu0 %v1569
  %2385 = vmatmul.f32.gmra.mxu0 %v2306
  %v2386 = vpop.f32.mrf.mxu0
  %v2387 = vadd.f32 %v1828, %v2386
  %2388 = vdwg.mxu0
  %2389 = vmatpush.msra.mxu0 %v1630
  %2390 = vmatpush.msra.mxu0 %v1626
  %2391 = vmatpush.msra.mxu0 %v1622
  %2392 = vmatpush.msra.mxu0 %v1618
  %2393 = vmatpush.msra.mxu0 %v1614
  %2394 = vmatpush.msra.mxu0 %v1610
  %2395 = vmatpush.msra.mxu0 %v1606
  %2396 = vmatpush.msra.mxu0 %v1602
  %2397 = vmatpush.msra.mxu0 %v1598
  %2398 = vmatpush.msra.mxu0 %v1594
  %2399 = vmatpush.msra.mxu0 %v1590
  %2400 = vmatpush.msra.mxu0 %v1586
  %2401 = vmatpush.msra.mxu0 %v1582
  %2402 = vmatpush.msra.mxu0 %v1578
  %2403 = vmatpush.msra.mxu0 %v1574
  %2404 = vmatpush.msra.mxu0 %v1570
  %2405 = vmatmul.f32.gmra.mxu0 %v2306
  %v2406 = vpop.f32.mrf.mxu0
  %v2407 = vadd.f32 %v1829, %v2406
  %2408 = vdwg.mxu0
  %v2409 = vxor.u32 %v2347, 2147483648
  %v2410 = vmul.f32 %v2409, 1.442695
  %v2411 = vpow.pop %v2410
  %v2412 = vadd.f32 %v2411, 1.0
  %v2413 = vrcp.pop %v2412
  %v2414 = vmul.f32 %v2412, %v2413
  %v2415 = vsub.f32 1.0, %v2414
  %v2416 = vmul.f32 %v2413, %v2415
  %v2417 = vadd.f32 %v2413, %v2416
  %vm2418 = vweird.f32 %v2412
  %vm2419 = vweird.f32 %v2413
  %vm2420 = vmor %vm2418, %vm2419
  %v2421 = vsel %vm2420, %v2413, %v2417
  %v2422 = vand.u32 2147483647, %v2412
  %vm2423 = vcmp.eq.f32.partialorder %v2422, 8.507059e+37
  %v2424 = vand.u32 %v2412, 2147483648
  %v2425 = vor.u32 1.1754944e-38, %v2424
  %v2426 = vsel %vm2423, %v2425, %v2421
  %v2427 = vmul.f32 1.0, %v2426
  %v2428 = vxor.u32 %v2367, 2147483648
  %v2429 = vmul.f32 %v2428, 1.442695
  %v2430 = vpow.pop %v2429
  %v2431 = vadd.f32 %v2430, 1.0
  %v2432 = vrcp.pop %v2431
  %v2433 = vmul.f32 %v2431, %v2432
  %v2434 = vsub.f32 1.0, %v2433
  %v2435 = vmul.f32 %v2432, %v2434
  %v2436 = vadd.f32 %v2432, %v2435
  %vm2437 = vweird.f32 %v2431
  %vm2438 = vweird.f32 %v2432
  %vm2439 = vmor %vm2437, %vm2438
  %v2440 = vsel %vm2439, %v2432, %v2436
  %v2441 = vand.u32 2147483647, %v2431
  %vm2442 = vcmp.eq.f32.partialorder %v2441, 8.507059e+37
  %v2443 = vand.u32 %v2431, 2147483648
  %v2444 = vor.u32 1.1754944e-38, %v2443
  %v2445 = vsel %vm2442, %v2444, %v2440
  %v2446 = vmul.f32 1.0, %v2445
  %v2447 = vtanh.pop %v2387
  %v2448 = vxor.u32 %v2407, 2147483648
  %v2449 = vmul.f32 %v2448, 1.442695
  %v2450 = vpow.pop %v2449
  %v2451 = vadd.f32 %v2450, 1.0
  %v2452 = vrcp.pop %v2451
  %v2453 = vmul.f32 %v2451, %v2452
  %v2454 = vsub.f32 1.0, %v2453
  %v2455 = vmul.f32 %v2452, %v2454
  %v2456 = vadd.f32 %v2452, %v2455
  %vm2457 = vweird.f32 %v2451
  %vm2458 = vweird.f32 %v2452
  %vm2459 = vmor %vm2457, %vm2458
  %v2460 = vsel %vm2459, %v2452, %v2456
  %v2461 = vand.u32 2147483647, %v2451
  %vm2462 = vcmp.eq.f32.partialorder %v2461, 8.507059e+37
  %v2463 = vand.u32 %v2451, 2147483648
  %v2464 = vor.u32 1.1754944e-38, %v2463
  %v2465 = vsel %vm2462, %v2464, %v2460
  %v2466 = vmul.f32 1.0, %v2465
  %v2467 = vmul.f32 %v2446, %v2304
  %v2468 = vmul.f32 %v2427, %v2447
  %v2469 = vadd.f32 %v2467, %v2468
  %v2470 = vtanh.pop %v2469
  %v2471 = vmul.f32 %v2466, %v2470
  %2472 = vmatpush.msra.mxu0 %v1647
  %2473 = vmatpush.msra.mxu0 %v1646
  %2474 = vmatpush.msra.mxu0 %v1645
  %2475 = vmatpush.msra.mxu0 %v1644
  %2476 = vmatpush.msra.mxu0 %v1643
  %2477 = vmatpush.msra.mxu0 %v1642
  %2478 = vmatpush.msra.mxu0 %v1641
  %2479 = vmatpush.msra.mxu0 %v1640
  %2480 = vmatpush.msra.mxu0 %v1639
  %2481 = vmatpush.msra.mxu0 %v1638
  %2482 = vmatpush.msra.mxu0 %v1637
  %2483 = vmatpush.msra.mxu0 %v1636
  %2484 = vmatpush.msra.mxu0 %v1635
  %2485 = vmatpush.msra.mxu0 %v1634
  %2486 = vmatpush.msra.mxu0 %v1633
  %2487 = vmatpush.msra.mxu0 %v1632
  %2488 = vmatmul.f32.gmra.mxu0 %v2471
  %v2489 = vpop.f32.mrf.mxu0
  %v2490 = vadd.f32 %v1802, %v2489
  %2491 = vdwg.mxu0
  %s2492 = scalar_lea.vmem %s10, 32
  %2493 = vst [vmem:[%s2492] sm:$0xff] %v2490
  // Predicated region
  $region42: #{seq2seq_forward.1} parent=0 // pred_check
    _
  $region43: #{seq2seq_forward.1} parent=0 // pred_check_branch
    %2495 = sbr.rel (0) target = $region45
  $region44: #{seq2seq_forward.1} parent=0 // pred_region
    _
  $region45: #{seq2seq_forward.1} parent=0 // pred_fallthru
    _
  // Predicated region
  $region46: #{seq2seq_forward.1} parent=0 // pred_check
    _
  $region47: #{seq2seq_forward.1} parent=0 // pred_check_branch
    %2497 = sbr.rel (0) target = $region49
  $region48: #{seq2seq_forward.1} parent=0 // pred_region
    _
  $region49: #{seq2seq_forward.1} parent=0 // pred_fallthru
    _

</llo_original>
